<compile_context>
chip_gen: v6e
topology: v6e:2x2x1
jax: 0.10.0
libtpu: 0.0.40
codegen_flags: <defaults>
</compile_context>

<pallas_src>
import functools
import math

import jax
import jax.numpy as jnp
from jax.experimental import pallas as pl
from jax.experimental.pallas import tpu as pltpu


_VMEM_LIMIT = 48 * 1024 * 1024  # < 64 MiB/TC physical on v7x, raises v5e's 16 MiB default


# ---------------------------------------------------------------------------
# Pallas kernel 1: conv-as-matmul + folded-BN shift + ReLU (+ fused skip add)
#   o[:, j*t:(j+1)*t] = relu(W(Cout,K) @ colT(K,t) + shift) [+ skip(Cout,t)]
# Batch is folded into the lane dimension (t tiles of N*Ho*Wo).
# ---------------------------------------------------------------------------
def _conv_mm_kernel(w_ref, colT_ref, shift_ref, o_ref):
    acc = jnp.dot(w_ref[...], colT_ref[...],
                  preferred_element_type=jnp.float32)      # bf16 in, f32 acc (MXU)
    acc = jnp.maximum(acc + shift_ref[...], 0.0)           # (Cout,1) lane broadcast
    o_ref[...] = acc.astype(o_ref.dtype)


def _conv_mm_skip_kernel(w_ref, colT_ref, shift_ref, skip_ref, o_ref):
    acc = jnp.dot(w_ref[...], colT_ref[...],
                  preferred_element_type=jnp.float32)
    acc = jnp.maximum(acc + shift_ref[...], 0.0)
    acc = acc + skip_ref[...].astype(jnp.float32)          # fused decoder skip-add
    o_ref[...] = acc.astype(o_ref.dtype)


def _pick_lane_tile(nhw, cap=1024):
    """Largest 128-multiple tile dividing nhw (prefer >=2 grid steps for the
    2-TC chips); full extent if nhw is not a 128 multiple (8,128 rule)."""
    if nhw % 128 != 0:
        return nhw
    best = None
    for t in range(min(cap, nhw), 127, -128):
        if nhw % t == 0:
            if nhw // t >= 2:
                return t
            if best is None:
                best = t
    return best if best is not None else nhw


def conv_mm(w_flat, colT, shift, skip=None, *, out_dtype=jnp.bfloat16):
    Cout, K = w_flat.shape
    _, NHW = colT.shape
    t = _pick_lane_tile(NHW)
    in_specs = [
        pl.BlockSpec((Cout, K), lambda j: (0, 0)),          # resident folded weights
        pl.BlockSpec((K, t), lambda j: (0, j)),
        pl.BlockSpec((Cout, 1), lambda j: (0, 0)),
    ]
    args = (w_flat, colT, shift)
    kernel = _conv_mm_kernel
    if skip is not None:
        in_specs.append(pl.BlockSpec((Cout, t), lambda j: (0, j)))
        args = args + (skip,)
        kernel = _conv_mm_skip_kernel
    return pl.pallas_call(
        kernel,
        out_shape=jax.ShapeDtypeStruct((Cout, NHW), out_dtype),
        grid=(NHW // t,),
        in_specs=in_specs,
        out_specs=pl.BlockSpec((Cout, t), lambda j: (0, j)),
        compiler_params=pltpu.CompilerParams(
            dimension_semantics=("parallel",),
            vmem_limit_bytes=_VMEM_LIMIT),
    )(*args)


# ---------------------------------------------------------------------------
# Pallas kernel 2: Linear projection o = x @ W + b (used only for explicit q,
# where M = N*T; the shared positional query is projected with plain jnp.dot)
# ---------------------------------------------------------------------------
def _linear_kernel(x_ref, w_ref, b_ref, o_ref):
    acc = jnp.dot(x_ref[...], w_ref[...], preferred_element_type=jnp.float32)
    o_ref[...] = (acc + b_ref[...]).astype(o_ref.dtype)


def linear(x2d, w, b):
    M, K = x2d.shape
    _, Nout = w.shape
    return pl.pallas_call(
        _linear_kernel,
        out_shape=jax.ShapeDtypeStruct((M, Nout), jnp.float32),
        grid=(1,),
        in_specs=[
            pl.BlockSpec((M, K), lambda i: (0, 0)),
            pl.BlockSpec((K, Nout), lambda i: (0, 0)),
            pl.BlockSpec((1, Nout), lambda i: (0, 0)),
        ],
        out_specs=pl.BlockSpec((M, Nout), lambda i: (0, 0)),
    )(x2d, w, b)


# ---------------------------------------------------------------------------
# Pallas kernel 3: fused attention, nb batch elements per grid step.
#   scores = softmax((q @ k) / sqrt(E));  vecs = scores @ v
# q:(nb,T,E)  k:(nb,E,HW)  v:(nb,HW,E)  -> both matmuls are plain batched
# MXU matmuls (no in-kernel transpose / broadcast).
# ---------------------------------------------------------------------------
def _attn_kernel(q_ref, k_ref, v_ref, vec_ref, sc_ref, *, inv_sqrt_e):
    s = jnp.einsum("bte,beh->bth", q_ref[...], k_ref[...],
                   preferred_element_type=jnp.float32) * inv_sqrt_e
    s = s - jnp.max(s, axis=-1, keepdims=True)
    e = jnp.exp(s)
    l = jnp.sum(e, axis=-1, keepdims=True)
    p = e * pl.reciprocal(l, approx=True)                   # EUP slot, not VPU divide
    sc_ref[...] = p.astype(sc_ref.dtype)
    vec = jnp.einsum("bth,bhe->bte", p.astype(v_ref.dtype), v_ref[...],
                     preferred_element_type=jnp.float32)
    vec_ref[...] = vec.astype(vec_ref.dtype)


def _pick_attn_nb(N, T, E, HW, budget_bytes=16 * 1024 * 1024):
    # double-buffered per-batch-element bytes: k,v,q bf16 + vecs/scores f32
    per = 2 * (2 * E * HW * 2 + T * E * 2 + T * E * 4 + T * HW * 4)
    nb = max(1, min(N, budget_bytes // max(per, 1)))
    if N >= 2:
        nb = max(1, min(nb, N // 2))     # keep >=2 grid steps (v7x has 2 TCs)
    while N % nb != 0:
        nb -= 1
    return nb


def attention(q2, k_flat, v_flat):
    N, E, HW = k_flat.shape
    _, T, _ = q2.shape
    nb = _pick_attn_nb(N, T, E, HW)
    return pl.pallas_call(
        functools.partial(_attn_kernel, inv_sqrt_e=1.0 / math.sqrt(E)),
        out_shape=(
            jax.ShapeDtypeStruct((N, T, E), jnp.float32),
            jax.ShapeDtypeStruct((N, T, HW), jnp.float32),
        ),
        grid=(N // nb,),
        in_specs=[
            pl.BlockSpec((nb, T, E), lambda n: (n, 0, 0)),
            pl.BlockSpec((nb, E, HW), lambda n: (n, 0, 0)),
            pl.BlockSpec((nb, HW, E), lambda n: (n, 0, 0)),
        ],
        out_specs=(
            pl.BlockSpec((nb, T, E), lambda n: (n, 0, 0)),
            pl.BlockSpec((nb, T, HW), lambda n: (n, 0, 0)),
        ),
        compiler_params=pltpu.CompilerParams(
            dimension_semantics=("parallel",),
            vmem_limit_bytes=_VMEM_LIMIT),
    )(q2, k_flat, v_flat)


# ---------------------------------------------------------------------------
# Glue: batch-folded im2col, nearest upsample, positional encoding, params
# ---------------------------------------------------------------------------
def im2col_T(xk, kh, kw, sh, sw, ph, pw):
    """(C, N, H, W) -> (K=C*kh*kw, N*Ho*Wo) bf16 patches, lane-dense layout the
    conv kernel consumes directly.  Tap order (c, kh, kw) matches PyTorch's
    w.reshape(Cout, C*kh*kw) flattening."""
    C, N, H, W = xk.shape
    xp = jnp.pad(xk, ((0, 0), (0, 0), (ph, ph), (pw, pw)))
    Ho = (H + 2 * ph - kh) // sh + 1
    Wo = (W + 2 * pw - kw) // sw + 1
    taps = []
    for i in range(kh):
        for j in range(kw):
            taps.append(xp[:, :, i:i + sh * Ho:sh, j:j + sw * Wo:sw])
    col = jnp.stack(taps, axis=1)                    # (C, kh*kw, N, Ho, Wo)
    col = col.reshape(C * kh * kw, N * Ho * Wo)
    return col.astype(jnp.bfloat16), Ho, Wo


def conv_bn_relu(xk, params, stride, skip=None):
    """Conv2d(3x3, pad=1) + BatchNorm2d (eval, folded) + ReLU (+ fused skip add).
    Activations travel in (C, N, H, W) layout so batch folds into the lanes."""
    w, b, gamma, beta, mean, var = params
    Cout, Cin, kh, kw = w.shape
    sh, sw = stride
    colT, Ho, Wo = im2col_T(xk, kh, kw, sh, sw, 1, 1)
    g = gamma / jnp.sqrt(var + 1e-5)
    w_bn = (w * g[:, None, None, None]).reshape(Cout, Cin * kh * kw)
    w_bn = w_bn.astype(jnp.bfloat16)                 # BN scale folded into weights
    shift = (beta + (b - mean) * g).reshape(Cout, 1).astype(jnp.float32)
    skip2 = None if skip is None else skip.reshape(Cout, -1)
    y = conv_mm(w_bn, colT, shift, skip2)            # (Cout, N*Ho*Wo) bf16
    N = xk.shape[1]
    return y.reshape(Cout, N, Ho, Wo)


def upsample_nearest(xk, size):
    C, N, H, W = xk.shape
    Ho, Wo = size
    assert Ho % H == 0 and Wo % W == 0, "nearest upsample needs integer scales"
    xk = jnp.repeat(xk, Ho // H, axis=2)
    xk = jnp.repeat(xk, Wo // W, axis=3)
    return xk


def positional_encoding(max_len, d_model):
    position = jnp.arange(max_len, dtype=jnp.float32)[:, None]
    div_term = jnp.exp(
        jnp.arange(0, d_model, 2, dtype=jnp.float32) * (-math.log(10000.0) / d_model)
    )
    pe = jnp.zeros((max_len, d_model), dtype=jnp.float32)
    pe = pe.at[:, 0::2].set(jnp.sin(position * div_term))
    pe = pe.at[:, 1::2].set(jnp.cos(position * div_term))
    return pe                                         # (max_len, d_model)


def init_params(key, in_channels, num_channels):
    def conv_params(k, cin, cout):
        k1, k2, k3, k4, k5, k6 = jax.random.split(k, 6)
        w = jax.random.normal(k1, (cout, cin, 3, 3), jnp.float32) * 0.1
        b = jax.random.normal(k2, (cout,), jnp.float32) * 0.1
        gamma = 1.0 + 0.1 * jax.random.normal(k3, (cout,), jnp.float32)
        beta = 0.1 * jax.random.normal(k4, (cout,), jnp.float32)
        mean = 0.1 * jax.random.normal(k5, (cout,), jnp.float32)
        var = jax.random.uniform(k6, (cout,), jnp.float32, minval=0.5, maxval=1.5)
        return (w, b, gamma, beta, mean, var)

    keys = jax.random.split(key, 10)
    enc_ch = [(in_channels, num_channels)] + [(num_channels, num_channels)] * 3
    dec_ch = [(num_channels, num_channels)] * 3 + [(num_channels, in_channels)]
    return {
        "enc": [conv_params(keys[i], *enc_ch[i]) for i in range(4)],
        "dec": [conv_params(keys[4 + i], *dec_ch[i]) for i in range(4)],
        "proj_w": jax.random.normal(keys[8], (in_channels, in_channels), jnp.float32)
        * (1.0 / math.sqrt(in_channels)),
        "proj_b": 0.1 * jax.random.normal(keys[9], (in_channels,), jnp.float32),
    }


# ---------------------------------------------------------------------------
# PositionAttention forward
# ---------------------------------------------------------------------------
def position_attention(x, params, max_length, h, w, q=None):
    N, E, H, W = x.shape
    xb = x.astype(jnp.bfloat16)

    # --- key path: U-net of Conv+BN+ReLU in (C, N, H, W) layout -------------
    k = jnp.transpose(xb, (1, 0, 2, 3))               # one relayout of x
    features = []
    enc_strides = [(1, 2), (2, 2), (2, 2), (2, 2)]
    for p, s in zip(params["enc"], enc_strides):
        k = conv_bn_relu(k, p, s)
        features.append(k)
    for i in range(3):                                 # decoders 0..2, skip fused
        k = upsample_nearest(k, (k.shape[2] * 2, k.shape[3] * 2))
        k = conv_bn_relu(k, params["dec"][i], (1, 1), skip=features[2 - i])
    k = upsample_nearest(k, (h, w))                    # last decoder, no skip
    k = conv_bn_relu(k, params["dec"][3], (1, 1))      # (E, N, h, w)

    # --- query path ----------------------------------------------------------
    w_proj = params["proj_w"].T                        # Linear: y = x @ W^T + b
    b_proj = params["proj_b"]
    if q is None:
        T = max_length
        pe = positional_encoding(max_length, E)        # zeros + pe == pe
        qp = jnp.dot(pe, w_proj) + b_proj[None, :]     # tiny; let XLA fuse it
        q2 = jnp.broadcast_to(qp[None], (N, T, E)).astype(jnp.bfloat16)
    else:
        T = q.shape[1]
        q2 = linear(q.reshape(N * T, E).astype(jnp.bfloat16),
                    w_proj.astype(jnp.bfloat16),
                    b_proj.reshape(1, E).astype(jnp.float32))
        q2 = q2.reshape(N, T, E).astype(jnp.bfloat16)

    # --- attention: k -> (N,E,HW); v -> (N,HW,E) so both matmuls are plain ---
    k_flat = jnp.transpose(k.reshape(E, N, h * w), (1, 0, 2))
    v_flat = jnp.transpose(xb, (0, 2, 3, 1)).reshape(N, H * W, E)
    attn_vecs, attn_scores = attention(q2, k_flat, v_flat)
    return attn_vecs, attn_scores.reshape(N, T, H, W)


if __name__ == "__main__":
    key = jax.random.PRNGKey(0)
    kx, kp, kq = jax.random.split(key, 3)

    # small shapes consistent with the module's structure (H=h, W=w required)
    N, E, H, W = 2, 32, 8, 32
    num_channels = 8
    max_length = 8

    x = jax.random.normal(kx, (N, E, H, W), jnp.float32)
    params = init_params(kp, E, num_channels)

    fwd = jax.jit(functools.partial(position_attention,
                                    max_length=max_length, h=H, w=W))

    # shared positional query path (q=None)
    attn_vecs, attn_scores = fwd(x, params)
    jax.block_until_ready((attn_vecs, attn_scores))
    assert attn_vecs.shape == (N, max_length, E)
    assert attn_scores.shape == (N, max_length, H, W)
    assert bool(jnp.all(jnp.isfinite(attn_vecs)))
    assert bool(jnp.all(jnp.isfinite(attn_scores)))

    # explicit per-batch query path (exercises the Pallas linear projection)
    q_in = jax.random.normal(kq, (N, max_length, E), jnp.float32)
    v2, s2 = fwd(x, params, q=q_in)
    jax.block_until_ready((v2, s2))
    assert v2.shape == (N, max_length, E)
    assert s2.shape == (N, max_length, H, W)
    assert bool(jnp.all(jnp.isfinite(v2)))
    assert bool(jnp.all(jnp.isfinite(s2)))

    print("KERNEL_OK")
</pallas_src>

<mosaic_0001>
module attributes {stable_mosaic.version = 11 : i64} {
  func.func @_conv_mm_kernel(%arg0: i32, %arg1: memref<8x288xbf16, #tpu.memory_space<vmem>>, %arg2: memref<288x128xbf16, #tpu.memory_space<vmem>>, %arg3: memref<8x1xf32, #tpu.memory_space<vmem>>, %arg4: memref<8x128xbf16, #tpu.memory_space<vmem>>) attributes {dimension_semantics = [#tpu.dimension_semantics<parallel>], iteration_bounds = array<i64: 2>, scalar_prefetch = 0 : i64, scratch_operands = 0 : i64, tpu.core_type = #tpu.core_type<tc>, window_params = [{pipeline_mode = #tpu.pipeline_mode<synchronous>, transform_indices = @transform_0, window_bounds = array<i64: 8, 288>}, {transform_indices = @transform_1, window_bounds = array<i64: 288, 128>}, {pipeline_mode = #tpu.pipeline_mode<synchronous>, transform_indices = @transform_2, window_bounds = array<i64: 8, 1>}, {transform_indices = @transform_3, window_bounds = array<i64: 8, 128>}]} {
    %c0 = arith.constant 0 : index
    %c0_0 = arith.constant 0 : index
    %0 = vector.load %arg1[%c0, %c0_0] : memref<8x288xbf16, #tpu.memory_space<vmem>>, vector<8x288xbf16>
    %c0_1 = arith.constant 0 : index
    %c0_2 = arith.constant 0 : index
    %1 = vector.load %arg2[%c0_1, %c0_2] : memref<288x128xbf16, #tpu.memory_space<vmem>>, vector<288x128xbf16>
    %cst = arith.constant dense<0.000000e+00> : vector<8x128xf32>
    %2 = tpu.matmul %0, %1, %cst {dimension_numbers = #tpu.dot_dimension_numbers<[1], [0], [0], [1], [0, 0, 1, 1], [], []>} : vector<8x288xbf16>, vector<288x128xbf16>, vector<8x128xf32> -> vector<8x128xf32>
    %c0_3 = arith.constant 0 : index
    %c0_4 = arith.constant 0 : index
    %3 = vector.load %arg3[%c0_3, %c0_4] : memref<8x1xf32, #tpu.memory_space<vmem>>, vector<8x1xf32>
    %4 = vector.broadcast %3 : vector<8x1xf32> to vector<8x128xf32>
    %5 = arith.addf %2, %4 : vector<8x128xf32>
    %cst_5 = arith.constant 0.000000e+00 : f32
    %6 = vector.broadcast %cst_5 : f32 to vector<8x128xf32>
    %7 = arith.maximumf %5, %6 : vector<8x128xf32>
    %8 = arith.truncf %7 : vector<8x128xf32> to vector<8x128xbf16>
    %c0_6 = arith.constant 0 : index
    %c0_7 = arith.constant 0 : index
    %9 = vector.load %arg4[%c0_6, %c0_7] : memref<8x128xbf16, #tpu.memory_space<vmem>>, vector<8x128xbf16>
    tpu.vector_store %arg4[%c0_6, %c0_7], %8 {strides = array<i32>} : memref<8x128xbf16, #tpu.memory_space<vmem>>, vector<8x128xbf16>,
    return
  }
  func.func @transform_0(%arg0: i32) -> (i32, i32) {
    %c0_i32 = arith.constant 0 : i32
    %c0_i32_0 = arith.constant 0 : i32
    %c0_i32_1 = arith.constant 0 : i32
    return %c0_i32, %c0_i32_0 : i32, i32
  }
  func.func @transform_1(%arg0: i32) -> (i32, i32) {
    %c0_i32 = arith.constant 0 : i32
    %c0_i32_0 = arith.constant 0 : i32
    return %c0_i32, %arg0 : i32, i32
  }
  func.func @transform_2(%arg0: i32) -> (i32, i32) {
    %c0_i32 = arith.constant 0 : i32
    %c0_i32_0 = arith.constant 0 : i32
    %c0_i32_1 = arith.constant 0 : i32
    return %c0_i32, %c0_i32_0 : i32, i32
  }
  func.func @transform_3(%arg0: i32) -> (i32, i32) {
    %c0_i32 = arith.constant 0 : i32
    %c0_i32_0 = arith.constant 0 : i32
    return %c0_i32, %arg0 : i32, i32
  }
}

module attributes {stable_mosaic.version = 11 : i64} {
  func.func @_conv_mm_kernel(%arg0: i32, %arg1: memref<8x72xbf16, #tpu.memory_space<vmem>>, %arg2: memref<72x64xbf16, #tpu.memory_space<vmem>>, %arg3: memref<8x1xf32, #tpu.memory_space<vmem>>, %arg4: memref<8x64xbf16, #tpu.memory_space<vmem>>) attributes {dimension_semantics = [#tpu.dimension_semantics<parallel>], iteration_bounds = array<i64: 1>, scalar_prefetch = 0 : i64, scratch_operands = 0 : i64, tpu.core_type = #tpu.core_type<tc>, window_params = [{pipeline_mode = #tpu.pipeline_mode<synchronous>, transform_indices = @transform_0, window_bounds = array<i64: 8, 72>}, {transform_indices = @transform_1, window_bounds = array<i64: 72, 64>}, {pipeline_mode = #tpu.pipeline_mode<synchronous>, transform_indices = @transform_2, window_bounds = array<i64: 8, 1>}, {transform_indices = @transform_3, window_bounds = array<i64: 8, 64>}]} {
    %c0 = arith.constant 0 : index
    %c0_0 = arith.constant 0 : index
    %0 = vector.load %arg1[%c0, %c0_0] : memref<8x72xbf16, #tpu.memory_space<vmem>>, vector<8x72xbf16>
    %c0_1 = arith.constant 0 : index
    %c0_2 = arith.constant 0 : index
    %1 = vector.load %arg2[%c0_1, %c0_2] : memref<72x64xbf16, #tpu.memory_space<vmem>>, vector<72x64xbf16>
    %cst = arith.constant dense<0.000000e+00> : vector<8x64xf32>
    %2 = tpu.matmul %0, %1, %cst {dimension_numbers = #tpu.dot_dimension_numbers<[1], [0], [0], [1], [0, 0, 1, 1], [], []>} : vector<8x72xbf16>, vector<72x64xbf16>, vector<8x64xf32> -> vector<8x64xf32>
    %c0_3 = arith.constant 0 : index
    %c0_4 = arith.constant 0 : index
    %3 = vector.load %arg3[%c0_3, %c0_4] : memref<8x1xf32, #tpu.memory_space<vmem>>, vector<8x1xf32>
    %4 = vector.broadcast %3 : vector<8x1xf32> to vector<8x64xf32>
    %5 = arith.addf %2, %4 : vector<8x64xf32>
    %cst_5 = arith.constant 0.000000e+00 : f32
    %6 = vector.broadcast %cst_5 : f32 to vector<8x64xf32>
    %7 = arith.maximumf %5, %6 : vector<8x64xf32>
    %8 = arith.truncf %7 : vector<8x64xf32> to vector<8x64xbf16>
    %c0_6 = arith.constant 0 : index
    %c0_7 = arith.constant 0 : index
    %9 = vector.load %arg4[%c0_6, %c0_7] : memref<8x64xbf16, #tpu.memory_space<vmem>>, vector<8x64xbf16>
    tpu.vector_store %arg4[%c0_6, %c0_7], %8 {strides = array<i32>} : memref<8x64xbf16, #tpu.memory_space<vmem>>, vector<8x64xbf16>,
    return
  }
  func.func @transform_0(%arg0: i32) -> (i32, i32) {
    %c0_i32 = arith.constant 0 : i32
    %c0_i32_0 = arith.constant 0 : i32
    %c0_i32_1 = arith.constant 0 : i32
    return %c0_i32, %c0_i32_0 : i32, i32
  }
  func.func @transform_1(%arg0: i32) -> (i32, i32) {
    %c0_i32 = arith.constant 0 : i32
    %c0_i32_0 = arith.constant 0 : i32
    return %c0_i32, %arg0 : i32, i32
  }
  func.func @transform_2(%arg0: i32) -> (i32, i32) {
    %c0_i32 = arith.constant 0 : i32
    %c0_i32_0 = arith.constant 0 : i32
    %c0_i32_1 = arith.constant 0 : i32
    return %c0_i32, %c0_i32_0 : i32, i32
  }
  func.func @transform_3(%arg0: i32) -> (i32, i32) {
    %c0_i32 = arith.constant 0 : i32
    %c0_i32_0 = arith.constant 0 : i32
    return %c0_i32, %arg0 : i32, i32
  }
}

module attributes {stable_mosaic.version = 11 : i64} {
  func.func @_conv_mm_kernel(%arg0: i32, %arg1: memref<8x72xbf16, #tpu.memory_space<vmem>>, %arg2: memref<72x16xbf16, #tpu.memory_space<vmem>>, %arg3: memref<8x1xf32, #tpu.memory_space<vmem>>, %arg4: memref<8x16xbf16, #tpu.memory_space<vmem>>) attributes {dimension_semantics = [#tpu.dimension_semantics<parallel>], iteration_bounds = array<i64: 1>, scalar_prefetch = 0 : i64, scratch_operands = 0 : i64, tpu.core_type = #tpu.core_type<tc>, window_params = [{pipeline_mode = #tpu.pipeline_mode<synchronous>, transform_indices = @transform_0, window_bounds = array<i64: 8, 72>}, {transform_indices = @transform_1, window_bounds = array<i64: 72, 16>}, {pipeline_mode = #tpu.pipeline_mode<synchronous>, transform_indices = @transform_2, window_bounds = array<i64: 8, 1>}, {transform_indices = @transform_3, window_bounds = array<i64: 8, 16>}]} {
    %c0 = arith.constant 0 : index
    %c0_0 = arith.constant 0 : index
    %0 = vector.load %arg1[%c0, %c0_0] : memref<8x72xbf16, #tpu.memory_space<vmem>>, vector<8x72xbf16>
    %c0_1 = arith.constant 0 : index
    %c0_2 = arith.constant 0 : index
    %1 = vector.load %arg2[%c0_1, %c0_2] : memref<72x16xbf16, #tpu.memory_space<vmem>>, vector<72x16xbf16>
    %cst = arith.constant dense<0.000000e+00> : vector<8x16xf32>
    %2 = tpu.matmul %0, %1, %cst {dimension_numbers = #tpu.dot_dimension_numbers<[1], [0], [0], [1], [0, 0, 1, 1], [], []>} : vector<8x72xbf16>, vector<72x16xbf16>, vector<8x16xf32> -> vector<8x16xf32>
    %c0_3 = arith.constant 0 : index
    %c0_4 = arith.constant 0 : index
    %3 = vector.load %arg3[%c0_3, %c0_4] : memref<8x1xf32, #tpu.memory_space<vmem>>, vector<8x1xf32>
    %4 = vector.broadcast %3 : vector<8x1xf32> to vector<8x16xf32>
    %5 = arith.addf %2, %4 : vector<8x16xf32>
    %cst_5 = arith.constant 0.000000e+00 : f32
    %6 = vector.broadcast %cst_5 : f32 to vector<8x16xf32>
    %7 = arith.maximumf %5, %6 : vector<8x16xf32>
    %8 = arith.truncf %7 : vector<8x16xf32> to vector<8x16xbf16>
    %c0_6 = arith.constant 0 : index
    %c0_7 = arith.constant 0 : index
    %9 = vector.load %arg4[%c0_6, %c0_7] : memref<8x16xbf16, #tpu.memory_space<vmem>>, vector<8x16xbf16>
    tpu.vector_store %arg4[%c0_6, %c0_7], %8 {strides = array<i32>} : memref<8x16xbf16, #tpu.memory_space<vmem>>, vector<8x16xbf16>,
    return
  }
  func.func @transform_0(%arg0: i32) -> (i32, i32) {
    %c0_i32 = arith.constant 0 : i32
    %c0_i32_0 = arith.constant 0 : i32
    %c0_i32_1 = arith.constant 0 : i32
    return %c0_i32, %c0_i32_0 : i32, i32
  }
  func.func @transform_1(%arg0: i32) -> (i32, i32) {
    %c0_i32 = arith.constant 0 : i32
    %c0_i32_0 = arith.constant 0 : i32
    return %c0_i32, %arg0 : i32, i32
  }
  func.func @transform_2(%arg0: i32) -> (i32, i32) {
    %c0_i32 = arith.constant 0 : i32
    %c0_i32_0 = arith.constant 0 : i32
    %c0_i32_1 = arith.constant 0 : i32
    return %c0_i32, %c0_i32_0 : i32, i32
  }
  func.func @transform_3(%arg0: i32) -> (i32, i32) {
    %c0_i32 = arith.constant 0 : i32
    %c0_i32_0 = arith.constant 0 : i32
    return %c0_i32, %arg0 : i32, i32
  }
}

module attributes {stable_mosaic.version = 11 : i64} {
  func.func @_conv_mm_kernel(%arg0: i32, %arg1: memref<8x72xbf16, #tpu.memory_space<vmem>>, %arg2: memref<72x4xbf16, #tpu.memory_space<vmem>>, %arg3: memref<8x1xf32, #tpu.memory_space<vmem>>, %arg4: memref<8x4xbf16, #tpu.memory_space<vmem>>) attributes {dimension_semantics = [#tpu.dimension_semantics<parallel>], iteration_bounds = array<i64: 1>, scalar_prefetch = 0 : i64, scratch_operands = 0 : i64, tpu.core_type = #tpu.core_type<tc>, window_params = [{pipeline_mode = #tpu.pipeline_mode<synchronous>, transform_indices = @transform_0, window_bounds = array<i64: 8, 72>}, {transform_indices = @transform_1, window_bounds = array<i64: 72, 4>}, {pipeline_mode = #tpu.pipeline_mode<synchronous>, transform_indices = @transform_2, window_bounds = array<i64: 8, 1>}, {transform_indices = @transform_3, window_bounds = array<i64: 8, 4>}]} {
    %c0 = arith.constant 0 : index
    %c0_0 = arith.constant 0 : index
    %0 = vector.load %arg1[%c0, %c0_0] : memref<8x72xbf16, #tpu.memory_space<vmem>>, vector<8x72xbf16>
    %c0_1 = arith.constant 0 : index
    %c0_2 = arith.constant 0 : index
    %1 = vector.load %arg2[%c0_1, %c0_2] : memref<72x4xbf16, #tpu.memory_space<vmem>>, vector<72x4xbf16>
    %cst = arith.constant dense<0.000000e+00> : vector<8x4xf32>
    %2 = tpu.matmul %0, %1, %cst {dimension_numbers = #tpu.dot_dimension_numbers<[1], [0], [0], [1], [0, 0, 1, 1], [], []>} : vector<8x72xbf16>, vector<72x4xbf16>, vector<8x4xf32> -> vector<8x4xf32>
    %c0_3 = arith.constant 0 : index
    %c0_4 = arith.constant 0 : index
    %3 = vector.load %arg3[%c0_3, %c0_4] : memref<8x1xf32, #tpu.memory_space<vmem>>, vector<8x1xf32>
    %4 = vector.broadcast %3 : vector<8x1xf32> to vector<8x4xf32>
    %5 = arith.addf %2, %4 : vector<8x4xf32>
    %cst_5 = arith.constant 0.000000e+00 : f32
    %6 = vector.broadcast %cst_5 : f32 to vector<8x4xf32>
    %7 = arith.maximumf %5, %6 : vector<8x4xf32>
    %8 = arith.truncf %7 : vector<8x4xf32> to vector<8x4xbf16>
    %c0_6 = arith.constant 0 : index
    %c0_7 = arith.constant 0 : index
    %9 = vector.load %arg4[%c0_6, %c0_7] : memref<8x4xbf16, #tpu.memory_space<vmem>>, vector<8x4xbf16>
    tpu.vector_store %arg4[%c0_6, %c0_7], %8 {strides = array<i32>} : memref<8x4xbf16, #tpu.memory_space<vmem>>, vector<8x4xbf16>,
    return
  }
  func.func @transform_0(%arg0: i32) -> (i32, i32) {
    %c0_i32 = arith.constant 0 : i32
    %c0_i32_0 = arith.constant 0 : i32
    %c0_i32_1 = arith.constant 0 : i32
    return %c0_i32, %c0_i32_0 : i32, i32
  }
  func.func @transform_1(%arg0: i32) -> (i32, i32) {
    %c0_i32 = arith.constant 0 : i32
    %c0_i32_0 = arith.constant 0 : i32
    return %c0_i32, %arg0 : i32, i32
  }
  func.func @transform_2(%arg0: i32) -> (i32, i32) {
    %c0_i32 = arith.constant 0 : i32
    %c0_i32_0 = arith.constant 0 : i32
    %c0_i32_1 = arith.constant 0 : i32
    return %c0_i32, %c0_i32_0 : i32, i32
  }
  func.func @transform_3(%arg0: i32) -> (i32, i32) {
    %c0_i32 = arith.constant 0 : i32
    %c0_i32_0 = arith.constant 0 : i32
    return %c0_i32, %arg0 : i32, i32
  }
}

module attributes {stable_mosaic.version = 11 : i64} {
  func.func @_conv_mm_skip_kernel(%arg0: i32, %arg1: memref<8x72xbf16, #tpu.memory_space<vmem>>, %arg2: memref<72x16xbf16, #tpu.memory_space<vmem>>, %arg3: memref<8x1xf32, #tpu.memory_space<vmem>>, %arg4: memref<8x16xbf16, #tpu.memory_space<vmem>>, %arg5: memref<8x16xbf16, #tpu.memory_space<vmem>>) attributes {dimension_semantics = [#tpu.dimension_semantics<parallel>], iteration_bounds = array<i64: 1>, scalar_prefetch = 0 : i64, scratch_operands = 0 : i64, tpu.core_type = #tpu.core_type<tc>, window_params = [{pipeline_mode = #tpu.pipeline_mode<synchronous>, transform_indices = @transform_0, window_bounds = array<i64: 8, 72>}, {transform_indices = @transform_1, window_bounds = array<i64: 72, 16>}, {pipeline_mode = #tpu.pipeline_mode<synchronous>, transform_indices = @transform_2, window_bounds = array<i64: 8, 1>}, {transform_indices = @transform_3, window_bounds = array<i64: 8, 16>}, {transform_indices = @transform_4, window_bounds = array<i64: 8, 16>}]} {
    %c0 = arith.constant 0 : index
    %c0_0 = arith.constant 0 : index
    %0 = vector.load %arg1[%c0, %c0_0] : memref<8x72xbf16, #tpu.memory_space<vmem>>, vector<8x72xbf16>
    %c0_1 = arith.constant 0 : index
    %c0_2 = arith.constant 0 : index
    %1 = vector.load %arg2[%c0_1, %c0_2] : memref<72x16xbf16, #tpu.memory_space<vmem>>, vector<72x16xbf16>
    %cst = arith.constant dense<0.000000e+00> : vector<8x16xf32>
    %2 = tpu.matmul %0, %1, %cst {dimension_numbers = #tpu.dot_dimension_numbers<[1], [0], [0], [1], [0, 0, 1, 1], [], []>} : vector<8x72xbf16>, vector<72x16xbf16>, vector<8x16xf32> -> vector<8x16xf32>
    %c0_3 = arith.constant 0 : index
    %c0_4 = arith.constant 0 : index
    %3 = vector.load %arg3[%c0_3, %c0_4] : memref<8x1xf32, #tpu.memory_space<vmem>>, vector<8x1xf32>
    %4 = vector.broadcast %3 : vector<8x1xf32> to vector<8x16xf32>
    %5 = arith.addf %2, %4 : vector<8x16xf32>
    %cst_5 = arith.constant 0.000000e+00 : f32
    %6 = vector.broadcast %cst_5 : f32 to vector<8x16xf32>
    %7 = arith.maximumf %5, %6 : vector<8x16xf32>
    %c0_6 = arith.constant 0 : index
    %c0_7 = arith.constant 0 : index
    %8 = vector.load %arg4[%c0_6, %c0_7] : memref<8x16xbf16, #tpu.memory_space<vmem>>, vector<8x16xbf16>
    %9 = arith.extf %8 : vector<8x16xbf16> to vector<8x16xf32>
    %10 = arith.addf %7, %9 : vector<8x16xf32>
    %11 = arith.truncf %10 : vector<8x16xf32> to vector<8x16xbf16>
    %c0_8 = arith.constant 0 : index
    %c0_9 = arith.constant 0 : index
    %12 = vector.load %arg5[%c0_8, %c0_9] : memref<8x16xbf16, #tpu.memory_space<vmem>>, vector<8x16xbf16>
    tpu.vector_store %arg5[%c0_8, %c0_9], %11 {strides = array<i32>} : memref<8x16xbf16, #tpu.memory_space<vmem>>, vector<8x16xbf16>,
    return
  }
  func.func @transform_0(%arg0: i32) -> (i32, i32) {
    %c0_i32 = arith.constant 0 : i32
    %c0_i32_0 = arith.constant 0 : i32
    %c0_i32_1 = arith.constant 0 : i32
    return %c0_i32, %c0_i32_0 : i32, i32
  }
  func.func @transform_1(%arg0: i32) -> (i32, i32) {
    %c0_i32 = arith.constant 0 : i32
    %c0_i32_0 = arith.constant 0 : i32
    return %c0_i32, %arg0 : i32, i32
  }
  func.func @transform_2(%arg0: i32) -> (i32, i32) {
    %c0_i32 = arith.constant 0 : i32
    %c0_i32_0 = arith.constant 0 : i32
    %c0_i32_1 = arith.constant 0 : i32
    return %c0_i32, %c0_i32_0 : i32, i32
  }
  func.func @transform_3(%arg0: i32) -> (i32, i32) {
    %c0_i32 = arith.constant 0 : i32
    %c0_i32_0 = arith.constant 0 : i32
    return %c0_i32, %arg0 : i32, i32
  }
  func.func @transform_4(%arg0: i32) -> (i32, i32) {
    %c0_i32 = arith.constant 0 : i32
    %c0_i32_0 = arith.constant 0 : i32
    return %c0_i32, %arg0 : i32, i32
  }
}

module attributes {stable_mosaic.version = 11 : i64} {
  func.func @_conv_mm_skip_kernel(%arg0: i32, %arg1: memref<8x72xbf16, #tpu.memory_space<vmem>>, %arg2: memref<72x64xbf16, #tpu.memory_space<vmem>>, %arg3: memref<8x1xf32, #tpu.memory_space<vmem>>, %arg4: memref<8x64xbf16, #tpu.memory_space<vmem>>, %arg5: memref<8x64xbf16, #tpu.memory_space<vmem>>) attributes {dimension_semantics = [#tpu.dimension_semantics<parallel>], iteration_bounds = array<i64: 1>, scalar_prefetch = 0 : i64, scratch_operands = 0 : i64, tpu.core_type = #tpu.core_type<tc>, window_params = [{pipeline_mode = #tpu.pipeline_mode<synchronous>, transform_indices = @transform_0, window_bounds = array<i64: 8, 72>}, {transform_indices = @transform_1, window_bounds = array<i64: 72, 64>}, {pipeline_mode = #tpu.pipeline_mode<synchronous>, transform_indices = @transform_2, window_bounds = array<i64: 8, 1>}, {transform_indices = @transform_3, window_bounds = array<i64: 8, 64>}, {transform_indices = @transform_4, window_bounds = array<i64: 8, 64>}]} {
    %c0 = arith.constant 0 : index
    %c0_0 = arith.constant 0 : index
    %0 = vector.load %arg1[%c0, %c0_0] : memref<8x72xbf16, #tpu.memory_space<vmem>>, vector<8x72xbf16>
    %c0_1 = arith.constant 0 : index
    %c0_2 = arith.constant 0 : index
    %1 = vector.load %arg2[%c0_1, %c0_2] : memref<72x64xbf16, #tpu.memory_space<vmem>>, vector<72x64xbf16>
    %cst = arith.constant dense<0.000000e+00> : vector<8x64xf32>
    %2 = tpu.matmul %0, %1, %cst {dimension_numbers = #tpu.dot_dimension_numbers<[1], [0], [0], [1], [0, 0, 1, 1], [], []>} : vector<8x72xbf16>, vector<72x64xbf16>, vector<8x64xf32> -> vector<8x64xf32>
    %c0_3 = arith.constant 0 : index
    %c0_4 = arith.constant 0 : index
    %3 = vector.load %arg3[%c0_3, %c0_4] : memref<8x1xf32, #tpu.memory_space<vmem>>, vector<8x1xf32>
    %4 = vector.broadcast %3 : vector<8x1xf32> to vector<8x64xf32>
    %5 = arith.addf %2, %4 : vector<8x64xf32>
    %cst_5 = arith.constant 0.000000e+00 : f32
    %6 = vector.broadcast %cst_5 : f32 to vector<8x64xf32>
    %7 = arith.maximumf %5, %6 : vector<8x64xf32>
    %c0_6 = arith.constant 0 : index
    %c0_7 = arith.constant 0 : index
    %8 = vector.load %arg4[%c0_6, %c0_7] : memref<8x64xbf16, #tpu.memory_space<vmem>>, vector<8x64xbf16>
    %9 = arith.extf %8 : vector<8x64xbf16> to vector<8x64xf32>
    %10 = arith.addf %7, %9 : vector<8x64xf32>
    %11 = arith.truncf %10 : vector<8x64xf32> to vector<8x64xbf16>
    %c0_8 = arith.constant 0 : index
    %c0_9 = arith.constant 0 : index
    %12 = vector.load %arg5[%c0_8, %c0_9] : memref<8x64xbf16, #tpu.memory_space<vmem>>, vector<8x64xbf16>
    tpu.vector_store %arg5[%c0_8, %c0_9], %11 {strides = array<i32>} : memref<8x64xbf16, #tpu.memory_space<vmem>>, vector<8x64xbf16>,
    return
  }
  func.func @transform_0(%arg0: i32) -> (i32, i32) {
    %c0_i32 = arith.constant 0 : i32
    %c0_i32_0 = arith.constant 0 : i32
    %c0_i32_1 = arith.constant 0 : i32
    return %c0_i32, %c0_i32_0 : i32, i32
  }
  func.func @transform_1(%arg0: i32) -> (i32, i32) {
    %c0_i32 = arith.constant 0 : i32
    %c0_i32_0 = arith.constant 0 : i32
    return %c0_i32, %arg0 : i32, i32
  }
  func.func @transform_2(%arg0: i32) -> (i32, i32) {
    %c0_i32 = arith.constant 0 : i32
    %c0_i32_0 = arith.constant 0 : i32
    %c0_i32_1 = arith.constant 0 : i32
    return %c0_i32, %c0_i32_0 : i32, i32
  }
  func.func @transform_3(%arg0: i32) -> (i32, i32) {
    %c0_i32 = arith.constant 0 : i32
    %c0_i32_0 = arith.constant 0 : i32
    return %c0_i32, %arg0 : i32, i32
  }
  func.func @transform_4(%arg0: i32) -> (i32, i32) {
    %c0_i32 = arith.constant 0 : i32
    %c0_i32_0 = arith.constant 0 : i32
    return %c0_i32, %arg0 : i32, i32
  }
}

module attributes {stable_mosaic.version = 11 : i64} {
  func.func @_conv_mm_skip_kernel(%arg0: i32, %arg1: memref<8x72xbf16, #tpu.memory_space<vmem>>, %arg2: memref<72x128xbf16, #tpu.memory_space<vmem>>, %arg3: memref<8x1xf32, #tpu.memory_space<vmem>>, %arg4: memref<8x128xbf16, #tpu.memory_space<vmem>>, %arg5: memref<8x128xbf16, #tpu.memory_space<vmem>>) attributes {dimension_semantics = [#tpu.dimension_semantics<parallel>], iteration_bounds = array<i64: 2>, scalar_prefetch = 0 : i64, scratch_operands = 0 : i64, tpu.core_type = #tpu.core_type<tc>, window_params = [{pipeline_mode = #tpu.pipeline_mode<synchronous>, transform_indices = @transform_0, window_bounds = array<i64: 8, 72>}, {transform_indices = @transform_1, window_bounds = array<i64: 72, 128>}, {pipeline_mode = #tpu.pipeline_mode<synchronous>, transform_indices = @transform_2, window_bounds = array<i64: 8, 1>}, {transform_indices = @transform_3, window_bounds = array<i64: 8, 128>}, {transform_indices = @transform_4, window_bounds = array<i64: 8, 128>}]} {
    %c0 = arith.constant 0 : index
    %c0_0 = arith.constant 0 : index
    %0 = vector.load %arg1[%c0, %c0_0] : memref<8x72xbf16, #tpu.memory_space<vmem>>, vector<8x72xbf16>
    %c0_1 = arith.constant 0 : index
    %c0_2 = arith.constant 0 : index
    %1 = vector.load %arg2[%c0_1, %c0_2] : memref<72x128xbf16, #tpu.memory_space<vmem>>, vector<72x128xbf16>
    %cst = arith.constant dense<0.000000e+00> : vector<8x128xf32>
    %2 = tpu.matmul %0, %1, %cst {dimension_numbers = #tpu.dot_dimension_numbers<[1], [0], [0], [1], [0, 0, 1, 1], [], []>} : vector<8x72xbf16>, vector<72x128xbf16>, vector<8x128xf32> -> vector<8x128xf32>
    %c0_3 = arith.constant 0 : index
    %c0_4 = arith.constant 0 : index
    %3 = vector.load %arg3[%c0_3, %c0_4] : memref<8x1xf32, #tpu.memory_space<vmem>>, vector<8x1xf32>
    %4 = vector.broadcast %3 : vector<8x1xf32> to vector<8x128xf32>
    %5 = arith.addf %2, %4 : vector<8x128xf32>
    %cst_5 = arith.constant 0.000000e+00 : f32
    %6 = vector.broadcast %cst_5 : f32 to vector<8x128xf32>
    %7 = arith.maximumf %5, %6 : vector<8x128xf32>
    %c0_6 = arith.constant 0 : index
    %c0_7 = arith.constant 0 : index
    %8 = vector.load %arg4[%c0_6, %c0_7] : memref<8x128xbf16, #tpu.memory_space<vmem>>, vector<8x128xbf16>
    %9 = arith.extf %8 : vector<8x128xbf16> to vector<8x128xf32>
    %10 = arith.addf %7, %9 : vector<8x128xf32>
    %11 = arith.truncf %10 : vector<8x128xf32> to vector<8x128xbf16>
    %c0_8 = arith.constant 0 : index
    %c0_9 = arith.constant 0 : index
    %12 = vector.load %arg5[%c0_8, %c0_9] : memref<8x128xbf16, #tpu.memory_space<vmem>>, vector<8x128xbf16>
    tpu.vector_store %arg5[%c0_8, %c0_9], %11 {strides = array<i32>} : memref<8x128xbf16, #tpu.memory_space<vmem>>, vector<8x128xbf16>,
    return
  }
  func.func @transform_0(%arg0: i32) -> (i32, i32) {
    %c0_i32 = arith.constant 0 : i32
    %c0_i32_0 = arith.constant 0 : i32
    %c0_i32_1 = arith.constant 0 : i32
    return %c0_i32, %c0_i32_0 : i32, i32
  }
  func.func @transform_1(%arg0: i32) -> (i32, i32) {
    %c0_i32 = arith.constant 0 : i32
    %c0_i32_0 = arith.constant 0 : i32
    return %c0_i32, %arg0 : i32, i32
  }
  func.func @transform_2(%arg0: i32) -> (i32, i32) {
    %c0_i32 = arith.constant 0 : i32
    %c0_i32_0 = arith.constant 0 : i32
    %c0_i32_1 = arith.constant 0 : i32
    return %c0_i32, %c0_i32_0 : i32, i32
  }
  func.func @transform_3(%arg0: i32) -> (i32, i32) {
    %c0_i32 = arith.constant 0 : i32
    %c0_i32_0 = arith.constant 0 : i32
    return %c0_i32, %arg0 : i32, i32
  }
  func.func @transform_4(%arg0: i32) -> (i32, i32) {
    %c0_i32 = arith.constant 0 : i32
    %c0_i32_0 = arith.constant 0 : i32
    return %c0_i32, %arg0 : i32, i32
  }
}

module attributes {stable_mosaic.version = 11 : i64} {
  func.func @_conv_mm_kernel(%arg0: i32, %arg1: memref<32x72xbf16, #tpu.memory_space<vmem>>, %arg2: memref<72x256xbf16, #tpu.memory_space<vmem>>, %arg3: memref<32x1xf32, #tpu.memory_space<vmem>>, %arg4: memref<32x256xbf16, #tpu.memory_space<vmem>>) attributes {dimension_semantics = [#tpu.dimension_semantics<parallel>], iteration_bounds = array<i64: 2>, scalar_prefetch = 0 : i64, scratch_operands = 0 : i64, tpu.core_type = #tpu.core_type<tc>, window_params = [{pipeline_mode = #tpu.pipeline_mode<synchronous>, transform_indices = @transform_0, window_bounds = array<i64: 32, 72>}, {transform_indices = @transform_1, window_bounds = array<i64: 72, 256>}, {pipeline_mode = #tpu.pipeline_mode<synchronous>, transform_indices = @transform_2, window_bounds = array<i64: 32, 1>}, {transform_indices = @transform_3, window_bounds = array<i64: 32, 256>}]} {
    %c0 = arith.constant 0 : index
    %c0_0 = arith.constant 0 : index
    %0 = vector.load %arg1[%c0, %c0_0] : memref<32x72xbf16, #tpu.memory_space<vmem>>, vector<32x72xbf16>
    %c0_1 = arith.constant 0 : index
    %c0_2 = arith.constant 0 : index
    %1 = vector.load %arg2[%c0_1, %c0_2] : memref<72x256xbf16, #tpu.memory_space<vmem>>, vector<72x256xbf16>
    %cst = arith.constant dense<0.000000e+00> : vector<32x256xf32>
    %2 = tpu.matmul %0, %1, %cst {dimension_numbers = #tpu.dot_dimension_numbers<[1], [0], [0], [1], [0, 0, 1, 1], [], []>} : vector<32x72xbf16>, vector<72x256xbf16>, vector<32x256xf32> -> vector<32x256xf32>
    %c0_3 = arith.constant 0 : index
    %c0_4 = arith.constant 0 : index
    %3 = vector.load %arg3[%c0_3, %c0_4] : memref<32x1xf32, #tpu.memory_space<vmem>>, vector<32x1xf32>
    %4 = vector.broadcast %3 : vector<32x1xf32> to vector<32x256xf32>
    %5 = arith.addf %2, %4 : vector<32x256xf32>
    %cst_5 = arith.constant 0.000000e+00 : f32
    %6 = vector.broadcast %cst_5 : f32 to vector<32x256xf32>
    %7 = arith.maximumf %5, %6 : vector<32x256xf32>
    %8 = arith.truncf %7 : vector<32x256xf32> to vector<32x256xbf16>
    %c0_6 = arith.constant 0 : index
    %c0_7 = arith.constant 0 : index
    %9 = vector.load %arg4[%c0_6, %c0_7] : memref<32x256xbf16, #tpu.memory_space<vmem>>, vector<32x256xbf16>
    tpu.vector_store %arg4[%c0_6, %c0_7], %8 {strides = array<i32>} : memref<32x256xbf16, #tpu.memory_space<vmem>>, vector<32x256xbf16>,
    return
  }
  func.func @transform_0(%arg0: i32) -> (i32, i32) {
    %c0_i32 = arith.constant 0 : i32
    %c0_i32_0 = arith.constant 0 : i32
    %c0_i32_1 = arith.constant 0 : i32
    return %c0_i32, %c0_i32_0 : i32, i32
  }
  func.func @transform_1(%arg0: i32) -> (i32, i32) {
    %c0_i32 = arith.constant 0 : i32
    %c0_i32_0 = arith.constant 0 : i32
    return %c0_i32, %arg0 : i32, i32
  }
  func.func @transform_2(%arg0: i32) -> (i32, i32) {
    %c0_i32 = arith.constant 0 : i32
    %c0_i32_0 = arith.constant 0 : i32
    %c0_i32_1 = arith.constant 0 : i32
    return %c0_i32, %c0_i32_0 : i32, i32
  }
  func.func @transform_3(%arg0: i32) -> (i32, i32) {
    %c0_i32 = arith.constant 0 : i32
    %c0_i32_0 = arith.constant 0 : i32
    return %c0_i32, %arg0 : i32, i32
  }
}

module attributes {stable_mosaic.version = 11 : i64} {
  func.func @_attn_kernel(%arg0: i32, %arg1: memref<1x8x32xbf16, #tpu.memory_space<vmem>>, %arg2: memref<1x32x256xbf16, #tpu.memory_space<vmem>>, %arg3: memref<1x256x32xbf16, #tpu.memory_space<vmem>>, %arg4: memref<1x8x32xf32, #tpu.memory_space<vmem>>, %arg5: memref<1x8x256xf32, #tpu.memory_space<vmem>>) attributes {dimension_semantics = [#tpu.dimension_semantics<parallel>], iteration_bounds = array<i64: 2>, scalar_prefetch = 0 : i64, scratch_operands = 0 : i64, tpu.core_type = #tpu.core_type<tc>, window_params = [{transform_indices = @transform_0, window_bounds = array<i64: 1, 8, 32>}, {transform_indices = @transform_1, window_bounds = array<i64: 1, 32, 256>}, {transform_indices = @transform_2, window_bounds = array<i64: 1, 256, 32>}, {transform_indices = @transform_3, window_bounds = array<i64: 1, 8, 32>}, {transform_indices = @transform_4, window_bounds = array<i64: 1, 8, 256>}]} {
    %c0 = arith.constant 0 : index
    %c0_0 = arith.constant 0 : index
    %c0_1 = arith.constant 0 : index
    %0 = vector.load %arg1[%c0, %c0_0, %c0_1] : memref<1x8x32xbf16, #tpu.memory_space<vmem>>, vector<1x8x32xbf16>
    %c0_2 = arith.constant 0 : index
    %c0_3 = arith.constant 0 : index
    %c0_4 = arith.constant 0 : index
    %1 = vector.load %arg2[%c0_2, %c0_3, %c0_4] : memref<1x32x256xbf16, #tpu.memory_space<vmem>>, vector<1x32x256xbf16>
    "tpu.trace_start"() <{level = 10 : i32, message = "bte,beh->bth"}> : () -> ()
    %cst = arith.constant dense<0.000000e+00> : vector<1x8x256xf32>
    %2 = tpu.matmul %0, %1, %cst {dimension_numbers = #tpu.dot_dimension_numbers<[2], [1], [1], [2], [0, 0, 0, 1, 1, 2], [0], [0]>} : vector<1x8x32xbf16>, vector<1x32x256xbf16>, vector<1x8x256xf32> -> vector<1x8x256xf32>
    "tpu.trace_stop"() : () -> ()
    %cst_5 = arith.constant 0.176776692 : f32
    %3 = vector.broadcast %cst_5 : f32 to vector<1x8x256xf32>
    %4 = arith.mulf %2, %3 : vector<1x8x256xf32>
    %cst_6 = arith.constant dense<0xFF800000> : vector<1x8xf32>
    %5 = vector.multi_reduction <maximumf>, %4, %cst_6 [2] : vector<1x8x256xf32> to vector<1x8xf32>
    %6 = vector.shape_cast %5 : vector<1x8xf32> to vector<1x8x1xf32>
    %7 = vector.broadcast %6 : vector<1x8x1xf32> to vector<1x8x256xf32>
    %8 = arith.subf %4, %7 : vector<1x8x256xf32>
    %9 = math.exp %8 : vector<1x8x256xf32>
    %cst_7 = arith.constant dense<0.000000e+00> : vector<1x8xf32>
    %10 = vector.multi_reduction <add>, %9, %cst_7 [2] : vector<1x8x256xf32> to vector<1x8xf32>
    %11 = vector.shape_cast %10 : vector<1x8xf32> to vector<1x8x1xf32>
    %12 = tpu.reciprocal %11 {approx = true} : vector<1x8x1xf32> -> vector<1x8x1xf32>
    %13 = vector.broadcast %12 : vector<1x8x1xf32> to vector<1x8x256xf32>
    %14 = arith.mulf %9, %13 : vector<1x8x256xf32>
    %c0_8 = arith.constant 0 : index
    %c0_9 = arith.constant 0 : index
    %c0_10 = arith.constant 0 : index
    %15 = vector.load %arg5[%c0_8, %c0_9, %c0_10] : memref<1x8x256xf32, #tpu.memory_space<vmem>>, vector<1x8x256xf32>
    tpu.vector_store %arg5[%c0_8, %c0_9, %c0_10], %14 {strides = array<i32>} : memref<1x8x256xf32, #tpu.memory_space<vmem>>, vector<1x8x256xf32>,
    %16 = arith.truncf %14 : vector<1x8x256xf32> to vector<1x8x256xbf16>
    %c0_11 = arith.constant 0 : index
    %c0_12 = arith.constant 0 : index
    %c0_13 = arith.constant 0 : index
    %17 = vector.load %arg3[%c0_11, %c0_12, %c0_13] : memref<1x256x32xbf16, #tpu.memory_space<vmem>>, vector<1x256x32xbf16>
    "tpu.trace_start"() <{level = 10 : i32, message = "bth,bhe->bte"}> : () -> ()
    %cst_14 = arith.constant dense<0.000000e+00> : vector<1x8x32xf32>
    %18 = tpu.matmul %16, %17, %cst_14 {dimension_numbers = #tpu.dot_dimension_numbers<[2], [1], [1], [2], [0, 0, 0, 1, 1, 2], [0], [0]>} : vector<1x8x256xbf16>, vector<1x256x32xbf16>, vector<1x8x32xf32> -> vector<1x8x32xf32>
    "tpu.trace_stop"() : () -> ()
    %c0_15 = arith.constant 0 : index
    %c0_16 = arith.constant 0 : index
    %c0_17 = arith.constant 0 : index
    %19 = vector.load %arg4[%c0_15, %c0_16, %c0_17] : memref<1x8x32xf32, #tpu.memory_space<vmem>>, vector<1x8x32xf32>
    tpu.vector_store %arg4[%c0_15, %c0_16, %c0_17], %18 {strides = array<i32>} : memref<1x8x32xf32, #tpu.memory_space<vmem>>, vector<1x8x32xf32>,
    return
  }
  func.func @transform_0(%arg0: i32) -> (i32, i32, i32) {
    %c0_i32 = arith.constant 0 : i32
    %c0_i32_0 = arith.constant 0 : i32
    %c0_i32_1 = arith.constant 0 : i32
    return %arg0, %c0_i32, %c0_i32_0 : i32, i32, i32
  }
  func.func @transform_1(%arg0: i32) -> (i32, i32, i32) {
    %c0_i32 = arith.constant 0 : i32
    %c0_i32_0 = arith.constant 0 : i32
    %c0_i32_1 = arith.constant 0 : i32
    return %arg0, %c0_i32, %c0_i32_0 : i32, i32, i32
  }
  func.func @transform_2(%arg0: i32) -> (i32, i32, i32) {
    %c0_i32 = arith.constant 0 : i32
    %c0_i32_0 = arith.constant 0 : i32
    %c0_i32_1 = arith.constant 0 : i32
    return %arg0, %c0_i32, %c0_i32_0 : i32, i32, i32
  }
  func.func @transform_3(%arg0: i32) -> (i32, i32, i32) {
    %c0_i32 = arith.constant 0 : i32
    %c0_i32_0 = arith.constant 0 : i32
    %c0_i32_1 = arith.constant 0 : i32
    return %arg0, %c0_i32, %c0_i32_0 : i32, i32, i32
  }
  func.func @transform_4(%arg0: i32) -> (i32, i32, i32) {
    %c0_i32 = arith.constant 0 : i32
    %c0_i32_0 = arith.constant 0 : i32
    %c0_i32_1 = arith.constant 0 : i32
    return %arg0, %c0_i32, %c0_i32_0 : i32, i32, i32
  }
}

</mosaic_0001>

<llo_original>
// kernel: position_attention.9
$region0: #{position_attention.9}
  #allocation0 [shape = 'u32[]', space=smem, size = 0x4, offset = 0x4, fixed_abs, tag = 'smem constant byte address 0x4 - core index']
  #allocation1 [shape = 'u32[144,128]{1,0:T(1,128)}', space=vmem, size = 0x12000, scoped, tag = 'internal scratch']
  %s0 = inlined_call_operand.vmem [shape: bf16[8,288], index: 0, kind: input, shape index: {}]
  %s1 = inlined_call_operand.vmem [shape: bf16[288,256], index: 1, kind: input, shape index: {}]
  %s2 = inlined_call_operand.vmem [shape: f32[8,1], index: 2, kind: input, shape index: {}]
  %s3 = inlined_call_operand.vmem [shape: bf16[8,256], index: 3, kind: output, shape index: {}]
  %s4 = sld [smem:[#allocation0]]
  $region86: #{position_attention.9} parent=0
    _
  %s6 = ssub.s32 1, %s4
  %s7 = scalar_select 0, %s6, %s4
  $region1: #{position_attention.9} parent=0
    #allocation2 [shape = 'u8[147456]{0}', space=vmem, size = 0x24000, scoped, tag = 'input window, operand 1']
    loop: start=0, step=1, limit=4
    $region2: #{position_attention.9} parent=1 // loop_pre_header
      _
    $region3: #{position_attention.9} parent=1 // loop_header
      %s9 = sphi 0, %s13
      %p10 = scmp.ge.s32.totalorder %s9, 4
      %s17 = sphi 0, %s17
      %s19 = sphi 0, %s17
      %s20 = sphi 0, %s19
      %s34 = sphi 0, %s20
      %s40 = sphi 0, %s42
      %s43 = sphi 0, %s40
      %s44 = sphi 0, %s43
      %s60 = sphi 0, %s44
      %s64 = sphi 0, %s64
      %s66 = sphi 0, %s64
      %s67 = sphi 0, %s66
      %s81 = sphi 0, %s67
      %s87 = sphi 0, %s89
      %s90 = sphi 0, %s87
      %s91 = sphi 0, %s90
      %s107 = sphi 0, %s91
    $region4: #{position_attention.9} parent=1 // loop_header_branch
      %12 = sbr.rel (%p10) target = $region8
    $region5: #{position_attention.9} parent=1 // loop_body
      %s14 = ssub.s32 %s9, 1
      %s15 = ssub.s32 %s9, 2
      %s16 = sadd.s32 %s9, 1
      %s18 = sadd.s32 %s17, 1
      %p21 = scmp.eq.s32.totalorder %s9, 1
      %p22 = scmp.ne.s32.totalorder %s17, %s19
      %p23 = scmp.eq.s32.totalorder %s9, 0
      %p24 = por %p22, %p23
      %p25 = scmp.ne.s32.totalorder %s17, %s19
      %p26 = scmp.eq.s32.totalorder %s14, 1
      %p27 = por %p25, %p26
      %p28 = scmp.ne.s32.totalorder %s19, %s20
      %p29 = scmp.eq.s32.totalorder %s14, 0
      %p30 = por %p28, %p29
      %p31 = scmp.ne.s32.totalorder %s19, %s20
      %p32 = scmp.eq.s32.totalorder %s15, 1
      %p33 = por %p31, %p32
      %p35 = scmp.ne.s32.totalorder %s20, %s34
      %p36 = scmp.eq.s32.totalorder %s15, 0
      %p37 = por %p35, %p36
      %s38 = ssub.s32 %s9, %s16
      %p39 = scmp.eq.s32.totalorder %s38, 0
      %s41 = sadd.s32 %s40, 1
      %s42 = scalar_select %p39, %s40, %s41
      %p45 = pneg %p39
      %p46 = scmp.eq.s32.totalorder %s9, 1
      %p47 = por %p45, %p46
      %p48 = scmp.ne.s32.totalorder %s40, %s43
      %p49 = scmp.eq.s32.totalorder %s9, 0
      %p50 = por %p48, %p49
      %p51 = scmp.ne.s32.totalorder %s40, %s43
      %p52 = scmp.eq.s32.totalorder %s14, 1
      %p53 = por %p51, %p52
      %p54 = scmp.ne.s32.totalorder %s43, %s44
      %p55 = scmp.eq.s32.totalorder %s14, 0
      %p56 = por %p54, %p55
      %p57 = scmp.ne.s32.totalorder %s43, %s44
      %p58 = scmp.eq.s32.totalorder %s15, 1
      %p59 = por %p57, %p58
      %p61 = scmp.ne.s32.totalorder %s44, %s60
      %p62 = scmp.eq.s32.totalorder %s15, 0
      %p63 = por %p61, %p62
      %s65 = sadd.s32 %s64, 1
      %p68 = scmp.eq.s32.totalorder %s9, 1
      %p69 = scmp.ne.s32.totalorder %s64, %s66
      %p70 = scmp.eq.s32.totalorder %s9, 0
      %p71 = por %p69, %p70
      %p72 = scmp.ne.s32.totalorder %s64, %s66
      %p73 = scmp.eq.s32.totalorder %s14, 1
      %p74 = por %p72, %p73
      %p75 = scmp.ne.s32.totalorder %s66, %s67
      %p76 = scmp.eq.s32.totalorder %s14, 0
      %p77 = por %p75, %p76
      %p78 = scmp.ne.s32.totalorder %s66, %s67
      %p79 = scmp.eq.s32.totalorder %s15, 1
      %p80 = por %p78, %p79
      %p82 = scmp.ne.s32.totalorder %s67, %s81
      %p83 = scmp.eq.s32.totalorder %s15, 0
      %p84 = por %p82, %p83
      %s85 = ssub.s32 %s9, %s16
      %p86 = scmp.eq.s32.totalorder %s85, 0
      %s88 = sadd.s32 %s87, 1
      %s89 = scalar_select %p86, %s87, %s88
      %p92 = pneg %p86
      %p93 = scmp.eq.s32.totalorder %s9, 1
      %p94 = por %p92, %p93
      %p95 = scmp.ne.s32.totalorder %s87, %s90
      %p96 = scmp.eq.s32.totalorder %s9, 0
      %p97 = por %p95, %p96
      %p98 = scmp.ne.s32.totalorder %s87, %s90
      %p99 = scmp.eq.s32.totalorder %s14, 1
      %p100 = por %p98, %p99
      %p101 = scmp.ne.s32.totalorder %s90, %s91
      %p102 = scmp.eq.s32.totalorder %s14, 0
      %p103 = por %p101, %p102
      %p104 = scmp.ne.s32.totalorder %s90, %s91
      %p105 = scmp.eq.s32.totalorder %s15, 1
      %p106 = por %p104, %p105
      %p108 = scmp.ne.s32.totalorder %s91, %s107
      %p109 = scmp.eq.s32.totalorder %s15, 0
      %p110 = por %p108, %p109
      %p111 = scmp.le.s32.totalorder 1, %s9
      %p112 = scmp.lt.s32.totalorder %s9, 3
      %p113 = pnand %p111, %p112
      %p114 = pneg %p113
      // Predicated region
      $region9: #{position_attention.9} parent=5 // pred_check
        _
      $region10: #{position_attention.9} parent=5 // pred_check_branch
        %116 = sbr.rel (%p113) target = $region12
      $region11: #{position_attention.9} parent=5 // pred_region
        %s117 = ssub.s32 %s9, 1
        // Predicated region
        $region13: #{position_attention.9} parent=11 // pred_check
          %p118 = pneg %p30
        $region14: #{position_attention.9} parent=11 // pred_check_branch
          %120 = sbr.rel (%p118) target = $region16
        $region15: #{position_attention.9} parent=11 // pred_region
          _
        $region16: #{position_attention.9} parent=11 // pred_fallthru
          _
        // Predicated region
        $region17: #{position_attention.9} parent=11 // pred_check
          %p121 = pneg %p77
        $region18: #{position_attention.9} parent=11 // pred_check_branch
          %123 = sbr.rel (%p121) target = $region20
        $region19: #{position_attention.9} parent=11 // pred_region
          _
        $region20: #{position_attention.9} parent=11 // pred_fallthru
          _
      $region12: #{position_attention.9} parent=5 // pred_fallthru
        _
      %p124 = scmp.lt.s32.totalorder %s9, 2
      // Predicated region
      $region21: #{position_attention.9} parent=5 // pred_check
        %p125 = pneg %p124
      $region22: #{position_attention.9} parent=5 // pred_check_branch
        %127 = sbr.rel (%p125) target = $region24
      $region23: #{position_attention.9} parent=5 // pred_region
        // Predicated region
        $region25: #{position_attention.9} parent=23 // pred_check
          %p128 = pneg %p50
        $region26: #{position_attention.9} parent=23 // pred_check_branch
          %130 = sbr.rel (%p128) target = $region28
        $region27: #{position_attention.9} parent=23 // pred_region
          %s131 = sand.u32 %s40, 1
          %s132 = sand.u32 %s40, 1
          %s133 = smul.addr %s132, 144
          %s134 = scalar_lea.vmem [#allocation2], %s133
          %s135 = smul.addr %s9, 4
          %s136 = scalar_lea.vmem %s1, %s135
          // Predicated region
          $region29: #{position_attention.9} parent=27 // pred_check
            _
          $region30: #{position_attention.9} parent=27 // pred_check_branch
            %138 = sbr.rel (0) target = $region32
          $region31: #{position_attention.9} parent=27 // pred_region
            // Predicated region
            $region33: #{position_attention.9} parent=31 // pred_check
              _
            $region34: #{position_attention.9} parent=31 // pred_check_branch
              %140 = sbr.rel target = $region36
            $region35: #{position_attention.9} parent=31 // pred_region
              // Predicated region
              $region48: #{position_attention.9} parent=35 // pred_check
                _
              $region49: #{position_attention.9} parent=35 // pred_check_branch
                %226 = sbr.rel (0) target = $region51
              $region50: #{position_attention.9} parent=35 // pred_region
                loop: start=0, step=1, limit=1
                $region52: #{position_attention.9} parent=50 // loop_pre_header
                  _
                $region53: #{position_attention.9} parent=50 // loop_header
                  %s228 = sphi 0, %s232
                  %p229 = scmp.ge.s32.totalorder %s228, 1
                  %s233 = sphi %s136, %s136
                  %s234 = sphi %s134, %s134
                $region54: #{position_attention.9} parent=50 // loop_header_branch
                  %231 = sbr.rel (%p229) target = $region58
                $region55: #{position_attention.9} parent=50 // loop_body
                  _
                $region56: #{position_attention.9} parent=50 // loop_footer
                  %s232 = sadd.s32 1, %s228
                $region57: #{position_attention.9} parent=50 // loop_footer_branch
                  %227 = sbr.rel target = $region53
                $region58: #{position_attention.9} parent=50 // loop_exit
                  _
                %s236 = ssub.s32 16, 1
                loop: start=0, step=1, limit=1
                $region59: #{position_attention.9} parent=50 // loop_pre_header
                  _
                $region60: #{position_attention.9} parent=50 // loop_header
                  %s238 = sphi 0, %s242
                  %p239 = scmp.ge.s32.totalorder %s238, 1
                  %s243 = sphi %s136, %s136
                  %s244 = sphi %s134, %s134
                $region61: #{position_attention.9} parent=50 // loop_header_branch
                  %241 = sbr.rel (%p239) target = $region65
                $region62: #{position_attention.9} parent=50 // loop_body
                  %v245 = vld [vmem:[%s243] sm:%s236]
                  %246 = vst [vmem:[%s244] sm:%s236] %v245
                  %v247 = vld [vmem:[%s243 + $0x8] sm:%s236]
                  %248 = vst [vmem:[%s244 + $0x4] sm:%s236] %v247
                  %v249 = vld [vmem:[%s243 + $0x10] sm:%s236]
                  %250 = vst [vmem:[%s244 + $0x8] sm:%s236] %v249
                  %v251 = vld [vmem:[%s243 + $0x18] sm:%s236]
                  %252 = vst [vmem:[%s244 + $0xc] sm:%s236] %v251
                  %v253 = vld [vmem:[%s243 + $0x20] sm:%s236]
                  %254 = vst [vmem:[%s244 + $0x10] sm:%s236] %v253
                  %v255 = vld [vmem:[%s243 + $0x28] sm:%s236]
                  %256 = vst [vmem:[%s244 + $0x14] sm:%s236] %v255
                  %v257 = vld [vmem:[%s243 + $0x30] sm:%s236]
                  %258 = vst [vmem:[%s244 + $0x18] sm:%s236] %v257
                  %v259 = vld [vmem:[%s243 + $0x38] sm:%s236]
                  %260 = vst [vmem:[%s244 + $0x1c] sm:%s236] %v259
                  %v261 = vld [vmem:[%s243 + $0x40] sm:%s236]
                  %262 = vst [vmem:[%s244 + $0x20] sm:%s236] %v261
                  %v263 = vld [vmem:[%s243 + $0x48] sm:%s236]
                  %264 = vst [vmem:[%s244 + $0x24] sm:%s236] %v263
                  %v265 = vld [vmem:[%s243 + $0x50] sm:%s236]
                  %266 = vst [vmem:[%s244 + $0x28] sm:%s236] %v265
                  %v267 = vld [vmem:[%s243 + $0x58] sm:%s236]
                  %268 = vst [vmem:[%s244 + $0x2c] sm:%s236] %v267
                  %v269 = vld [vmem:[%s243 + $0x60] sm:%s236]
                  %270 = vst [vmem:[%s244 + $0x30] sm:%s236] %v269
                  %v271 = vld [vmem:[%s243 + $0x68] sm:%s236]
                  %272 = vst [vmem:[%s244 + $0x34] sm:%s236] %v271
                  %v273 = vld [vmem:[%s243 + $0x70] sm:%s236]
                  %274 = vst [vmem:[%s244 + $0x38] sm:%s236] %v273
                  %v275 = vld [vmem:[%s243 + $0x78] sm:%s236]
                  %276 = vst [vmem:[%s244 + $0x3c] sm:%s236] %v275
                  %v277 = vld [vmem:[%s243 + $0x80] sm:%s236]
                  %278 = vst [vmem:[%s244 + $0x40] sm:%s236] %v277
                  %v279 = vld [vmem:[%s243 + $0x88] sm:%s236]
                  %280 = vst [vmem:[%s244 + $0x44] sm:%s236] %v279
                  %v281 = vld [vmem:[%s243 + $0x90] sm:%s236]
                  %282 = vst [vmem:[%s244 + $0x48] sm:%s236] %v281
                  %v283 = vld [vmem:[%s243 + $0x98] sm:%s236]
                  %284 = vst [vmem:[%s244 + $0x4c] sm:%s236] %v283
                  %v285 = vld [vmem:[%s243 + $0xa0] sm:%s236]
                  %286 = vst [vmem:[%s244 + $0x50] sm:%s236] %v285
                  %v287 = vld [vmem:[%s243 + $0xa8] sm:%s236]
                  %288 = vst [vmem:[%s244 + $0x54] sm:%s236] %v287
                  %v289 = vld [vmem:[%s243 + $0xb0] sm:%s236]
                  %290 = vst [vmem:[%s244 + $0x58] sm:%s236] %v289
                  %v291 = vld [vmem:[%s243 + $0xb8] sm:%s236]
                  %292 = vst [vmem:[%s244 + $0x5c] sm:%s236] %v291
                  %v293 = vld [vmem:[%s243 + $0xc0] sm:%s236]
                  %294 = vst [vmem:[%s244 + $0x60] sm:%s236] %v293
                  %v295 = vld [vmem:[%s243 + $0xc8] sm:%s236]
                  %296 = vst [vmem:[%s244 + $0x64] sm:%s236] %v295
                  %v297 = vld [vmem:[%s243 + $0xd0] sm:%s236]
                  %298 = vst [vmem:[%s244 + $0x68] sm:%s236] %v297
                  %v299 = vld [vmem:[%s243 + $0xd8] sm:%s236]
                  %300 = vst [vmem:[%s244 + $0x6c] sm:%s236] %v299
                  %v301 = vld [vmem:[%s243 + $0xe0] sm:%s236]
                  %302 = vst [vmem:[%s244 + $0x70] sm:%s236] %v301
                  %v303 = vld [vmem:[%s243 + $0xe8] sm:%s236]
                  %304 = vst [vmem:[%s244 + $0x74] sm:%s236] %v303
                  %v305 = vld [vmem:[%s243 + $0xf0] sm:%s236]
                  %306 = vst [vmem:[%s244 + $0x78] sm:%s236] %v305
                  %v307 = vld [vmem:[%s243 + $0xf8] sm:%s236]
                  %308 = vst [vmem:[%s244 + $0x7c] sm:%s236] %v307
                  %v309 = vld [vmem:[%s243 + $0x100] sm:%s236]
                  %310 = vst [vmem:[%s244 + $0x80] sm:%s236] %v309
                  %v311 = vld [vmem:[%s243 + $0x108] sm:%s236]
                  %312 = vst [vmem:[%s244 + $0x84] sm:%s236] %v311
                  %v313 = vld [vmem:[%s243 + $0x110] sm:%s236]
                  %314 = vst [vmem:[%s244 + $0x88] sm:%s236] %v313
                  %v315 = vld [vmem:[%s243 + $0x118] sm:%s236]
                  %316 = vst [vmem:[%s244 + $0x8c] sm:%s236] %v315
                $region63: #{position_attention.9} parent=50 // loop_footer
                  %s242 = sadd.s32 1, %s238
                $region64: #{position_attention.9} parent=50 // loop_footer_branch
                  %237 = sbr.rel target = $region60
                $region65: #{position_attention.9} parent=50 // loop_exit
                  _
              $region51: #{position_attention.9} parent=35 // pred_fallthru
                _
            $region36: #{position_attention.9} parent=31 // pred_fallthru
              _
            // Predicated region
            $region37: #{position_attention.9} parent=31 // pred_check
              _
            $region38: #{position_attention.9} parent=31 // pred_check_branch
              %142 = sbr.rel (0) target = $region40
            $region39: #{position_attention.9} parent=31 // pred_region
              %s144 = ssub.s32 16, 1
              loop: start=0, step=1, limit=1
              $region41: #{position_attention.9} parent=39 // loop_pre_header
                _
              $region42: #{position_attention.9} parent=39 // loop_header
                %s146 = sphi 0, %s150
                %p147 = scmp.ge.s32.totalorder %s146, 1
                %s151 = sphi %s136, %s136
                %s152 = sphi %s134, %s134
              $region43: #{position_attention.9} parent=39 // loop_header_branch
                %149 = sbr.rel (%p147) target = $region47
              $region44: #{position_attention.9} parent=39 // loop_body
                %v153 = vld [vmem:[%s151] sm:%s144]
                %154 = vst [vmem:[%s152] sm:%s144] %v153
                %v155 = vld [vmem:[%s151 + $0x8] sm:%s144]
                %156 = vst [vmem:[%s152 + $0x4] sm:%s144] %v155
                %v157 = vld [vmem:[%s151 + $0x10] sm:%s144]
                %158 = vst [vmem:[%s152 + $0x8] sm:%s144] %v157
                %v159 = vld [vmem:[%s151 + $0x18] sm:%s144]
                %160 = vst [vmem:[%s152 + $0xc] sm:%s144] %v159
                %v161 = vld [vmem:[%s151 + $0x20] sm:%s144]
                %162 = vst [vmem:[%s152 + $0x10] sm:%s144] %v161
                %v163 = vld [vmem:[%s151 + $0x28] sm:%s144]
                %164 = vst [vmem:[%s152 + $0x14] sm:%s144] %v163
                %v165 = vld [vmem:[%s151 + $0x30] sm:%s144]
                %166 = vst [vmem:[%s152 + $0x18] sm:%s144] %v165
                %v167 = vld [vmem:[%s151 + $0x38] sm:%s144]
                %168 = vst [vmem:[%s152 + $0x1c] sm:%s144] %v167
                %v169 = vld [vmem:[%s151 + $0x40] sm:%s144]
                %170 = vst [vmem:[%s152 + $0x20] sm:%s144] %v169
                %v171 = vld [vmem:[%s151 + $0x48] sm:%s144]
                %172 = vst [vmem:[%s152 + $0x24] sm:%s144] %v171
                %v173 = vld [vmem:[%s151 + $0x50] sm:%s144]
                %174 = vst [vmem:[%s152 + $0x28] sm:%s144] %v173
                %v175 = vld [vmem:[%s151 + $0x58] sm:%s144]
                %176 = vst [vmem:[%s152 + $0x2c] sm:%s144] %v175
                %v177 = vld [vmem:[%s151 + $0x60] sm:%s144]
                %178 = vst [vmem:[%s152 + $0x30] sm:%s144] %v177
                %v179 = vld [vmem:[%s151 + $0x68] sm:%s144]
                %180 = vst [vmem:[%s152 + $0x34] sm:%s144] %v179
                %v181 = vld [vmem:[%s151 + $0x70] sm:%s144]
                %182 = vst [vmem:[%s152 + $0x38] sm:%s144] %v181
                %v183 = vld [vmem:[%s151 + $0x78] sm:%s144]
                %184 = vst [vmem:[%s152 + $0x3c] sm:%s144] %v183
                %v185 = vld [vmem:[%s151 + $0x80] sm:%s144]
                %186 = vst [vmem:[%s152 + $0x40] sm:%s144] %v185
                %v187 = vld [vmem:[%s151 + $0x88] sm:%s144]
                %188 = vst [vmem:[%s152 + $0x44] sm:%s144] %v187
                %v189 = vld [vmem:[%s151 + $0x90] sm:%s144]
                %190 = vst [vmem:[%s152 + $0x48] sm:%s144] %v189
                %v191 = vld [vmem:[%s151 + $0x98] sm:%s144]
                %192 = vst [vmem:[%s152 + $0x4c] sm:%s144] %v191
                %v193 = vld [vmem:[%s151 + $0xa0] sm:%s144]
                %194 = vst [vmem:[%s152 + $0x50] sm:%s144] %v193
                %v195 = vld [vmem:[%s151 + $0xa8] sm:%s144]
                %196 = vst [vmem:[%s152 + $0x54] sm:%s144] %v195
                %v197 = vld [vmem:[%s151 + $0xb0] sm:%s144]
                %198 = vst [vmem:[%s152 + $0x58] sm:%s144] %v197
                %v199 = vld [vmem:[%s151 + $0xb8] sm:%s144]
                %200 = vst [vmem:[%s152 + $0x5c] sm:%s144] %v199
                %v201 = vld [vmem:[%s151 + $0xc0] sm:%s144]
                %202 = vst [vmem:[%s152 + $0x60] sm:%s144] %v201
                %v203 = vld [vmem:[%s151 + $0xc8] sm:%s144]
                %204 = vst [vmem:[%s152 + $0x64] sm:%s144] %v203
                %v205 = vld [vmem:[%s151 + $0xd0] sm:%s144]
                %206 = vst [vmem:[%s152 + $0x68] sm:%s144] %v205
                %v207 = vld [vmem:[%s151 + $0xd8] sm:%s144]
                %208 = vst [vmem:[%s152 + $0x6c] sm:%s144] %v207
                %v209 = vld [vmem:[%s151 + $0xe0] sm:%s144]
                %210 = vst [vmem:[%s152 + $0x70] sm:%s144] %v209
                %v211 = vld [vmem:[%s151 + $0xe8] sm:%s144]
                %212 = vst [vmem:[%s152 + $0x74] sm:%s144] %v211
                %v213 = vld [vmem:[%s151 + $0xf0] sm:%s144]
                %214 = vst [vmem:[%s152 + $0x78] sm:%s144] %v213
                %v215 = vld [vmem:[%s151 + $0xf8] sm:%s144]
                %216 = vst [vmem:[%s152 + $0x7c] sm:%s144] %v215
                %v217 = vld [vmem:[%s151 + $0x100] sm:%s144]
                %218 = vst [vmem:[%s152 + $0x80] sm:%s144] %v217
                %v219 = vld [vmem:[%s151 + $0x108] sm:%s144]
                %220 = vst [vmem:[%s152 + $0x84] sm:%s144] %v219
                %v221 = vld [vmem:[%s151 + $0x110] sm:%s144]
                %222 = vst [vmem:[%s152 + $0x88] sm:%s144] %v221
                %v223 = vld [vmem:[%s151 + $0x118] sm:%s144]
                %224 = vst [vmem:[%s152 + $0x8c] sm:%s144] %v223
              $region45: #{position_attention.9} parent=39 // loop_footer
                %s150 = sadd.s32 1, %s146
              $region46: #{position_attention.9} parent=39 // loop_footer_branch
                %145 = sbr.rel target = $region42
              $region47: #{position_attention.9} parent=39 // loop_exit
                _
            $region40: #{position_attention.9} parent=31 // pred_fallthru
              _
          $region32: #{position_attention.9} parent=27 // pred_fallthru
            _
          %317 = vnop
        $region28: #{position_attention.9} parent=23 // pred_fallthru
          _
      $region24: #{position_attention.9} parent=5 // pred_fallthru
        _
      %p318 = scmp.le.s32.totalorder 1, %s9
      %p319 = scmp.lt.s32.totalorder %s9, 3
      %p320 = pnand %p318, %p319
      %p321 = pneg %p320
      // Predicated region
      $region66: #{position_attention.9} parent=5 // pred_check
        _
      $region67: #{position_attention.9} parent=5 // pred_check_branch
        %323 = sbr.rel (%p320) target = $region69
      $region68: #{position_attention.9} parent=5 // pred_region
        %s324 = ssub.s32 %s9, 1
        %s325 = sand.u32 %s43, 1
        %s326 = sand.u32 %s43, 1
        %s327 = smul.addr %s326, 144
        %s328 = scalar_lea.vmem [#allocation2], %s327
        // Predicated region
        $region70: #{position_attention.9} parent=68 // pred_check
          %p329 = pneg %p56
        $region71: #{position_attention.9} parent=68 // pred_check_branch
          %331 = sbr.rel (%p329) target = $region73
        $region72: #{position_attention.9} parent=68 // pred_region
          _
        $region73: #{position_attention.9} parent=68 // pred_fallthru
          _
        %p332 = pneg %p30
        %p333 = pneg %p27
        %s334 = sand.u32 %s43, 1
        %s335 = sand.u32 %s43, 1
        %s336 = smul.addr %s335, 144
        %s337 = scalar_lea.vmem [#allocation2], %s336
        %p338 = pneg %p56
        %p339 = pneg %p53
        %p340 = pneg %p77
        %p341 = pneg %p74
        %p342 = pneg %p103
        %p343 = pneg %p100
        %p344 = scmp.lt.s32.totalorder %s14, 1
        %s345 = scalar_select %p344, %s14, 1
        %s346 = smul.addr %s345, 4
        %s347 = scalar_lea.vmem %s3, %s346
        %p348 = scmp.lt.s32.totalorder %s14, 1
        %s349 = scalar_select %p348, %s14, 1
        %s350 = smul.addr %s349, 4
        %s351 = scalar_lea.vmem %s3, %s350
        %v353 = vld [vmem:[%s0] sm:$0xff]
        %v354 = vld [vmem:[%s0 + $0x8] sm:$0xf]
        %v355 = vld [vmem:[%s328] sm:$0xf]
        %v356 = vld [vmem:[%s328 + $0x4] sm:$0xf]
        %v357 = vld [vmem:[%s328 + $0x8] sm:$0xf]
        %v358 = vld [vmem:[%s328 + $0xc] sm:$0xf]
        %v359 = vld [vmem:[%s328 + $0x10] sm:$0xf]
        %v360 = vld [vmem:[%s328 + $0x14] sm:$0xf]
        %v361 = vld [vmem:[%s328 + $0x18] sm:$0xf]
        %v362 = vld [vmem:[%s328 + $0x1c] sm:$0xf]
        %v363 = vld [vmem:[%s328 + $0x20] sm:$0xf]
        %v364 = vld [vmem:[%s328 + $0x24] sm:$0xf]
        %v365 = vld [vmem:[%s328 + $0x28] sm:$0xf]
        %v366 = vld [vmem:[%s328 + $0x2c] sm:$0xf]
        %v367 = vld [vmem:[%s328 + $0x30] sm:$0xf]
        %v368 = vld [vmem:[%s328 + $0x34] sm:$0xf]
        %v369 = vld [vmem:[%s328 + $0x38] sm:$0xf]
        %v370 = vld [vmem:[%s328 + $0x3c] sm:$0xf]
        %v371 = vld [vmem:[%s328 + $0x40] sm:$0xf]
        %v372 = vld [vmem:[%s328 + $0x44] sm:$0xf]
        %v373 = vld [vmem:[%s328 + $0x48] sm:$0xf]
        %v374 = vld [vmem:[%s328 + $0x4c] sm:$0xf]
        %v375 = vld [vmem:[%s328 + $0x50] sm:$0xf]
        %v376 = vld [vmem:[%s328 + $0x54] sm:$0xf]
        %v377 = vld [vmem:[%s328 + $0x58] sm:$0xf]
        %v378 = vld [vmem:[%s328 + $0x5c] sm:$0xf]
        %v379 = vld [vmem:[%s328 + $0x60] sm:$0xf]
        %v380 = vld [vmem:[%s328 + $0x64] sm:$0xf]
        %v381 = vld [vmem:[%s328 + $0x68] sm:$0xf]
        %v382 = vld [vmem:[%s328 + $0x6c] sm:$0xf]
        %v383 = vld [vmem:[%s328 + $0x70] sm:$0xf]
        %v384 = vld [vmem:[%s328 + $0x74] sm:$0xf]
        %v385 = vld [vmem:[%s328 + $0x78] sm:$0xf]
        %v386 = vld [vmem:[%s328 + $0x7c] sm:$0xf]
        %v387 = vld [vmem:[%s328 + $0x80] sm:$0xf]
        %v388 = vld [vmem:[%s328 + $0x84] sm:$0xf]
        %v389 = vld [vmem:[%s328 + $0x88] sm:$0xf]
        %v390 = vld [vmem:[%s328 + $0x8c] sm:$0xf]
        %v391 = vld [vmem:[%s2] sm:$0xff]
        %393 = vset.pattern.permute.xlu0 0
        %394 = vperm.xlu0 %393, %v391
        %v395 = vpop.permute.xlu0 %394
        %v399 = vunpack.c.l.b16 %v353
        %v400 = vunpack.c.h.b16 %v353
        %v401 = vunpack.c.l.b16 %v354
        %v402 = vpack.c.b16 %v399, %v399
        %v403 = vpack.c.b16 %v400, %v400
        %v404 = vpack.c.b16 %v401, %v401
        %v443 = vunpack.c.l.b16 %v355
        %v444 = vunpack.c.l.b16 %v356
        %v445 = vunpack.c.l.b16 %v357
        %v446 = vunpack.c.l.b16 %v358
        %v447 = vunpack.c.l.b16 %v359
        %v448 = vunpack.c.l.b16 %v360
        %v449 = vunpack.c.l.b16 %v361
        %v450 = vunpack.c.l.b16 %v362
        %v451 = vunpack.c.l.b16 %v363
        %v452 = vunpack.c.l.b16 %v364
        %v453 = vunpack.c.l.b16 %v365
        %v454 = vunpack.c.l.b16 %v366
        %v455 = vunpack.c.l.b16 %v367
        %v456 = vunpack.c.l.b16 %v368
        %v457 = vunpack.c.l.b16 %v369
        %v458 = vunpack.c.l.b16 %v370
        %v459 = vunpack.c.l.b16 %v371
        %v460 = vunpack.c.l.b16 %v372
        %v461 = vunpack.c.l.b16 %v373
        %v462 = vunpack.c.l.b16 %v374
        %v463 = vunpack.c.l.b16 %v375
        %v464 = vunpack.c.l.b16 %v376
        %v465 = vunpack.c.l.b16 %v377
        %v466 = vunpack.c.l.b16 %v378
        %v467 = vunpack.c.l.b16 %v379
        %v468 = vunpack.c.l.b16 %v380
        %v469 = vunpack.c.l.b16 %v381
        %v470 = vunpack.c.l.b16 %v382
        %v471 = vunpack.c.l.b16 %v383
        %v472 = vunpack.c.l.b16 %v384
        %v473 = vunpack.c.l.b16 %v385
        %v474 = vunpack.c.l.b16 %v386
        %v475 = vunpack.c.l.b16 %v387
        %v476 = vunpack.c.l.b16 %v388
        %v477 = vunpack.c.l.b16 %v389
        %v478 = vunpack.c.l.b16 %v390
        %v479 = vpack.c.b16 %v444, %v443
        %v480 = vpack.c.b16 %v446, %v445
        %v481 = vpack.c.b16 %v448, %v447
        %v482 = vpack.c.b16 %v450, %v449
        %v483 = vpack.c.b16 %v452, %v451
        %v484 = vpack.c.b16 %v454, %v453
        %v485 = vpack.c.b16 %v456, %v455
        %v486 = vpack.c.b16 %v458, %v457
        %v487 = vpack.c.b16 %v460, %v459
        %v488 = vpack.c.b16 %v462, %v461
        %v489 = vpack.c.b16 %v464, %v463
        %v490 = vpack.c.b16 %v466, %v465
        %v491 = vpack.c.b16 %v468, %v467
        %v492 = vpack.c.b16 %v470, %v469
        %v493 = vpack.c.b16 %v472, %v471
        %v494 = vpack.c.b16 %v474, %v473
        %v495 = vpack.c.b16 %v476, %v475
        %v496 = vpack.c.b16 %v478, %v477
        %vm515 = vcmask 261120
        %v517 = vsel %vm515, %v404, 0
        %519 = vmatprep.subr.bf16.mxu0 0
        %520 = vmatpush1.bf16.msra.mxu0 %v486
        %521 = vmatprep.subr.bf16.mxu0 0
        %522 = vmatpush1.bf16.msra.mxu0 %v485
        %523 = vmatprep.subr.bf16.mxu0 0
        %524 = vmatpush1.bf16.msra.mxu0 %v484
        %525 = vmatprep.subr.bf16.mxu0 0
        %526 = vmatpush1.bf16.msra.mxu0 %v483
        %527 = vmatprep.subr.bf16.mxu0 0
        %528 = vmatpush1.bf16.msra.mxu0 %v482
        %529 = vmatprep.subr.bf16.mxu0 0
        %530 = vmatpush1.bf16.msra.mxu0 %v481
        %531 = vmatprep.subr.bf16.mxu0 0
        %532 = vmatpush1.bf16.msra.mxu0 %v480
        %533 = vmatprep.subr.bf16.mxu0 0
        %534 = vmatpush1.bf16.msra.mxu0 %v479
        %535 = vmatprep.subr.bf16.mxu0 0
        %536 = vmatpush2.bf16.msra.mxu0 %v494
        %537 = vmatprep.subr.bf16.mxu0 0
        %538 = vmatpush2.bf16.msra.mxu0 %v493
        %539 = vmatprep.subr.bf16.mxu0 0
        %540 = vmatpush2.bf16.msra.mxu0 %v492
        %541 = vmatprep.subr.bf16.mxu0 0
        %542 = vmatpush2.bf16.msra.mxu0 %v491
        %543 = vmatprep.subr.bf16.mxu0 0
        %544 = vmatpush2.bf16.msra.mxu0 %v490
        %545 = vmatprep.subr.bf16.mxu0 0
        %546 = vmatpush2.bf16.msra.mxu0 %v489
        %547 = vmatprep.subr.bf16.mxu0 0
        %548 = vmatpush2.bf16.msra.mxu0 %v488
        %549 = vmatprep.subr.bf16.mxu0 0
        %550 = vmatpush2.bf16.msra.mxu0 %v487
        %551 = vmatprep.mubr.bf16.mxu0 %v403
        %552 = vmatmul.mubr.bf16.gmra.mxu0 %v402
        %v553 = vpop.f32.mrf.mxu0
        %v554 = vadd.f32 %v395, %v553
        %v555 = vpop.f32.mrf.mxu0
        %v556 = vpop.f32.mrf.mxu0
        %v557 = vpop.f32.mrf.mxu0
        %558 = vdwg.mxu0
        %559 = vmatprep.subr.bf16.mxu0 0
        %560 = vmatpush1.bf16.msra.mxu0 0
        %561 = vmatprep.subr.bf16.mxu0 0
        %562 = vmatpush1.bf16.msra.mxu0 0
        %563 = vmatprep.subr.bf16.mxu0 0
        %564 = vmatpush1.bf16.msra.mxu0 0
        %565 = vmatprep.subr.bf16.mxu0 0
        %566 = vmatpush1.bf16.msra.mxu0 0
        %567 = vmatprep.subr.bf16.mxu0 0
        %568 = vmatpush1.bf16.msra.mxu0 0
        %569 = vmatprep.subr.bf16.mxu0 0
        %570 = vmatpush1.bf16.msra.mxu0 0
        %571 = vmatprep.subr.bf16.mxu0 0
        %572 = vmatpush1.bf16.msra.mxu0 %v496
        %573 = vmatprep.subr.bf16.mxu0 0
        %574 = vmatpush1.bf16.msra.mxu0 %v495
        %575 = vmatprep.subr.bf16.mxu0 0
        %576 = vmatpush2.bf16.msra.mxu0 0
        %577 = vmatprep.subr.bf16.mxu0 0
        %578 = vmatpush2.bf16.msra.mxu0 0
        %579 = vmatprep.subr.bf16.mxu0 0
        %580 = vmatpush2.bf16.msra.mxu0 0
        %581 = vmatprep.subr.bf16.mxu0 0
        %582 = vmatpush2.bf16.msra.mxu0 0
        %583 = vmatprep.subr.bf16.mxu0 0
        %584 = vmatpush2.bf16.msra.mxu0 0
        %585 = vmatprep.subr.bf16.mxu0 0
        %586 = vmatpush2.bf16.msra.mxu0 0
        %587 = vmatprep.subr.bf16.mxu0 0
        %588 = vmatpush2.bf16.msra.mxu0 0
        %589 = vmatprep.subr.bf16.mxu0 0
        %590 = vmatpush2.bf16.msra.mxu0 0
        %591 = vmatprep.mubr.bf16.mxu0 0
        %592 = vmatmul.mubr.bf16.gmra.mxu0 %v517
        %v593 = vpop.f32.mrf.mxu0
        %v594 = vadd.f32 %v554, %v593
        %v595 = vpop.f32.mrf.mxu0
        %v596 = vpop.f32.mrf.mxu0
        %v597 = vpop.f32.mrf.mxu0
        %598 = vdwg.mxu0
        %v599 = vmax.f32 %v594, 0.0
        %v600 = vpack.c.bf16 %v599, %v599
        %601 = vst [vmem:[%s351] sm:$0xf] %v600
        %p602 = scmp.lt.s32.totalorder %s14, 1
        %s603 = scalar_select %p602, %s14, 1
        %s604 = smul.addr %s603, 4
        %s605 = scalar_lea.vmem %s3, %s604
        // Predicated region
        $region74: #{position_attention.9} parent=68 // pred_check
          %p606 = pneg %p100
        $region75: #{position_attention.9} parent=68 // pred_check_branch
          %608 = sbr.rel (%p606) target = $region77
        $region76: #{position_attention.9} parent=68 // pred_region
          _
        $region77: #{position_attention.9} parent=68 // pred_fallthru
          _
      $region69: #{position_attention.9} parent=5 // pred_fallthru
        _
      %p609 = scmp.le.s32.totalorder 2, %s9
      // Predicated region
      $region78: #{position_attention.9} parent=5 // pred_check
        %p610 = pneg %p609
      $region79: #{position_attention.9} parent=5 // pred_check_branch
        %612 = sbr.rel (%p610) target = $region81
      $region80: #{position_attention.9} parent=5 // pred_region
        %s613 = ssub.s32 %s9, 2
        // Predicated region
        $region82: #{position_attention.9} parent=80 // pred_check
          %p614 = pneg %p106
        $region83: #{position_attention.9} parent=80 // pred_check_branch
          %616 = sbr.rel (%p614) target = $region85
        $region84: #{position_attention.9} parent=80 // pred_region
          %p617 = scmp.lt.s32.totalorder %s15, 1
          %s618 = scalar_select %p617, %s15, 1
          %s619 = smul.addr %s618, 4
          %s620 = scalar_lea.vmem %s3, %s619
        $region85: #{position_attention.9} parent=80 // pred_fallthru
          _
      $region81: #{position_attention.9} parent=5 // pred_fallthru
        _
    $region6: #{position_attention.9} parent=1 // loop_footer
      %s13 = sadd.s32 1, %s9
    $region7: #{position_attention.9} parent=1 // loop_footer_branch
      %8 = sbr.rel target = $region3
    $region8: #{position_attention.9} parent=1 // loop_exit
      _

// kernel: position_attention.10
$region0: #{position_attention.10}
  #allocation0 [shape = 'u32[]', space=smem, size = 0x4, offset = 0x4, fixed_abs, tag = 'smem constant byte address 0x4 - core index']
  #allocation1 [shape = 'u32[144,128]{1,0:T(1,128)}', space=vmem, size = 0x12000, scoped, tag = 'internal scratch']
  %s0 = inlined_call_operand.vmem [shape: bf16[8,72], index: 0, kind: input, shape index: {}]
  %s1 = inlined_call_operand.vmem [shape: bf16[72,64], index: 1, kind: input, shape index: {}]
  %s2 = inlined_call_operand.vmem [shape: f32[8,1], index: 2, kind: input, shape index: {}]
  %s3 = inlined_call_operand.vmem [shape: bf16[8,64], index: 3, kind: output, shape index: {}]
  %s4 = sld [smem:[#allocation0]]
  $region22: #{position_attention.10} parent=0
    _
  %s6 = ssub.s32 1, %s4
  %s7 = scalar_select 0, %s6, %s4
  // Predicated region
  $region2: #{position_attention.10} parent=0 // pred_check
    _
  $region3: #{position_attention.10} parent=0 // pred_check_branch
    %9 = sbr.rel (0) target = $region5
  $region4: #{position_attention.10} parent=0 // pred_region
    _
  $region5: #{position_attention.10} parent=0 // pred_fallthru
    _
  // Predicated region
  $region6: #{position_attention.10} parent=0 // pred_check
    _
  $region7: #{position_attention.10} parent=0 // pred_check_branch
    %11 = sbr.rel (0) target = $region9
  $region8: #{position_attention.10} parent=0 // pred_region
    _
  $region9: #{position_attention.10} parent=0 // pred_fallthru
    _
  // Predicated region
  $region10: #{position_attention.10} parent=0 // pred_check
    _
  $region11: #{position_attention.10} parent=0 // pred_check_branch
    %13 = sbr.rel (0) target = $region13
  $region12: #{position_attention.10} parent=0 // pred_region
    _
  $region13: #{position_attention.10} parent=0 // pred_fallthru
    _
  %v15 = vld [vmem:[%s0] sm:$0xf]
  %v16 = vld [vmem:[%s1] sm:$0xf]
  %v17 = vld [vmem:[%s1 + $0x4] sm:$0xf]
  %v18 = vld [vmem:[%s1 + $0x8] sm:$0xf]
  %v19 = vld [vmem:[%s1 + $0xc] sm:$0xf]
  %v20 = vld [vmem:[%s1 + $0x10] sm:$0xf]
  %v21 = vld [vmem:[%s1 + $0x14] sm:$0xf]
  %v22 = vld [vmem:[%s1 + $0x18] sm:$0xf]
  %v23 = vld [vmem:[%s1 + $0x1c] sm:$0xf]
  %v24 = vld [vmem:[%s1 + $0x20] sm:$0xf]
  %v25 = vld [vmem:[%s2] sm:$0xff]
  %27 = vset.pattern.permute.xlu0 0
  %28 = vperm.xlu0 %27, %v25
  %v29 = vpop.permute.xlu0 %28
  %v40 = vunpack.c.l.b16 %v16
  %v41 = vunpack.c.l.b16 %v17
  %v42 = vunpack.c.l.b16 %v18
  %v43 = vunpack.c.l.b16 %v19
  %v44 = vunpack.c.l.b16 %v20
  %v45 = vunpack.c.l.b16 %v21
  %v46 = vunpack.c.l.b16 %v22
  %v47 = vunpack.c.l.b16 %v23
  %v48 = vunpack.c.l.b16 %v24
  %v49 = vpack.c.b16 %v41, %v40
  %v50 = vpack.c.b16 %v43, %v42
  %v51 = vpack.c.b16 %v45, %v44
  %v52 = vpack.c.b16 %v47, %v46
  %v53 = vpack.c.b16 %v48, %v48
  %vm58 = vcmask 588800
  %v60 = vsel %vm58, %v15, 0
  %vm62 = vcmask 1043456
  %v64 = vsel %vm62, %v53, 0
  %66 = vmatprep.subr.bf16.mxu0 0
  %67 = vmatpush1.bf16.msra.mxu0 0
  %68 = vmatprep.subr.bf16.mxu0 0
  %69 = vmatpush1.bf16.msra.mxu0 0
  %70 = vmatprep.subr.bf16.mxu0 0
  %71 = vmatpush1.bf16.msra.mxu0 0
  %72 = vmatprep.subr.bf16.mxu0 0
  %73 = vmatpush1.bf16.msra.mxu0 %v64
  %74 = vmatprep.subr.bf16.mxu0 0
  %75 = vmatpush1.bf16.msra.mxu0 %v52
  %76 = vmatprep.subr.bf16.mxu0 0
  %77 = vmatpush1.bf16.msra.mxu0 %v51
  %78 = vmatprep.subr.bf16.mxu0 0
  %79 = vmatpush1.bf16.msra.mxu0 %v50
  %80 = vmatprep.subr.bf16.mxu0 0
  %81 = vmatpush1.bf16.msra.mxu0 %v49
  %82 = vmatprep.subr.bf16.mxu0 0
  %83 = vmatpush2.bf16.msra.mxu0 0
  %84 = vmatprep.subr.bf16.mxu0 0
  %85 = vmatpush2.bf16.msra.mxu0 0
  %86 = vmatprep.subr.bf16.mxu0 0
  %87 = vmatpush2.bf16.msra.mxu0 0
  %88 = vmatprep.subr.bf16.mxu0 0
  %89 = vmatpush2.bf16.msra.mxu0 0
  %90 = vmatprep.subr.bf16.mxu0 0
  %91 = vmatpush2.bf16.msra.mxu0 0
  %92 = vmatprep.subr.bf16.mxu0 0
  %93 = vmatpush2.bf16.msra.mxu0 0
  %94 = vmatprep.subr.bf16.mxu0 0
  %95 = vmatpush2.bf16.msra.mxu0 0
  %96 = vmatprep.subr.bf16.mxu0 0
  %97 = vmatpush2.bf16.msra.mxu0 0
  %98 = vmatprep.mubr.bf16.mxu0 0
  %99 = vmatmul.mubr.bf16.gmra.mxu0 %v60
  %v100 = vpop.f32.mrf.mxu0
  %v101 = vadd.f32 %v29, %v100
  %v102 = vpop.f32.mrf.mxu0
  %v103 = vpop.f32.mrf.mxu0
  %v104 = vpop.f32.mrf.mxu0
  %105 = vdwg.mxu0
  %v106 = vmax.f32 %v101, 0.0
  %v107 = vpack.c.bf16 %v106, %v106
  %vm108 = vcmask 519168
  %109 = vst.msk [vmem:[%s3] sm:$0xf] %vm108, %v107
  // Predicated region
  $region14: #{position_attention.10} parent=0 // pred_check
    _
  $region15: #{position_attention.10} parent=0 // pred_check_branch
    %111 = sbr.rel (0) target = $region17
  $region16: #{position_attention.10} parent=0 // pred_region
    _
  $region17: #{position_attention.10} parent=0 // pred_fallthru
    _
  // Predicated region
  $region18: #{position_attention.10} parent=0 // pred_check
    _
  $region19: #{position_attention.10} parent=0 // pred_check_branch
    %113 = sbr.rel (0) target = $region21
  $region20: #{position_attention.10} parent=0 // pred_region
    _
  $region21: #{position_attention.10} parent=0 // pred_fallthru
    _

// kernel: position_attention.11
$region0: #{position_attention.11}
  #allocation0 [shape = 'u32[]', space=smem, size = 0x4, offset = 0x4, fixed_abs, tag = 'smem constant byte address 0x4 - core index']
  #allocation1 [shape = 'u32[144,128]{1,0:T(1,128)}', space=vmem, size = 0x12000, scoped, tag = 'internal scratch']
  %s0 = inlined_call_operand.vmem [shape: bf16[8,72], index: 0, kind: input, shape index: {}]
  %s1 = inlined_call_operand.vmem [shape: bf16[72,16], index: 1, kind: input, shape index: {}]
  %s2 = inlined_call_operand.vmem [shape: f32[8,1], index: 2, kind: input, shape index: {}]
  %s3 = inlined_call_operand.vmem [shape: bf16[8,16], index: 3, kind: output, shape index: {}]
  %s4 = sld [smem:[#allocation0]]
  $region22: #{position_attention.11} parent=0
    _
  %s6 = ssub.s32 1, %s4
  %s7 = scalar_select 0, %s6, %s4
  // Predicated region
  $region2: #{position_attention.11} parent=0 // pred_check
    _
  $region3: #{position_attention.11} parent=0 // pred_check_branch
    %9 = sbr.rel (0) target = $region5
  $region4: #{position_attention.11} parent=0 // pred_region
    _
  $region5: #{position_attention.11} parent=0 // pred_fallthru
    _
  // Predicated region
  $region6: #{position_attention.11} parent=0 // pred_check
    _
  $region7: #{position_attention.11} parent=0 // pred_check_branch
    %11 = sbr.rel (0) target = $region9
  $region8: #{position_attention.11} parent=0 // pred_region
    _
  $region9: #{position_attention.11} parent=0 // pred_fallthru
    _
  // Predicated region
  $region10: #{position_attention.11} parent=0 // pred_check
    _
  $region11: #{position_attention.11} parent=0 // pred_check_branch
    %13 = sbr.rel (0) target = $region13
  $region12: #{position_attention.11} parent=0 // pred_region
    _
  $region13: #{position_attention.11} parent=0 // pred_fallthru
    _
  %v15 = vld [vmem:[%s0] sm:$0xf]
  %v16 = vld [vmem:[%s1] sm:$0xf]
  %v17 = vld [vmem:[%s1 + $0x4] sm:$0xf]
  %v18 = vld [vmem:[%s1 + $0x8] sm:$0xf]
  %v19 = vld [vmem:[%s1 + $0xc] sm:$0xf]
  %v20 = vld [vmem:[%s1 + $0x10] sm:$0xf]
  %v21 = vld [vmem:[%s1 + $0x14] sm:$0xf]
  %v22 = vld [vmem:[%s1 + $0x18] sm:$0xf]
  %v23 = vld [vmem:[%s1 + $0x1c] sm:$0xf]
  %v24 = vld [vmem:[%s1 + $0x20] sm:$0xf]
  %v25 = vld [vmem:[%s2] sm:$0xff]
  %27 = vset.pattern.permute.xlu0 0
  %28 = vperm.xlu0 %27, %v25
  %v29 = vpop.permute.xlu0 %28
  %v40 = vunpack.c.l.b16 %v16
  %v41 = vunpack.c.l.b16 %v17
  %v42 = vunpack.c.l.b16 %v18
  %v43 = vunpack.c.l.b16 %v19
  %v44 = vunpack.c.l.b16 %v20
  %v45 = vunpack.c.l.b16 %v21
  %v46 = vunpack.c.l.b16 %v22
  %v47 = vunpack.c.l.b16 %v23
  %v48 = vunpack.c.l.b16 %v24
  %v49 = vpack.c.b16 %v41, %v40
  %v50 = vpack.c.b16 %v43, %v42
  %v51 = vpack.c.b16 %v45, %v44
  %v52 = vpack.c.b16 %v47, %v46
  %v53 = vpack.c.b16 %v48, %v48
  %vm58 = vcmask 588800
  %v60 = vsel %vm58, %v15, 0
  %vm62 = vcmask 1043456
  %v64 = vsel %vm62, %v53, 0
  %66 = vmatprep.subr.bf16.mxu0 0
  %67 = vmatpush1.bf16.msra.mxu0 0
  %68 = vmatprep.subr.bf16.mxu0 0
  %69 = vmatpush1.bf16.msra.mxu0 0
  %70 = vmatprep.subr.bf16.mxu0 0
  %71 = vmatpush1.bf16.msra.mxu0 0
  %72 = vmatprep.subr.bf16.mxu0 0
  %73 = vmatpush1.bf16.msra.mxu0 %v64
  %74 = vmatprep.subr.bf16.mxu0 0
  %75 = vmatpush1.bf16.msra.mxu0 %v52
  %76 = vmatprep.subr.bf16.mxu0 0
  %77 = vmatpush1.bf16.msra.mxu0 %v51
  %78 = vmatprep.subr.bf16.mxu0 0
  %79 = vmatpush1.bf16.msra.mxu0 %v50
  %80 = vmatprep.subr.bf16.mxu0 0
  %81 = vmatpush1.bf16.msra.mxu0 %v49
  %82 = vmatprep.subr.bf16.mxu0 0
  %83 = vmatpush2.bf16.msra.mxu0 0
  %84 = vmatprep.subr.bf16.mxu0 0
  %85 = vmatpush2.bf16.msra.mxu0 0
  %86 = vmatprep.subr.bf16.mxu0 0
  %87 = vmatpush2.bf16.msra.mxu0 0
  %88 = vmatprep.subr.bf16.mxu0 0
  %89 = vmatpush2.bf16.msra.mxu0 0
  %90 = vmatprep.subr.bf16.mxu0 0
  %91 = vmatpush2.bf16.msra.mxu0 0
  %92 = vmatprep.subr.bf16.mxu0 0
  %93 = vmatpush2.bf16.msra.mxu0 0
  %94 = vmatprep.subr.bf16.mxu0 0
  %95 = vmatpush2.bf16.msra.mxu0 0
  %96 = vmatprep.subr.bf16.mxu0 0
  %97 = vmatpush2.bf16.msra.mxu0 0
  %98 = vmatprep.mubr.bf16.mxu0 0
  %99 = vmatmul.mubr.bf16.gmra.mxu0 %v60
  %v100 = vpop.f32.mrf.mxu0
  %v101 = vadd.f32 %v29, %v100
  %v102 = vpop.f32.mrf.mxu0
  %v103 = vpop.f32.mrf.mxu0
  %v104 = vpop.f32.mrf.mxu0
  %105 = vdwg.mxu0
  %v106 = vmax.f32 %v101, 0.0
  %v107 = vpack.c.bf16 %v106, %v106
  %vm108 = vcmask 125952
  %109 = vst.msk [vmem:[%s3] sm:$0xf] %vm108, %v107
  // Predicated region
  $region14: #{position_attention.11} parent=0 // pred_check
    _
  $region15: #{position_attention.11} parent=0 // pred_check_branch
    %111 = sbr.rel (0) target = $region17
  $region16: #{position_attention.11} parent=0 // pred_region
    _
  $region17: #{position_attention.11} parent=0 // pred_fallthru
    _
  // Predicated region
  $region18: #{position_attention.11} parent=0 // pred_check
    _
  $region19: #{position_attention.11} parent=0 // pred_check_branch
    %113 = sbr.rel (0) target = $region21
  $region20: #{position_attention.11} parent=0 // pred_region
    _
  $region21: #{position_attention.11} parent=0 // pred_fallthru
    _

// kernel: position_attention.12
$region0: #{position_attention.12}
  #allocation0 [shape = 'u32[]', space=smem, size = 0x4, offset = 0x4, fixed_abs, tag = 'smem constant byte address 0x4 - core index']
  #allocation1 [shape = 'u32[144,128]{1,0:T(1,128)}', space=vmem, size = 0x12000, scoped, tag = 'internal scratch']
  %s0 = inlined_call_operand.vmem [shape: bf16[8,72], index: 0, kind: input, shape index: {}]
  %s1 = inlined_call_operand.vmem [shape: bf16[72,4], index: 1, kind: input, shape index: {}]
  %s2 = inlined_call_operand.vmem [shape: f32[8,1], index: 2, kind: input, shape index: {}]
  %s3 = inlined_call_operand.vmem [shape: bf16[8,4], index: 3, kind: output, shape index: {}]
  %s4 = sld [smem:[#allocation0]]
  $region22: #{position_attention.12} parent=0
    _
  %s6 = ssub.s32 1, %s4
  %s7 = scalar_select 0, %s6, %s4
  // Predicated region
  $region2: #{position_attention.12} parent=0 // pred_check
    _
  $region3: #{position_attention.12} parent=0 // pred_check_branch
    %9 = sbr.rel (0) target = $region5
  $region4: #{position_attention.12} parent=0 // pred_region
    _
  $region5: #{position_attention.12} parent=0 // pred_fallthru
    _
  // Predicated region
  $region6: #{position_attention.12} parent=0 // pred_check
    _
  $region7: #{position_attention.12} parent=0 // pred_check_branch
    %11 = sbr.rel (0) target = $region9
  $region8: #{position_attention.12} parent=0 // pred_region
    _
  $region9: #{position_attention.12} parent=0 // pred_fallthru
    _
  // Predicated region
  $region10: #{position_attention.12} parent=0 // pred_check
    _
  $region11: #{position_attention.12} parent=0 // pred_check_branch
    %13 = sbr.rel (0) target = $region13
  $region12: #{position_attention.12} parent=0 // pred_region
    _
  $region13: #{position_attention.12} parent=0 // pred_fallthru
    _
  %v15 = vld [vmem:[%s0] sm:$0xf]
  %v16 = vld [vmem:[%s1] sm:$0xf]
  %v17 = vld [vmem:[%s1 + $0x4] sm:$0xf]
  %v18 = vld [vmem:[%s1 + $0x8] sm:$0xf]
  %v19 = vld [vmem:[%s1 + $0xc] sm:$0xf]
  %v20 = vld [vmem:[%s1 + $0x10] sm:$0xf]
  %v21 = vld [vmem:[%s1 + $0x14] sm:$0xf]
  %v22 = vld [vmem:[%s1 + $0x18] sm:$0xf]
  %v23 = vld [vmem:[%s1 + $0x1c] sm:$0xf]
  %v24 = vld [vmem:[%s1 + $0x20] sm:$0xf]
  %v25 = vld [vmem:[%s2] sm:$0xff]
  %27 = vset.pattern.permute.xlu0 0
  %28 = vperm.xlu0 %27, %v25
  %v29 = vpop.permute.xlu0 %28
  %v40 = vunpack.c.l.b16 %v16
  %v41 = vunpack.c.l.b16 %v17
  %v42 = vunpack.c.l.b16 %v18
  %v43 = vunpack.c.l.b16 %v19
  %v44 = vunpack.c.l.b16 %v20
  %v45 = vunpack.c.l.b16 %v21
  %v46 = vunpack.c.l.b16 %v22
  %v47 = vunpack.c.l.b16 %v23
  %v48 = vunpack.c.l.b16 %v24
  %v49 = vpack.c.b16 %v41, %v40
  %v50 = vpack.c.b16 %v43, %v42
  %v51 = vpack.c.b16 %v45, %v44
  %v52 = vpack.c.b16 %v47, %v46
  %v53 = vpack.c.b16 %v48, %v48
  %vm58 = vcmask 588800
  %v60 = vsel %vm58, %v15, 0
  %vm62 = vcmask 1043456
  %v64 = vsel %vm62, %v53, 0
  %66 = vmatprep.subr.bf16.mxu0 0
  %67 = vmatpush1.bf16.msra.mxu0 0
  %68 = vmatprep.subr.bf16.mxu0 0
  %69 = vmatpush1.bf16.msra.mxu0 0
  %70 = vmatprep.subr.bf16.mxu0 0
  %71 = vmatpush1.bf16.msra.mxu0 0
  %72 = vmatprep.subr.bf16.mxu0 0
  %73 = vmatpush1.bf16.msra.mxu0 %v64
  %74 = vmatprep.subr.bf16.mxu0 0
  %75 = vmatpush1.bf16.msra.mxu0 %v52
  %76 = vmatprep.subr.bf16.mxu0 0
  %77 = vmatpush1.bf16.msra.mxu0 %v51
  %78 = vmatprep.subr.bf16.mxu0 0
  %79 = vmatpush1.bf16.msra.mxu0 %v50
  %80 = vmatprep.subr.bf16.mxu0 0
  %81 = vmatpush1.bf16.msra.mxu0 %v49
  %82 = vmatprep.subr.bf16.mxu0 0
  %83 = vmatpush2.bf16.msra.mxu0 0
  %84 = vmatprep.subr.bf16.mxu0 0
  %85 = vmatpush2.bf16.msra.mxu0 0
  %86 = vmatprep.subr.bf16.mxu0 0
  %87 = vmatpush2.bf16.msra.mxu0 0
  %88 = vmatprep.subr.bf16.mxu0 0
  %89 = vmatpush2.bf16.msra.mxu0 0
  %90 = vmatprep.subr.bf16.mxu0 0
  %91 = vmatpush2.bf16.msra.mxu0 0
  %92 = vmatprep.subr.bf16.mxu0 0
  %93 = vmatpush2.bf16.msra.mxu0 0
  %94 = vmatprep.subr.bf16.mxu0 0
  %95 = vmatpush2.bf16.msra.mxu0 0
  %96 = vmatprep.subr.bf16.mxu0 0
  %97 = vmatpush2.bf16.msra.mxu0 0
  %98 = vmatprep.mubr.bf16.mxu0 0
  %99 = vmatmul.mubr.bf16.gmra.mxu0 %v60
  %v100 = vpop.f32.mrf.mxu0
  %v101 = vadd.f32 %v29, %v100
  %v102 = vpop.f32.mrf.mxu0
  %v103 = vpop.f32.mrf.mxu0
  %v104 = vpop.f32.mrf.mxu0
  %105 = vdwg.mxu0
  %v106 = vmax.f32 %v101, 0.0
  %v107 = vpack.c.bf16 %v106, %v106
  %vm108 = vcmask 27648
  %109 = vst.msk [vmem:[%s3] sm:$0xf] %vm108, %v107
  // Predicated region
  $region14: #{position_attention.12} parent=0 // pred_check
    _
  $region15: #{position_attention.12} parent=0 // pred_check_branch
    %111 = sbr.rel (0) target = $region17
  $region16: #{position_attention.12} parent=0 // pred_region
    _
  $region17: #{position_attention.12} parent=0 // pred_fallthru
    _
  // Predicated region
  $region18: #{position_attention.12} parent=0 // pred_check
    _
  $region19: #{position_attention.12} parent=0 // pred_check_branch
    %113 = sbr.rel (0) target = $region21
  $region20: #{position_attention.12} parent=0 // pred_region
    _
  $region21: #{position_attention.12} parent=0 // pred_fallthru
    _

// kernel: position_attention.13
$region0: #{position_attention.13}
  #allocation0 [shape = 'u32[]', space=smem, size = 0x4, offset = 0x4, fixed_abs, tag = 'smem constant byte address 0x4 - core index']
  #allocation1 [shape = 'u32[144,128]{1,0:T(1,128)}', space=vmem, size = 0x12000, scoped, tag = 'internal scratch']
  %s0 = inlined_call_operand.vmem [shape: bf16[8,72], index: 0, kind: input, shape index: {}]
  %s1 = inlined_call_operand.vmem [shape: bf16[72,16], index: 1, kind: input, shape index: {}]
  %s2 = inlined_call_operand.vmem [shape: f32[8,1], index: 2, kind: input, shape index: {}]
  %s3 = inlined_call_operand.vmem [shape: bf16[8,16], index: 3, kind: input, shape index: {}]
  %s4 = inlined_call_operand.vmem [shape: bf16[8,16], index: 4, kind: output, shape index: {}]
  %s5 = sld [smem:[#allocation0]]
  $region26: #{position_attention.13} parent=0
    _
  %s7 = ssub.s32 1, %s5
  %s8 = scalar_select 0, %s7, %s5
  // Predicated region
  $region2: #{position_attention.13} parent=0 // pred_check
    _
  $region3: #{position_attention.13} parent=0 // pred_check_branch
    %10 = sbr.rel (0) target = $region5
  $region4: #{position_attention.13} parent=0 // pred_region
    _
  $region5: #{position_attention.13} parent=0 // pred_fallthru
    _
  // Predicated region
  $region6: #{position_attention.13} parent=0 // pred_check
    _
  $region7: #{position_attention.13} parent=0 // pred_check_branch
    %12 = sbr.rel (0) target = $region9
  $region8: #{position_attention.13} parent=0 // pred_region
    _
  $region9: #{position_attention.13} parent=0 // pred_fallthru
    _
  // Predicated region
  $region10: #{position_attention.13} parent=0 // pred_check
    _
  $region11: #{position_attention.13} parent=0 // pred_check_branch
    %14 = sbr.rel (0) target = $region13
  $region12: #{position_attention.13} parent=0 // pred_region
    _
  $region13: #{position_attention.13} parent=0 // pred_fallthru
    _
  // Predicated region
  $region14: #{position_attention.13} parent=0 // pred_check
    _
  $region15: #{position_attention.13} parent=0 // pred_check_branch
    %16 = sbr.rel (0) target = $region17
  $region16: #{position_attention.13} parent=0 // pred_region
    _
  $region17: #{position_attention.13} parent=0 // pred_fallthru
    _
  %v18 = vld [vmem:[%s0] sm:$0xf]
  %v19 = vld [vmem:[%s1] sm:$0xf]
  %v20 = vld [vmem:[%s1 + $0x4] sm:$0xf]
  %v21 = vld [vmem:[%s1 + $0x8] sm:$0xf]
  %v22 = vld [vmem:[%s1 + $0xc] sm:$0xf]
  %v23 = vld [vmem:[%s1 + $0x10] sm:$0xf]
  %v24 = vld [vmem:[%s1 + $0x14] sm:$0xf]
  %v25 = vld [vmem:[%s1 + $0x18] sm:$0xf]
  %v26 = vld [vmem:[%s1 + $0x1c] sm:$0xf]
  %v27 = vld [vmem:[%s1 + $0x20] sm:$0xf]
  %v28 = vld [vmem:[%s2] sm:$0xff]
  %30 = vset.pattern.permute.xlu0 0
  %31 = vperm.xlu0 %30, %v28
  %v32 = vpop.permute.xlu0 %31
  %v43 = vunpack.c.l.b16 %v19
  %v44 = vunpack.c.l.b16 %v20
  %v45 = vunpack.c.l.b16 %v21
  %v46 = vunpack.c.l.b16 %v22
  %v47 = vunpack.c.l.b16 %v23
  %v48 = vunpack.c.l.b16 %v24
  %v49 = vunpack.c.l.b16 %v25
  %v50 = vunpack.c.l.b16 %v26
  %v51 = vunpack.c.l.b16 %v27
  %v52 = vpack.c.b16 %v44, %v43
  %v53 = vpack.c.b16 %v46, %v45
  %v54 = vpack.c.b16 %v48, %v47
  %v55 = vpack.c.b16 %v50, %v49
  %v56 = vpack.c.b16 %v51, %v51
  %vm61 = vcmask 588800
  %v63 = vsel %vm61, %v18, 0
  %vm65 = vcmask 1043456
  %v67 = vsel %vm65, %v56, 0
  %69 = vmatprep.subr.bf16.mxu0 0
  %70 = vmatpush1.bf16.msra.mxu0 0
  %71 = vmatprep.subr.bf16.mxu0 0
  %72 = vmatpush1.bf16.msra.mxu0 0
  %73 = vmatprep.subr.bf16.mxu0 0
  %74 = vmatpush1.bf16.msra.mxu0 0
  %75 = vmatprep.subr.bf16.mxu0 0
  %76 = vmatpush1.bf16.msra.mxu0 %v67
  %77 = vmatprep.subr.bf16.mxu0 0
  %78 = vmatpush1.bf16.msra.mxu0 %v55
  %79 = vmatprep.subr.bf16.mxu0 0
  %80 = vmatpush1.bf16.msra.mxu0 %v54
  %81 = vmatprep.subr.bf16.mxu0 0
  %82 = vmatpush1.bf16.msra.mxu0 %v53
  %83 = vmatprep.subr.bf16.mxu0 0
  %84 = vmatpush1.bf16.msra.mxu0 %v52
  %85 = vmatprep.subr.bf16.mxu0 0
  %86 = vmatpush2.bf16.msra.mxu0 0
  %87 = vmatprep.subr.bf16.mxu0 0
  %88 = vmatpush2.bf16.msra.mxu0 0
  %89 = vmatprep.subr.bf16.mxu0 0
  %90 = vmatpush2.bf16.msra.mxu0 0
  %91 = vmatprep.subr.bf16.mxu0 0
  %92 = vmatpush2.bf16.msra.mxu0 0
  %93 = vmatprep.subr.bf16.mxu0 0
  %94 = vmatpush2.bf16.msra.mxu0 0
  %95 = vmatprep.subr.bf16.mxu0 0
  %96 = vmatpush2.bf16.msra.mxu0 0
  %97 = vmatprep.subr.bf16.mxu0 0
  %98 = vmatpush2.bf16.msra.mxu0 0
  %99 = vmatprep.subr.bf16.mxu0 0
  %100 = vmatpush2.bf16.msra.mxu0 0
  %101 = vmatprep.mubr.bf16.mxu0 0
  %102 = vmatmul.mubr.bf16.gmra.mxu0 %v63
  %v103 = vpop.f32.mrf.mxu0
  %v104 = vadd.f32 %v32, %v103
  %v105 = vpop.f32.mrf.mxu0
  %v106 = vpop.f32.mrf.mxu0
  %v107 = vpop.f32.mrf.mxu0
  %108 = vdwg.mxu0
  %v109 = vmax.f32 %v104, 0.0
  %v110 = vld [vmem:[%s3] sm:$0xf]
  %v111 = vunpack.c.l.bf16 %v110
  %v112 = vadd.f32 %v109, %v111
  %v113 = vpack.c.bf16 %v112, %v112
  %vm114 = vcmask 125952
  %115 = vst.msk [vmem:[%s4] sm:$0xf] %vm114, %v113
  // Predicated region
  $region18: #{position_attention.13} parent=0 // pred_check
    _
  $region19: #{position_attention.13} parent=0 // pred_check_branch
    %117 = sbr.rel (0) target = $region21
  $region20: #{position_attention.13} parent=0 // pred_region
    _
  $region21: #{position_attention.13} parent=0 // pred_fallthru
    _
  // Predicated region
  $region22: #{position_attention.13} parent=0 // pred_check
    _
  $region23: #{position_attention.13} parent=0 // pred_check_branch
    %119 = sbr.rel (0) target = $region25
  $region24: #{position_attention.13} parent=0 // pred_region
    _
  $region25: #{position_attention.13} parent=0 // pred_fallthru
    _

// kernel: position_attention.14
$region0: #{position_attention.14}
  #allocation0 [shape = 'u32[]', space=smem, size = 0x4, offset = 0x4, fixed_abs, tag = 'smem constant byte address 0x4 - core index']
  #allocation1 [shape = 'u32[144,128]{1,0:T(1,128)}', space=vmem, size = 0x12000, scoped, tag = 'internal scratch']
  %s0 = inlined_call_operand.vmem [shape: bf16[8,72], index: 0, kind: input, shape index: {}]
  %s1 = inlined_call_operand.vmem [shape: bf16[72,64], index: 1, kind: input, shape index: {}]
  %s2 = inlined_call_operand.vmem [shape: f32[8,1], index: 2, kind: input, shape index: {}]
  %s3 = inlined_call_operand.vmem [shape: bf16[8,64], index: 3, kind: input, shape index: {}]
  %s4 = inlined_call_operand.vmem [shape: bf16[8,64], index: 4, kind: output, shape index: {}]
  %s5 = sld [smem:[#allocation0]]
  $region26: #{position_attention.14} parent=0
    _
  %s7 = ssub.s32 1, %s5
  %s8 = scalar_select 0, %s7, %s5
  // Predicated region
  $region2: #{position_attention.14} parent=0 // pred_check
    _
  $region3: #{position_attention.14} parent=0 // pred_check_branch
    %10 = sbr.rel (0) target = $region5
  $region4: #{position_attention.14} parent=0 // pred_region
    _
  $region5: #{position_attention.14} parent=0 // pred_fallthru
    _
  // Predicated region
  $region6: #{position_attention.14} parent=0 // pred_check
    _
  $region7: #{position_attention.14} parent=0 // pred_check_branch
    %12 = sbr.rel (0) target = $region9
  $region8: #{position_attention.14} parent=0 // pred_region
    _
  $region9: #{position_attention.14} parent=0 // pred_fallthru
    _
  // Predicated region
  $region10: #{position_attention.14} parent=0 // pred_check
    _
  $region11: #{position_attention.14} parent=0 // pred_check_branch
    %14 = sbr.rel (0) target = $region13
  $region12: #{position_attention.14} parent=0 // pred_region
    _
  $region13: #{position_attention.14} parent=0 // pred_fallthru
    _
  // Predicated region
  $region14: #{position_attention.14} parent=0 // pred_check
    _
  $region15: #{position_attention.14} parent=0 // pred_check_branch
    %16 = sbr.rel (0) target = $region17
  $region16: #{position_attention.14} parent=0 // pred_region
    _
  $region17: #{position_attention.14} parent=0 // pred_fallthru
    _
  %v18 = vld [vmem:[%s0] sm:$0xf]
  %v19 = vld [vmem:[%s1] sm:$0xf]
  %v20 = vld [vmem:[%s1 + $0x4] sm:$0xf]
  %v21 = vld [vmem:[%s1 + $0x8] sm:$0xf]
  %v22 = vld [vmem:[%s1 + $0xc] sm:$0xf]
  %v23 = vld [vmem:[%s1 + $0x10] sm:$0xf]
  %v24 = vld [vmem:[%s1 + $0x14] sm:$0xf]
  %v25 = vld [vmem:[%s1 + $0x18] sm:$0xf]
  %v26 = vld [vmem:[%s1 + $0x1c] sm:$0xf]
  %v27 = vld [vmem:[%s1 + $0x20] sm:$0xf]
  %v28 = vld [vmem:[%s2] sm:$0xff]
  %30 = vset.pattern.permute.xlu0 0
  %31 = vperm.xlu0 %30, %v28
  %v32 = vpop.permute.xlu0 %31
  %v43 = vunpack.c.l.b16 %v19
  %v44 = vunpack.c.l.b16 %v20
  %v45 = vunpack.c.l.b16 %v21
  %v46 = vunpack.c.l.b16 %v22
  %v47 = vunpack.c.l.b16 %v23
  %v48 = vunpack.c.l.b16 %v24
  %v49 = vunpack.c.l.b16 %v25
  %v50 = vunpack.c.l.b16 %v26
  %v51 = vunpack.c.l.b16 %v27
  %v52 = vpack.c.b16 %v44, %v43
  %v53 = vpack.c.b16 %v46, %v45
  %v54 = vpack.c.b16 %v48, %v47
  %v55 = vpack.c.b16 %v50, %v49
  %v56 = vpack.c.b16 %v51, %v51
  %vm61 = vcmask 588800
  %v63 = vsel %vm61, %v18, 0
  %vm65 = vcmask 1043456
  %v67 = vsel %vm65, %v56, 0
  %69 = vmatprep.subr.bf16.mxu0 0
  %70 = vmatpush1.bf16.msra.mxu0 0
  %71 = vmatprep.subr.bf16.mxu0 0
  %72 = vmatpush1.bf16.msra.mxu0 0
  %73 = vmatprep.subr.bf16.mxu0 0
  %74 = vmatpush1.bf16.msra.mxu0 0
  %75 = vmatprep.subr.bf16.mxu0 0
  %76 = vmatpush1.bf16.msra.mxu0 %v67
  %77 = vmatprep.subr.bf16.mxu0 0
  %78 = vmatpush1.bf16.msra.mxu0 %v55
  %79 = vmatprep.subr.bf16.mxu0 0
  %80 = vmatpush1.bf16.msra.mxu0 %v54
  %81 = vmatprep.subr.bf16.mxu0 0
  %82 = vmatpush1.bf16.msra.mxu0 %v53
  %83 = vmatprep.subr.bf16.mxu0 0
  %84 = vmatpush1.bf16.msra.mxu0 %v52
  %85 = vmatprep.subr.bf16.mxu0 0
  %86 = vmatpush2.bf16.msra.mxu0 0
  %87 = vmatprep.subr.bf16.mxu0 0
  %88 = vmatpush2.bf16.msra.mxu0 0
  %89 = vmatprep.subr.bf16.mxu0 0
  %90 = vmatpush2.bf16.msra.mxu0 0
  %91 = vmatprep.subr.bf16.mxu0 0
  %92 = vmatpush2.bf16.msra.mxu0 0
  %93 = vmatprep.subr.bf16.mxu0 0
  %94 = vmatpush2.bf16.msra.mxu0 0
  %95 = vmatprep.subr.bf16.mxu0 0
  %96 = vmatpush2.bf16.msra.mxu0 0
  %97 = vmatprep.subr.bf16.mxu0 0
  %98 = vmatpush2.bf16.msra.mxu0 0
  %99 = vmatprep.subr.bf16.mxu0 0
  %100 = vmatpush2.bf16.msra.mxu0 0
  %101 = vmatprep.mubr.bf16.mxu0 0
  %102 = vmatmul.mubr.bf16.gmra.mxu0 %v63
  %v103 = vpop.f32.mrf.mxu0
  %v104 = vadd.f32 %v32, %v103
  %v105 = vpop.f32.mrf.mxu0
  %v106 = vpop.f32.mrf.mxu0
  %v107 = vpop.f32.mrf.mxu0
  %108 = vdwg.mxu0
  %v109 = vmax.f32 %v104, 0.0
  %v110 = vld [vmem:[%s3] sm:$0xf]
  %v111 = vunpack.c.l.bf16 %v110
  %v112 = vadd.f32 %v109, %v111
  %v113 = vpack.c.bf16 %v112, %v112
  %vm114 = vcmask 519168
  %115 = vst.msk [vmem:[%s4] sm:$0xf] %vm114, %v113
  // Predicated region
  $region18: #{position_attention.14} parent=0 // pred_check
    _
  $region19: #{position_attention.14} parent=0 // pred_check_branch
    %117 = sbr.rel (0) target = $region21
  $region20: #{position_attention.14} parent=0 // pred_region
    _
  $region21: #{position_attention.14} parent=0 // pred_fallthru
    _
  // Predicated region
  $region22: #{position_attention.14} parent=0 // pred_check
    _
  $region23: #{position_attention.14} parent=0 // pred_check_branch
    %119 = sbr.rel (0) target = $region25
  $region24: #{position_attention.14} parent=0 // pred_region
    _
  $region25: #{position_attention.14} parent=0 // pred_fallthru
    _

// kernel: position_attention.15
$region0: #{position_attention.15}
  #allocation0 [shape = 'u32[]', space=smem, size = 0x4, offset = 0x4, fixed_abs, tag = 'smem constant byte address 0x4 - core index']
  #allocation1 [shape = 'u32[144,128]{1,0:T(1,128)}', space=vmem, size = 0x12000, scoped, tag = 'internal scratch']
  %s0 = inlined_call_operand.vmem [shape: bf16[8,72], index: 0, kind: input, shape index: {}]
  %s1 = inlined_call_operand.vmem [shape: bf16[72,256], index: 1, kind: input, shape index: {}]
  %s2 = inlined_call_operand.vmem [shape: f32[8,1], index: 2, kind: input, shape index: {}]
  %s3 = inlined_call_operand.vmem [shape: bf16[8,256], index: 3, kind: input, shape index: {}]
  %s4 = inlined_call_operand.vmem [shape: bf16[8,256], index: 4, kind: output, shape index: {}]
  %s5 = sld [smem:[#allocation0]]
  $region90: #{position_attention.15} parent=0
    _
  %s7 = ssub.s32 1, %s5
  %s8 = scalar_select 0, %s7, %s5
  $region1: #{position_attention.15} parent=0
    #allocation2 [shape = 'u8[36864]{0}', space=vmem, size = 0x9000, scoped, tag = 'input window, operand 1']
    loop: start=0, step=1, limit=4
    $region2: #{position_attention.15} parent=1 // loop_pre_header
      _
    $region3: #{position_attention.15} parent=1 // loop_header
      %s10 = sphi 0, %s14
      %p11 = scmp.ge.s32.totalorder %s10, 4
      %s18 = sphi 0, %s18
      %s20 = sphi 0, %s18
      %s21 = sphi 0, %s20
      %s35 = sphi 0, %s21
      %s41 = sphi 0, %s43
      %s44 = sphi 0, %s41
      %s45 = sphi 0, %s44
      %s61 = sphi 0, %s45
      %s65 = sphi 0, %s65
      %s67 = sphi 0, %s65
      %s68 = sphi 0, %s67
      %s82 = sphi 0, %s68
      %s88 = sphi 0, %s90
      %s91 = sphi 0, %s88
      %s92 = sphi 0, %s91
      %s108 = sphi 0, %s92
      %s114 = sphi 0, %s116
      %s117 = sphi 0, %s114
      %s118 = sphi 0, %s117
      %s134 = sphi 0, %s118
    $region4: #{position_attention.15} parent=1 // loop_header_branch
      %13 = sbr.rel (%p11) target = $region8
    $region5: #{position_attention.15} parent=1 // loop_body
      %s15 = ssub.s32 %s10, 1
      %s16 = ssub.s32 %s10, 2
      %s17 = sadd.s32 %s10, 1
      %s19 = sadd.s32 %s18, 1
      %p22 = scmp.eq.s32.totalorder %s10, 1
      %p23 = scmp.ne.s32.totalorder %s18, %s20
      %p24 = scmp.eq.s32.totalorder %s10, 0
      %p25 = por %p23, %p24
      %p26 = scmp.ne.s32.totalorder %s18, %s20
      %p27 = scmp.eq.s32.totalorder %s15, 1
      %p28 = por %p26, %p27
      %p29 = scmp.ne.s32.totalorder %s20, %s21
      %p30 = scmp.eq.s32.totalorder %s15, 0
      %p31 = por %p29, %p30
      %p32 = scmp.ne.s32.totalorder %s20, %s21
      %p33 = scmp.eq.s32.totalorder %s16, 1
      %p34 = por %p32, %p33
      %p36 = scmp.ne.s32.totalorder %s21, %s35
      %p37 = scmp.eq.s32.totalorder %s16, 0
      %p38 = por %p36, %p37
      %s39 = ssub.s32 %s10, %s17
      %p40 = scmp.eq.s32.totalorder %s39, 0
      %s42 = sadd.s32 %s41, 1
      %s43 = scalar_select %p40, %s41, %s42
      %p46 = pneg %p40
      %p47 = scmp.eq.s32.totalorder %s10, 1
      %p48 = por %p46, %p47
      %p49 = scmp.ne.s32.totalorder %s41, %s44
      %p50 = scmp.eq.s32.totalorder %s10, 0
      %p51 = por %p49, %p50
      %p52 = scmp.ne.s32.totalorder %s41, %s44
      %p53 = scmp.eq.s32.totalorder %s15, 1
      %p54 = por %p52, %p53
      %p55 = scmp.ne.s32.totalorder %s44, %s45
      %p56 = scmp.eq.s32.totalorder %s15, 0
      %p57 = por %p55, %p56
      %p58 = scmp.ne.s32.totalorder %s44, %s45
      %p59 = scmp.eq.s32.totalorder %s16, 1
      %p60 = por %p58, %p59
      %p62 = scmp.ne.s32.totalorder %s45, %s61
      %p63 = scmp.eq.s32.totalorder %s16, 0
      %p64 = por %p62, %p63
      %s66 = sadd.s32 %s65, 1
      %p69 = scmp.eq.s32.totalorder %s10, 1
      %p70 = scmp.ne.s32.totalorder %s65, %s67
      %p71 = scmp.eq.s32.totalorder %s10, 0
      %p72 = por %p70, %p71
      %p73 = scmp.ne.s32.totalorder %s65, %s67
      %p74 = scmp.eq.s32.totalorder %s15, 1
      %p75 = por %p73, %p74
      %p76 = scmp.ne.s32.totalorder %s67, %s68
      %p77 = scmp.eq.s32.totalorder %s15, 0
      %p78 = por %p76, %p77
      %p79 = scmp.ne.s32.totalorder %s67, %s68
      %p80 = scmp.eq.s32.totalorder %s16, 1
      %p81 = por %p79, %p80
      %p83 = scmp.ne.s32.totalorder %s68, %s82
      %p84 = scmp.eq.s32.totalorder %s16, 0
      %p85 = por %p83, %p84
      %s86 = ssub.s32 %s10, %s17
      %p87 = scmp.eq.s32.totalorder %s86, 0
      %s89 = sadd.s32 %s88, 1
      %s90 = scalar_select %p87, %s88, %s89
      %p93 = pneg %p87
      %p94 = scmp.eq.s32.totalorder %s10, 1
      %p95 = por %p93, %p94
      %p96 = scmp.ne.s32.totalorder %s88, %s91
      %p97 = scmp.eq.s32.totalorder %s10, 0
      %p98 = por %p96, %p97
      %p99 = scmp.ne.s32.totalorder %s88, %s91
      %p100 = scmp.eq.s32.totalorder %s15, 1
      %p101 = por %p99, %p100
      %p102 = scmp.ne.s32.totalorder %s91, %s92
      %p103 = scmp.eq.s32.totalorder %s15, 0
      %p104 = por %p102, %p103
      %p105 = scmp.ne.s32.totalorder %s91, %s92
      %p106 = scmp.eq.s32.totalorder %s16, 1
      %p107 = por %p105, %p106
      %p109 = scmp.ne.s32.totalorder %s92, %s108
      %p110 = scmp.eq.s32.totalorder %s16, 0
      %p111 = por %p109, %p110
      %s112 = ssub.s32 %s10, %s17
      %p113 = scmp.eq.s32.totalorder %s112, 0
      %s115 = sadd.s32 %s114, 1
      %s116 = scalar_select %p113, %s114, %s115
      %p119 = pneg %p113
      %p120 = scmp.eq.s32.totalorder %s10, 1
      %p121 = por %p119, %p120
      %p122 = scmp.ne.s32.totalorder %s114, %s117
      %p123 = scmp.eq.s32.totalorder %s10, 0
      %p124 = por %p122, %p123
      %p125 = scmp.ne.s32.totalorder %s114, %s117
      %p126 = scmp.eq.s32.totalorder %s15, 1
      %p127 = por %p125, %p126
      %p128 = scmp.ne.s32.totalorder %s117, %s118
      %p129 = scmp.eq.s32.totalorder %s15, 0
      %p130 = por %p128, %p129
      %p131 = scmp.ne.s32.totalorder %s117, %s118
      %p132 = scmp.eq.s32.totalorder %s16, 1
      %p133 = por %p131, %p132
      %p135 = scmp.ne.s32.totalorder %s118, %s134
      %p136 = scmp.eq.s32.totalorder %s16, 0
      %p137 = por %p135, %p136
      %p138 = scmp.le.s32.totalorder 1, %s10
      %p139 = scmp.lt.s32.totalorder %s10, 3
      %p140 = pnand %p138, %p139
      %p141 = pneg %p140
      // Predicated region
      $region9: #{position_attention.15} parent=5 // pred_check
        _
      $region10: #{position_attention.15} parent=5 // pred_check_branch
        %143 = sbr.rel (%p140) target = $region12
      $region11: #{position_attention.15} parent=5 // pred_region
        %s144 = ssub.s32 %s10, 1
        // Predicated region
        $region13: #{position_attention.15} parent=11 // pred_check
          %p145 = pneg %p31
        $region14: #{position_attention.15} parent=11 // pred_check_branch
          %147 = sbr.rel (%p145) target = $region16
        $region15: #{position_attention.15} parent=11 // pred_region
          _
        $region16: #{position_attention.15} parent=11 // pred_fallthru
          _
        // Predicated region
        $region17: #{position_attention.15} parent=11 // pred_check
          %p148 = pneg %p78
        $region18: #{position_attention.15} parent=11 // pred_check_branch
          %150 = sbr.rel (%p148) target = $region20
        $region19: #{position_attention.15} parent=11 // pred_region
          _
        $region20: #{position_attention.15} parent=11 // pred_fallthru
          _
      $region12: #{position_attention.15} parent=5 // pred_fallthru
        _
      %p151 = scmp.lt.s32.totalorder %s10, 2
      // Predicated region
      $region21: #{position_attention.15} parent=5 // pred_check
        %p152 = pneg %p151
      $region22: #{position_attention.15} parent=5 // pred_check_branch
        %154 = sbr.rel (%p152) target = $region24
      $region23: #{position_attention.15} parent=5 // pred_region
        // Predicated region
        $region25: #{position_attention.15} parent=23 // pred_check
          %p155 = pneg %p51
        $region26: #{position_attention.15} parent=23 // pred_check_branch
          %157 = sbr.rel (%p155) target = $region28
        $region27: #{position_attention.15} parent=23 // pred_region
          %s158 = sand.u32 %s41, 1
          %s159 = sand.u32 %s41, 1
          %s160 = smul.addr %s159, 36
          %s161 = scalar_lea.vmem [#allocation2], %s160
          %s162 = smul.addr %s10, 4
          %s163 = scalar_lea.vmem %s1, %s162
          // Predicated region
          $region29: #{position_attention.15} parent=27 // pred_check
            _
          $region30: #{position_attention.15} parent=27 // pred_check_branch
            %165 = sbr.rel (0) target = $region32
          $region31: #{position_attention.15} parent=27 // pred_region
            // Predicated region
            $region33: #{position_attention.15} parent=31 // pred_check
              _
            $region34: #{position_attention.15} parent=31 // pred_check_branch
              %167 = sbr.rel target = $region36
            $region35: #{position_attention.15} parent=31 // pred_region
              // Predicated region
              $region48: #{position_attention.15} parent=35 // pred_check
                _
              $region49: #{position_attention.15} parent=35 // pred_check_branch
                %199 = sbr.rel (0) target = $region51
              $region50: #{position_attention.15} parent=35 // pred_region
                loop: start=0, step=1, limit=1
                $region52: #{position_attention.15} parent=50 // loop_pre_header
                  _
                $region53: #{position_attention.15} parent=50 // loop_header
                  %s201 = sphi 0, %s205
                  %p202 = scmp.ge.s32.totalorder %s201, 1
                  %s206 = sphi %s163, %s163
                  %s207 = sphi %s161, %s161
                $region54: #{position_attention.15} parent=50 // loop_header_branch
                  %204 = sbr.rel (%p202) target = $region58
                $region55: #{position_attention.15} parent=50 // loop_body
                  _
                $region56: #{position_attention.15} parent=50 // loop_footer
                  %s205 = sadd.s32 1, %s201
                $region57: #{position_attention.15} parent=50 // loop_footer_branch
                  %200 = sbr.rel target = $region53
                $region58: #{position_attention.15} parent=50 // loop_exit
                  _
                %s209 = ssub.s32 16, 1
                loop: start=0, step=1, limit=1
                $region59: #{position_attention.15} parent=50 // loop_pre_header
                  _
                $region60: #{position_attention.15} parent=50 // loop_header
                  %s211 = sphi 0, %s215
                  %p212 = scmp.ge.s32.totalorder %s211, 1
                  %s216 = sphi %s163, %s163
                  %s217 = sphi %s161, %s161
                $region61: #{position_attention.15} parent=50 // loop_header_branch
                  %214 = sbr.rel (%p212) target = $region65
                $region62: #{position_attention.15} parent=50 // loop_body
                  %v218 = vld [vmem:[%s216] sm:%s209]
                  %219 = vst [vmem:[%s217] sm:%s209] %v218
                  %v220 = vld [vmem:[%s216 + $0x8] sm:%s209]
                  %221 = vst [vmem:[%s217 + $0x4] sm:%s209] %v220
                  %v222 = vld [vmem:[%s216 + $0x10] sm:%s209]
                  %223 = vst [vmem:[%s217 + $0x8] sm:%s209] %v222
                  %v224 = vld [vmem:[%s216 + $0x18] sm:%s209]
                  %225 = vst [vmem:[%s217 + $0xc] sm:%s209] %v224
                  %v226 = vld [vmem:[%s216 + $0x20] sm:%s209]
                  %227 = vst [vmem:[%s217 + $0x10] sm:%s209] %v226
                  %v228 = vld [vmem:[%s216 + $0x28] sm:%s209]
                  %229 = vst [vmem:[%s217 + $0x14] sm:%s209] %v228
                  %v230 = vld [vmem:[%s216 + $0x30] sm:%s209]
                  %231 = vst [vmem:[%s217 + $0x18] sm:%s209] %v230
                  %v232 = vld [vmem:[%s216 + $0x38] sm:%s209]
                  %233 = vst [vmem:[%s217 + $0x1c] sm:%s209] %v232
                  %v234 = vld [vmem:[%s216 + $0x40] sm:%s209]
                  %235 = vst [vmem:[%s217 + $0x20] sm:%s209] %v234
                $region63: #{position_attention.15} parent=50 // loop_footer
                  %s215 = sadd.s32 1, %s211
                $region64: #{position_attention.15} parent=50 // loop_footer_branch
                  %210 = sbr.rel target = $region60
                $region65: #{position_attention.15} parent=50 // loop_exit
                  _
              $region51: #{position_attention.15} parent=35 // pred_fallthru
                _
            $region36: #{position_attention.15} parent=31 // pred_fallthru
              _
            // Predicated region
            $region37: #{position_attention.15} parent=31 // pred_check
              _
            $region38: #{position_attention.15} parent=31 // pred_check_branch
              %169 = sbr.rel (0) target = $region40
            $region39: #{position_attention.15} parent=31 // pred_region
              %s171 = ssub.s32 16, 1
              loop: start=0, step=1, limit=1
              $region41: #{position_attention.15} parent=39 // loop_pre_header
                _
              $region42: #{position_attention.15} parent=39 // loop_header
                %s173 = sphi 0, %s177
                %p174 = scmp.ge.s32.totalorder %s173, 1
                %s178 = sphi %s163, %s163
                %s179 = sphi %s161, %s161
              $region43: #{position_attention.15} parent=39 // loop_header_branch
                %176 = sbr.rel (%p174) target = $region47
              $region44: #{position_attention.15} parent=39 // loop_body
                %v180 = vld [vmem:[%s178] sm:%s171]
                %181 = vst [vmem:[%s179] sm:%s171] %v180
                %v182 = vld [vmem:[%s178 + $0x8] sm:%s171]
                %183 = vst [vmem:[%s179 + $0x4] sm:%s171] %v182
                %v184 = vld [vmem:[%s178 + $0x10] sm:%s171]
                %185 = vst [vmem:[%s179 + $0x8] sm:%s171] %v184
                %v186 = vld [vmem:[%s178 + $0x18] sm:%s171]
                %187 = vst [vmem:[%s179 + $0xc] sm:%s171] %v186
                %v188 = vld [vmem:[%s178 + $0x20] sm:%s171]
                %189 = vst [vmem:[%s179 + $0x10] sm:%s171] %v188
                %v190 = vld [vmem:[%s178 + $0x28] sm:%s171]
                %191 = vst [vmem:[%s179 + $0x14] sm:%s171] %v190
                %v192 = vld [vmem:[%s178 + $0x30] sm:%s171]
                %193 = vst [vmem:[%s179 + $0x18] sm:%s171] %v192
                %v194 = vld [vmem:[%s178 + $0x38] sm:%s171]
                %195 = vst [vmem:[%s179 + $0x1c] sm:%s171] %v194
                %v196 = vld [vmem:[%s178 + $0x40] sm:%s171]
                %197 = vst [vmem:[%s179 + $0x20] sm:%s171] %v196
              $region45: #{position_attention.15} parent=39 // loop_footer
                %s177 = sadd.s32 1, %s173
              $region46: #{position_attention.15} parent=39 // loop_footer_branch
                %172 = sbr.rel target = $region42
              $region47: #{position_attention.15} parent=39 // loop_exit
                _
            $region40: #{position_attention.15} parent=31 // pred_fallthru
              _
          $region32: #{position_attention.15} parent=27 // pred_fallthru
            _
          %236 = vnop
        $region28: #{position_attention.15} parent=23 // pred_fallthru
          _
        // Predicated region
        $region66: #{position_attention.15} parent=23 // pred_check
          %p237 = pneg %p98
        $region67: #{position_attention.15} parent=23 // pred_check_branch
          %239 = sbr.rel (%p237) target = $region69
        $region68: #{position_attention.15} parent=23 // pred_region
          %p240 = scmp.lt.s32.totalorder %s10, 1
          %s241 = scalar_select %p240, %s10, 1
          %s242 = smul.addr %s241, 4
          %s243 = scalar_lea.vmem %s3, %s242
        $region69: #{position_attention.15} parent=23 // pred_fallthru
          _
      $region24: #{position_attention.15} parent=5 // pred_fallthru
        _
      %p244 = scmp.le.s32.totalorder 1, %s10
      %p245 = scmp.lt.s32.totalorder %s10, 3
      %p246 = pnand %p244, %p245
      %p247 = pneg %p246
      // Predicated region
      $region70: #{position_attention.15} parent=5 // pred_check
        _
      $region71: #{position_attention.15} parent=5 // pred_check_branch
        %249 = sbr.rel (%p246) target = $region73
      $region72: #{position_attention.15} parent=5 // pred_region
        %s250 = ssub.s32 %s10, 1
        %s251 = sand.u32 %s44, 1
        %s252 = sand.u32 %s44, 1
        %s253 = smul.addr %s252, 36
        %s254 = scalar_lea.vmem [#allocation2], %s253
        // Predicated region
        $region74: #{position_attention.15} parent=72 // pred_check
          %p255 = pneg %p57
        $region75: #{position_attention.15} parent=72 // pred_check_branch
          %257 = sbr.rel (%p255) target = $region77
        $region76: #{position_attention.15} parent=72 // pred_region
          _
        $region77: #{position_attention.15} parent=72 // pred_fallthru
          _
        %p258 = pneg %p31
        %p259 = pneg %p28
        %s260 = sand.u32 %s44, 1
        %s261 = sand.u32 %s44, 1
        %s262 = smul.addr %s261, 36
        %s263 = scalar_lea.vmem [#allocation2], %s262
        %p264 = pneg %p57
        %p265 = pneg %p54
        %p266 = pneg %p78
        %p267 = pneg %p75
        %p268 = scmp.lt.s32.totalorder %s15, 1
        %s269 = scalar_select %p268, %s15, 1
        %s270 = smul.addr %s269, 4
        %s271 = scalar_lea.vmem %s3, %s270
        %p272 = pneg %p104
        %p273 = pneg %p101
        %p274 = pneg %p130
        %p275 = pneg %p127
        %p276 = scmp.lt.s32.totalorder %s15, 1
        %s277 = scalar_select %p276, %s15, 1
        %s278 = smul.addr %s277, 4
        %s279 = scalar_lea.vmem %s4, %s278
        %p280 = scmp.lt.s32.totalorder %s15, 1
        %s281 = scalar_select %p280, %s15, 1
        %s282 = smul.addr %s281, 4
        %s283 = scalar_lea.vmem %s3, %s282
        %p284 = scmp.lt.s32.totalorder %s15, 1
        %s285 = scalar_select %p284, %s15, 1
        %s286 = smul.addr %s285, 4
        %s287 = scalar_lea.vmem %s4, %s286
        %v289 = vld [vmem:[%s0] sm:$0xf]
        %v290 = vld [vmem:[%s254] sm:$0xf]
        %v291 = vld [vmem:[%s254 + $0x4] sm:$0xf]
        %v292 = vld [vmem:[%s254 + $0x8] sm:$0xf]
        %v293 = vld [vmem:[%s254 + $0xc] sm:$0xf]
        %v294 = vld [vmem:[%s254 + $0x10] sm:$0xf]
        %v295 = vld [vmem:[%s254 + $0x14] sm:$0xf]
        %v296 = vld [vmem:[%s254 + $0x18] sm:$0xf]
        %v297 = vld [vmem:[%s254 + $0x1c] sm:$0xf]
        %v298 = vld [vmem:[%s254 + $0x20] sm:$0xf]
        %v299 = vld [vmem:[%s2] sm:$0xff]
        %301 = vset.pattern.permute.xlu0 0
        %302 = vperm.xlu0 %301, %v299
        %v303 = vpop.permute.xlu0 %302
        %v314 = vunpack.c.l.b16 %v290
        %v315 = vunpack.c.l.b16 %v291
        %v316 = vunpack.c.l.b16 %v292
        %v317 = vunpack.c.l.b16 %v293
        %v318 = vunpack.c.l.b16 %v294
        %v319 = vunpack.c.l.b16 %v295
        %v320 = vunpack.c.l.b16 %v296
        %v321 = vunpack.c.l.b16 %v297
        %v322 = vunpack.c.l.b16 %v298
        %v323 = vpack.c.b16 %v315, %v314
        %v324 = vpack.c.b16 %v317, %v316
        %v325 = vpack.c.b16 %v319, %v318
        %v326 = vpack.c.b16 %v321, %v320
        %v327 = vpack.c.b16 %v322, %v322
        %vm332 = vcmask 588800
        %v334 = vsel %vm332, %v289, 0
        %vm336 = vcmask 1043456
        %v338 = vsel %vm336, %v327, 0
        %340 = vmatprep.subr.bf16.mxu0 0
        %341 = vmatpush1.bf16.msra.mxu0 0
        %342 = vmatprep.subr.bf16.mxu0 0
        %343 = vmatpush1.bf16.msra.mxu0 0
        %344 = vmatprep.subr.bf16.mxu0 0
        %345 = vmatpush1.bf16.msra.mxu0 0
        %346 = vmatprep.subr.bf16.mxu0 0
        %347 = vmatpush1.bf16.msra.mxu0 %v338
        %348 = vmatprep.subr.bf16.mxu0 0
        %349 = vmatpush1.bf16.msra.mxu0 %v326
        %350 = vmatprep.subr.bf16.mxu0 0
        %351 = vmatpush1.bf16.msra.mxu0 %v325
        %352 = vmatprep.subr.bf16.mxu0 0
        %353 = vmatpush1.bf16.msra.mxu0 %v324
        %354 = vmatprep.subr.bf16.mxu0 0
        %355 = vmatpush1.bf16.msra.mxu0 %v323
        %356 = vmatprep.subr.bf16.mxu0 0
        %357 = vmatpush2.bf16.msra.mxu0 0
        %358 = vmatprep.subr.bf16.mxu0 0
        %359 = vmatpush2.bf16.msra.mxu0 0
        %360 = vmatprep.subr.bf16.mxu0 0
        %361 = vmatpush2.bf16.msra.mxu0 0
        %362 = vmatprep.subr.bf16.mxu0 0
        %363 = vmatpush2.bf16.msra.mxu0 0
        %364 = vmatprep.subr.bf16.mxu0 0
        %365 = vmatpush2.bf16.msra.mxu0 0
        %366 = vmatprep.subr.bf16.mxu0 0
        %367 = vmatpush2.bf16.msra.mxu0 0
        %368 = vmatprep.subr.bf16.mxu0 0
        %369 = vmatpush2.bf16.msra.mxu0 0
        %370 = vmatprep.subr.bf16.mxu0 0
        %371 = vmatpush2.bf16.msra.mxu0 0
        %372 = vmatprep.mubr.bf16.mxu0 0
        %373 = vmatmul.mubr.bf16.gmra.mxu0 %v334
        %v374 = vpop.f32.mrf.mxu0
        %v375 = vadd.f32 %v303, %v374
        %v376 = vpop.f32.mrf.mxu0
        %v377 = vpop.f32.mrf.mxu0
        %v378 = vpop.f32.mrf.mxu0
        %379 = vdwg.mxu0
        %v380 = vmax.f32 %v375, 0.0
        %v381 = vld [vmem:[%s283] sm:$0xf]
        %v382 = vunpack.c.l.bf16 %v381
        %v383 = vadd.f32 %v380, %v382
        %v384 = vpack.c.bf16 %v383, %v383
        %385 = vst [vmem:[%s287] sm:$0xf] %v384
        %p386 = scmp.lt.s32.totalorder %s15, 1
        %s387 = scalar_select %p386, %s15, 1
        %s388 = smul.addr %s387, 4
        %s389 = scalar_lea.vmem %s4, %s388
        // Predicated region
        $region78: #{position_attention.15} parent=72 // pred_check
          %p390 = pneg %p127
        $region79: #{position_attention.15} parent=72 // pred_check_branch
          %392 = sbr.rel (%p390) target = $region81
        $region80: #{position_attention.15} parent=72 // pred_region
          _
        $region81: #{position_attention.15} parent=72 // pred_fallthru
          _
      $region73: #{position_attention.15} parent=5 // pred_fallthru
        _
      %p393 = scmp.le.s32.totalorder 2, %s10
      // Predicated region
      $region82: #{position_attention.15} parent=5 // pred_check
        %p394 = pneg %p393
      $region83: #{position_attention.15} parent=5 // pred_check_branch
        %396 = sbr.rel (%p394) target = $region85
      $region84: #{position_attention.15} parent=5 // pred_region
        %s397 = ssub.s32 %s10, 2
        // Predicated region
        $region86: #{position_attention.15} parent=84 // pred_check
          %p398 = pneg %p133
        $region87: #{position_attention.15} parent=84 // pred_check_branch
          %400 = sbr.rel (%p398) target = $region89
        $region88: #{position_attention.15} parent=84 // pred_region
          %p401 = scmp.lt.s32.totalorder %s16, 1
          %s402 = scalar_select %p401, %s16, 1
          %s403 = smul.addr %s402, 4
          %s404 = scalar_lea.vmem %s4, %s403
        $region89: #{position_attention.15} parent=84 // pred_fallthru
          _
      $region85: #{position_attention.15} parent=5 // pred_fallthru
        _
    $region6: #{position_attention.15} parent=1 // loop_footer
      %s14 = sadd.s32 1, %s10
    $region7: #{position_attention.15} parent=1 // loop_footer_branch
      %9 = sbr.rel target = $region3
    $region8: #{position_attention.15} parent=1 // loop_exit
      _

// kernel: position_attention.16
$region0: #{position_attention.16}
  #allocation0 [shape = 'u32[]', space=smem, size = 0x4, offset = 0x4, fixed_abs, tag = 'smem constant byte address 0x4 - core index']
  #allocation1 [shape = 'u32[144,128]{1,0:T(1,128)}', space=vmem, size = 0x12000, scoped, tag = 'internal scratch']
  %s0 = inlined_call_operand.vmem [shape: bf16[32,72], index: 0, kind: input, shape index: {}]
  %s1 = inlined_call_operand.vmem [shape: bf16[72,512], index: 1, kind: input, shape index: {}]
  %s2 = inlined_call_operand.vmem [shape: f32[32,1], index: 2, kind: input, shape index: {}]
  %s3 = inlined_call_operand.vmem [shape: bf16[32,512], index: 3, kind: output, shape index: {}]
  %s4 = sld [smem:[#allocation0]]
  $region117: #{position_attention.16} parent=0
    _
  %s6 = ssub.s32 1, %s4
  %s7 = scalar_select 0, %s6, %s4
  $region1: #{position_attention.16} parent=0
    #allocation2 [shape = 'u8[73728]{0}', space=vmem, size = 0x12000, scoped, tag = 'input window, operand 1']
    #allocation3 [shape = 'u8[32768]{0}', space=vmem, size = 0x8000, scoped, tag = 'output window, operand 0']
    loop: start=0, step=1, limit=4
    $region2: #{position_attention.16} parent=1 // loop_pre_header
      _
    $region3: #{position_attention.16} parent=1 // loop_header
      %s9 = sphi 0, %s13
      %p10 = scmp.ge.s32.totalorder %s9, 4
      %s17 = sphi 0, %s17
      %s19 = sphi 0, %s17
      %s20 = sphi 0, %s19
      %s34 = sphi 0, %s20
      %s40 = sphi 0, %s42
      %s43 = sphi 0, %s40
      %s44 = sphi 0, %s43
      %s60 = sphi 0, %s44
      %s64 = sphi 0, %s64
      %s66 = sphi 0, %s64
      %s67 = sphi 0, %s66
      %s81 = sphi 0, %s67
      %s87 = sphi 0, %s89
      %s90 = sphi 0, %s87
      %s91 = sphi 0, %s90
      %s107 = sphi 0, %s91
    $region4: #{position_attention.16} parent=1 // loop_header_branch
      %12 = sbr.rel (%p10) target = $region8
    $region5: #{position_attention.16} parent=1 // loop_body
      %s14 = ssub.s32 %s9, 1
      %s15 = ssub.s32 %s9, 2
      %s16 = sadd.s32 %s9, 1
      %s18 = sadd.s32 %s17, 1
      %p21 = scmp.eq.s32.totalorder %s9, 1
      %p22 = scmp.ne.s32.totalorder %s17, %s19
      %p23 = scmp.eq.s32.totalorder %s9, 0
      %p24 = por %p22, %p23
      %p25 = scmp.ne.s32.totalorder %s17, %s19
      %p26 = scmp.eq.s32.totalorder %s14, 1
      %p27 = por %p25, %p26
      %p28 = scmp.ne.s32.totalorder %s19, %s20
      %p29 = scmp.eq.s32.totalorder %s14, 0
      %p30 = por %p28, %p29
      %p31 = scmp.ne.s32.totalorder %s19, %s20
      %p32 = scmp.eq.s32.totalorder %s15, 1
      %p33 = por %p31, %p32
      %p35 = scmp.ne.s32.totalorder %s20, %s34
      %p36 = scmp.eq.s32.totalorder %s15, 0
      %p37 = por %p35, %p36
      %s38 = ssub.s32 %s9, %s16
      %p39 = scmp.eq.s32.totalorder %s38, 0
      %s41 = sadd.s32 %s40, 1
      %s42 = scalar_select %p39, %s40, %s41
      %p45 = pneg %p39
      %p46 = scmp.eq.s32.totalorder %s9, 1
      %p47 = por %p45, %p46
      %p48 = scmp.ne.s32.totalorder %s40, %s43
      %p49 = scmp.eq.s32.totalorder %s9, 0
      %p50 = por %p48, %p49
      %p51 = scmp.ne.s32.totalorder %s40, %s43
      %p52 = scmp.eq.s32.totalorder %s14, 1
      %p53 = por %p51, %p52
      %p54 = scmp.ne.s32.totalorder %s43, %s44
      %p55 = scmp.eq.s32.totalorder %s14, 0
      %p56 = por %p54, %p55
      %p57 = scmp.ne.s32.totalorder %s43, %s44
      %p58 = scmp.eq.s32.totalorder %s15, 1
      %p59 = por %p57, %p58
      %p61 = scmp.ne.s32.totalorder %s44, %s60
      %p62 = scmp.eq.s32.totalorder %s15, 0
      %p63 = por %p61, %p62
      %s65 = sadd.s32 %s64, 1
      %p68 = scmp.eq.s32.totalorder %s9, 1
      %p69 = scmp.ne.s32.totalorder %s64, %s66
      %p70 = scmp.eq.s32.totalorder %s9, 0
      %p71 = por %p69, %p70
      %p72 = scmp.ne.s32.totalorder %s64, %s66
      %p73 = scmp.eq.s32.totalorder %s14, 1
      %p74 = por %p72, %p73
      %p75 = scmp.ne.s32.totalorder %s66, %s67
      %p76 = scmp.eq.s32.totalorder %s14, 0
      %p77 = por %p75, %p76
      %p78 = scmp.ne.s32.totalorder %s66, %s67
      %p79 = scmp.eq.s32.totalorder %s15, 1
      %p80 = por %p78, %p79
      %p82 = scmp.ne.s32.totalorder %s67, %s81
      %p83 = scmp.eq.s32.totalorder %s15, 0
      %p84 = por %p82, %p83
      %s85 = ssub.s32 %s9, %s16
      %p86 = scmp.eq.s32.totalorder %s85, 0
      %s88 = sadd.s32 %s87, 1
      %s89 = scalar_select %p86, %s87, %s88
      %p92 = pneg %p86
      %p93 = scmp.eq.s32.totalorder %s9, 1
      %p94 = por %p92, %p93
      %p95 = scmp.ne.s32.totalorder %s87, %s90
      %p96 = scmp.eq.s32.totalorder %s9, 0
      %p97 = por %p95, %p96
      %p98 = scmp.ne.s32.totalorder %s87, %s90
      %p99 = scmp.eq.s32.totalorder %s14, 1
      %p100 = por %p98, %p99
      %p101 = scmp.ne.s32.totalorder %s90, %s91
      %p102 = scmp.eq.s32.totalorder %s14, 0
      %p103 = por %p101, %p102
      %p104 = scmp.ne.s32.totalorder %s90, %s91
      %p105 = scmp.eq.s32.totalorder %s15, 1
      %p106 = por %p104, %p105
      %p108 = scmp.ne.s32.totalorder %s91, %s107
      %p109 = scmp.eq.s32.totalorder %s15, 0
      %p110 = por %p108, %p109
      %p111 = scmp.le.s32.totalorder 1, %s9
      %p112 = scmp.lt.s32.totalorder %s9, 3
      %p113 = pnand %p111, %p112
      %p114 = pneg %p113
      // Predicated region
      $region9: #{position_attention.16} parent=5 // pred_check
        _
      $region10: #{position_attention.16} parent=5 // pred_check_branch
        %116 = sbr.rel (%p113) target = $region12
      $region11: #{position_attention.16} parent=5 // pred_region
        %s117 = ssub.s32 %s9, 1
        // Predicated region
        $region13: #{position_attention.16} parent=11 // pred_check
          %p118 = pneg %p30
        $region14: #{position_attention.16} parent=11 // pred_check_branch
          %120 = sbr.rel (%p118) target = $region16
        $region15: #{position_attention.16} parent=11 // pred_region
          _
        $region16: #{position_attention.16} parent=11 // pred_fallthru
          _
        // Predicated region
        $region17: #{position_attention.16} parent=11 // pred_check
          %p121 = pneg %p77
        $region18: #{position_attention.16} parent=11 // pred_check_branch
          %123 = sbr.rel (%p121) target = $region20
        $region19: #{position_attention.16} parent=11 // pred_region
          _
        $region20: #{position_attention.16} parent=11 // pred_fallthru
          _
      $region12: #{position_attention.16} parent=5 // pred_fallthru
        _
      %p124 = scmp.lt.s32.totalorder %s9, 2
      // Predicated region
      $region21: #{position_attention.16} parent=5 // pred_check
        %p125 = pneg %p124
      $region22: #{position_attention.16} parent=5 // pred_check_branch
        %127 = sbr.rel (%p125) target = $region24
      $region23: #{position_attention.16} parent=5 // pred_region
        // Predicated region
        $region25: #{position_attention.16} parent=23 // pred_check
          %p128 = pneg %p50
        $region26: #{position_attention.16} parent=23 // pred_check_branch
          %130 = sbr.rel (%p128) target = $region28
        $region27: #{position_attention.16} parent=23 // pred_region
          %s131 = sand.u32 %s40, 1
          %s132 = sand.u32 %s40, 1
          %s133 = smul.addr %s132, 72
          %s134 = scalar_lea.vmem [#allocation2], %s133
          %s135 = smul.u32 2, %s9
          %s136 = smul.addr %s135, 4
          %s137 = scalar_lea.vmem %s1, %s136
          // Predicated region
          $region29: #{position_attention.16} parent=27 // pred_check
            _
          $region30: #{position_attention.16} parent=27 // pred_check_branch
            %139 = sbr.rel (0) target = $region32
          $region31: #{position_attention.16} parent=27 // pred_region
            // Predicated region
            $region33: #{position_attention.16} parent=31 // pred_check
              _
            $region34: #{position_attention.16} parent=31 // pred_check_branch
              %141 = sbr.rel (0) target = $region36
            $region35: #{position_attention.16} parent=31 // pred_region
              // Predicated region
              $region48: #{position_attention.16} parent=35 // pred_check
                _
              $region49: #{position_attention.16} parent=35 // pred_check_branch
                %173 = sbr.rel (0) target = $region51
              $region50: #{position_attention.16} parent=35 // pred_region
                loop: start=0, step=1, limit=1
                $region52: #{position_attention.16} parent=50 // loop_pre_header
                  _
                $region53: #{position_attention.16} parent=50 // loop_header
                  %s175 = sphi 0, %s179
                  %p176 = scmp.ge.s32.totalorder %s175, 1
                  %s180 = sphi %s137, %s137
                  %s181 = sphi %s134, %s134
                $region54: #{position_attention.16} parent=50 // loop_header_branch
                  %178 = sbr.rel (%p176) target = $region58
                $region55: #{position_attention.16} parent=50 // loop_body
                  %v182 = vld [vmem:[%s180] sm:$0xff]
                  %183 = vst [vmem:[%s181] sm:$0xff] %v182
                  %v184 = vld [vmem:[%s180 + $0x10] sm:$0xff]
                  %185 = vst [vmem:[%s181 + $0x8] sm:$0xff] %v184
                  %v186 = vld [vmem:[%s180 + $0x20] sm:$0xff]
                  %187 = vst [vmem:[%s181 + $0x10] sm:$0xff] %v186
                  %v188 = vld [vmem:[%s180 + $0x30] sm:$0xff]
                  %189 = vst [vmem:[%s181 + $0x18] sm:$0xff] %v188
                  %v190 = vld [vmem:[%s180 + $0x40] sm:$0xff]
                  %191 = vst [vmem:[%s181 + $0x20] sm:$0xff] %v190
                  %v192 = vld [vmem:[%s180 + $0x50] sm:$0xff]
                  %193 = vst [vmem:[%s181 + $0x28] sm:$0xff] %v192
                  %v194 = vld [vmem:[%s180 + $0x60] sm:$0xff]
                  %195 = vst [vmem:[%s181 + $0x30] sm:$0xff] %v194
                  %v196 = vld [vmem:[%s180 + $0x70] sm:$0xff]
                  %197 = vst [vmem:[%s181 + $0x38] sm:$0xff] %v196
                  %v198 = vld [vmem:[%s180 + $0x80] sm:$0xff]
                  %199 = vst [vmem:[%s181 + $0x40] sm:$0xff] %v198
                $region56: #{position_attention.16} parent=50 // loop_footer
                  %s179 = sadd.s32 1, %s175
                $region57: #{position_attention.16} parent=50 // loop_footer_branch
                  %174 = sbr.rel target = $region53
                $region58: #{position_attention.16} parent=50 // loop_exit
                  _
              $region51: #{position_attention.16} parent=35 // pred_fallthru
                _
              // Predicated region
              $region59: #{position_attention.16} parent=35 // pred_check
                _
              $region60: #{position_attention.16} parent=35 // pred_check_branch
                %201 = sbr.rel target = $region62
              $region61: #{position_attention.16} parent=35 // pred_region
                _
              $region62: #{position_attention.16} parent=35 // pred_fallthru
                _
            $region36: #{position_attention.16} parent=31 // pred_fallthru
              _
            // Predicated region
            $region37: #{position_attention.16} parent=31 // pred_check
              _
            $region38: #{position_attention.16} parent=31 // pred_check_branch
              %143 = sbr.rel target = $region40
            $region39: #{position_attention.16} parent=31 // pred_region
              %s145 = ssub.s32 256, 1
              loop: start=0, step=1, limit=1
              $region41: #{position_attention.16} parent=39 // loop_pre_header
                _
              $region42: #{position_attention.16} parent=39 // loop_header
                %s147 = sphi 0, %s151
                %p148 = scmp.ge.s32.totalorder %s147, 1
                %s152 = sphi %s137, %s137
                %s153 = sphi %s134, %s134
              $region43: #{position_attention.16} parent=39 // loop_header_branch
                %150 = sbr.rel (%p148) target = $region47
              $region44: #{position_attention.16} parent=39 // loop_body
                %v154 = vld [vmem:[%s152] sm:%s145]
                %155 = vst [vmem:[%s153] sm:%s145] %v154
                %v156 = vld [vmem:[%s152 + $0x10] sm:%s145]
                %157 = vst [vmem:[%s153 + $0x8] sm:%s145] %v156
                %v158 = vld [vmem:[%s152 + $0x20] sm:%s145]
                %159 = vst [vmem:[%s153 + $0x10] sm:%s145] %v158
                %v160 = vld [vmem:[%s152 + $0x30] sm:%s145]
                %161 = vst [vmem:[%s153 + $0x18] sm:%s145] %v160
                %v162 = vld [vmem:[%s152 + $0x40] sm:%s145]
                %163 = vst [vmem:[%s153 + $0x20] sm:%s145] %v162
                %v164 = vld [vmem:[%s152 + $0x50] sm:%s145]
                %165 = vst [vmem:[%s153 + $0x28] sm:%s145] %v164
                %v166 = vld [vmem:[%s152 + $0x60] sm:%s145]
                %167 = vst [vmem:[%s153 + $0x30] sm:%s145] %v166
                %v168 = vld [vmem:[%s152 + $0x70] sm:%s145]
                %169 = vst [vmem:[%s153 + $0x38] sm:%s145] %v168
                %v170 = vld [vmem:[%s152 + $0x80] sm:%s145]
                %171 = vst [vmem:[%s153 + $0x40] sm:%s145] %v170
              $region45: #{position_attention.16} parent=39 // loop_footer
                %s151 = sadd.s32 1, %s147
              $region46: #{position_attention.16} parent=39 // loop_footer_branch
                %146 = sbr.rel target = $region42
              $region47: #{position_attention.16} parent=39 // loop_exit
                _
            $region40: #{position_attention.16} parent=31 // pred_fallthru
              _
          $region32: #{position_attention.16} parent=27 // pred_fallthru
            _
          %202 = vnop
        $region28: #{position_attention.16} parent=23 // pred_fallthru
          _
      $region24: #{position_attention.16} parent=5 // pred_fallthru
        _
      %p203 = scmp.le.s32.totalorder 1, %s9
      %p204 = scmp.lt.s32.totalorder %s9, 3
      %p205 = pnand %p203, %p204
      %p206 = pneg %p205
      // Predicated region
      $region63: #{position_attention.16} parent=5 // pred_check
        _
      $region64: #{position_attention.16} parent=5 // pred_check_branch
        %208 = sbr.rel (%p205) target = $region66
      $region65: #{position_attention.16} parent=5 // pred_region
        %s209 = ssub.s32 %s9, 1
        %s210 = sand.u32 %s43, 1
        %s211 = sand.u32 %s43, 1
        %s212 = smul.addr %s211, 72
        %s213 = scalar_lea.vmem [#allocation2], %s212
        // Predicated region
        $region67: #{position_attention.16} parent=65 // pred_check
          %p214 = pneg %p56
        $region68: #{position_attention.16} parent=65 // pred_check_branch
          %216 = sbr.rel (%p214) target = $region70
        $region69: #{position_attention.16} parent=65 // pred_region
          _
        $region70: #{position_attention.16} parent=65 // pred_fallthru
          _
        %p217 = pneg %p30
        %p218 = pneg %p27
        %s219 = sand.u32 %s43, 1
        %s220 = sand.u32 %s43, 1
        %s221 = smul.addr %s220, 72
        %s222 = scalar_lea.vmem [#allocation2], %s221
        %p223 = pneg %p56
        %p224 = pneg %p53
        %p225 = pneg %p77
        %p226 = pneg %p74
        %p227 = pneg %p103
        %p228 = pneg %p100
        %s229 = sand.u32 %s90, 1
        %s230 = sand.u32 %s90, 1
        %s231 = smul.addr %s230, 32
        %s232 = scalar_lea.vmem [#allocation3], %s231
        %s233 = smul.u32 2, %s14
        %s234 = smul.u32 2, %s14
        %v236 = vld [vmem:[%s0] sm:$0xf]
        %v237 = vld [vmem:[%s0 + $0x4] sm:$0xf]
        %v238 = vld [vmem:[%s0 + $0x8] sm:$0xf]
        %v239 = vld [vmem:[%s0 + $0xc] sm:$0xf]
        %v240 = vld [vmem:[%s213] sm:$0xff]
        %v241 = vld [vmem:[%s213 + $0x8] sm:$0xff]
        %v242 = vld [vmem:[%s213 + $0x10] sm:$0xff]
        %v243 = vld [vmem:[%s213 + $0x18] sm:$0xff]
        %v244 = vld [vmem:[%s213 + $0x20] sm:$0xff]
        %v245 = vld [vmem:[%s213 + $0x28] sm:$0xff]
        %v246 = vld [vmem:[%s213 + $0x30] sm:$0xff]
        %v247 = vld [vmem:[%s213 + $0x38] sm:$0xff]
        %v248 = vld [vmem:[%s213 + $0x40] sm:$0xff]
        %v249 = vld [vmem:[%s2] sm:$0xff]
        %v250 = vld [vmem:[%s2 + $0x8] sm:$0xff]
        %v251 = vld [vmem:[%s2 + $0x10] sm:$0xff]
        %v252 = vld [vmem:[%s2 + $0x18] sm:$0xff]
        %254 = vset.pattern.permute.xlu0 0
        %255 = vperm.xlu0 %254, %v249
        %v256 = vpop.permute.xlu0 %255
        %259 = vset.pattern.permute.xlu0 0
        %260 = vperm.xlu0 %259, %v250
        %v261 = vpop.permute.xlu0 %260
        %264 = vset.pattern.permute.xlu0 0
        %265 = vperm.xlu0 %264, %v251
        %v266 = vpop.permute.xlu0 %265
        %269 = vset.pattern.permute.xlu0 0
        %270 = vperm.xlu0 %269, %v252
        %v271 = vpop.permute.xlu0 %270
        %v277 = vunpack.c.l.b16 %v236
        %v278 = vunpack.c.l.b16 %v237
        %v279 = vunpack.c.l.b16 %v238
        %v280 = vunpack.c.l.b16 %v239
        %v281 = vpack.c.b16 %v278, %v277
        %v282 = vpack.c.b16 %v280, %v279
        %v292 = vunpack.c.l.b16 %v240
        %v293 = vunpack.c.h.b16 %v240
        %v294 = vunpack.c.l.b16 %v241
        %v295 = vunpack.c.h.b16 %v241
        %v296 = vunpack.c.l.b16 %v242
        %v297 = vunpack.c.h.b16 %v242
        %v298 = vunpack.c.l.b16 %v243
        %v299 = vunpack.c.h.b16 %v243
        %v300 = vunpack.c.l.b16 %v244
        %v301 = vunpack.c.h.b16 %v244
        %v302 = vunpack.c.l.b16 %v245
        %v303 = vunpack.c.h.b16 %v245
        %v304 = vunpack.c.l.b16 %v246
        %v305 = vunpack.c.h.b16 %v246
        %v306 = vunpack.c.l.b16 %v247
        %v307 = vunpack.c.h.b16 %v247
        %v308 = vunpack.c.l.b16 %v248
        %v309 = vunpack.c.h.b16 %v248
        %v310 = vpack.c.b16 %v294, %v292
        %v311 = vpack.c.b16 %v295, %v293
        %v312 = vpack.c.b16 %v298, %v296
        %v313 = vpack.c.b16 %v299, %v297
        %v314 = vpack.c.b16 %v302, %v300
        %v315 = vpack.c.b16 %v303, %v301
        %v316 = vpack.c.b16 %v306, %v304
        %v317 = vpack.c.b16 %v307, %v305
        %v318 = vpack.c.b16 %v308, %v308
        %v319 = vpack.c.b16 %v309, %v309
        %vm328 = vcmask 588800
        %v330 = vsel %vm328, %v281, 0
        %v333 = vsel %vm328, %v282, 0
        %vm335 = vcmask 1043456
        %v337 = vsel %vm335, %v318, 0
        %v340 = vsel %vm335, %v319, 0
        %342 = vmatprep.subr.bf16.mxu0 0
        %343 = vmatpush1.bf16.msra.mxu0 0
        %344 = vmatprep.subr.bf16.mxu0 0
        %345 = vmatpush1.bf16.msra.mxu0 0
        %346 = vmatprep.subr.bf16.mxu0 0
        %347 = vmatpush1.bf16.msra.mxu0 0
        %348 = vmatprep.subr.bf16.mxu0 %v340
        %349 = vmatpush1.bf16.msra.mxu0 %v337
        %350 = vmatprep.subr.bf16.mxu0 %v317
        %351 = vmatpush1.bf16.msra.mxu0 %v316
        %352 = vmatprep.subr.bf16.mxu0 %v315
        %353 = vmatpush1.bf16.msra.mxu0 %v314
        %354 = vmatprep.subr.bf16.mxu0 %v313
        %355 = vmatpush1.bf16.msra.mxu0 %v312
        %356 = vmatprep.subr.bf16.mxu0 %v311
        %357 = vmatpush1.bf16.msra.mxu0 %v310
        %358 = vmatprep.subr.bf16.mxu0 0
        %359 = vmatpush2.bf16.msra.mxu0 0
        %360 = vmatprep.subr.bf16.mxu0 0
        %361 = vmatpush2.bf16.msra.mxu0 0
        %362 = vmatprep.subr.bf16.mxu0 0
        %363 = vmatpush2.bf16.msra.mxu0 0
        %364 = vmatprep.subr.bf16.mxu0 0
        %365 = vmatpush2.bf16.msra.mxu0 0
        %366 = vmatprep.subr.bf16.mxu0 0
        %367 = vmatpush2.bf16.msra.mxu0 0
        %368 = vmatprep.subr.bf16.mxu0 0
        %369 = vmatpush2.bf16.msra.mxu0 0
        %370 = vmatprep.subr.bf16.mxu0 0
        %371 = vmatpush2.bf16.msra.mxu0 0
        %372 = vmatprep.subr.bf16.mxu0 0
        %373 = vmatpush2.bf16.msra.mxu0 0
        %374 = vmatprep.mubr.bf16.mxu0 0
        %375 = vmatmul.mubr.bf16.gmra.mxu0 %v330
        %v376 = vpop.f32.mrf.mxu0
        %v377 = vadd.f32 %v256, %v376
        %v378 = vpop.f32.mrf.mxu0
        %v379 = vadd.f32 %v256, %v378
        %v380 = vpop.f32.mrf.mxu0
        %v381 = vadd.f32 %v261, %v380
        %v382 = vpop.f32.mrf.mxu0
        %v383 = vadd.f32 %v261, %v382
        %384 = vmatprep.mubr.bf16.mxu0 0
        %385 = vmatmul.mubr.bf16.gmra.mxu0 %v333
        %v386 = vpop.f32.mrf.mxu0
        %v387 = vadd.f32 %v266, %v386
        %v388 = vpop.f32.mrf.mxu0
        %v389 = vadd.f32 %v266, %v388
        %v390 = vpop.f32.mrf.mxu0
        %v391 = vadd.f32 %v271, %v390
        %v392 = vpop.f32.mrf.mxu0
        %v393 = vadd.f32 %v271, %v392
        %394 = vdwg.mxu0
        %v395 = vmax.f32 %v377, 0.0
        %v396 = vmax.f32 %v379, 0.0
        %v397 = vmax.f32 %v381, 0.0
        %v398 = vmax.f32 %v383, 0.0
        %v399 = vmax.f32 %v387, 0.0
        %v400 = vmax.f32 %v389, 0.0
        %v401 = vmax.f32 %v391, 0.0
        %v402 = vmax.f32 %v393, 0.0
        %v403 = vpack.c.bf16 %v397, %v395
        %v404 = vpack.c.bf16 %v398, %v396
        %v405 = vpack.c.bf16 %v401, %v399
        %v406 = vpack.c.bf16 %v402, %v400
        %v411 = vunpack.c.l.b16 %v403
        %v412 = vunpack.c.l.b16 %v404
        %v413 = vunpack.c.h.b16 %v403
        %v414 = vunpack.c.h.b16 %v404
        %v415 = vunpack.c.l.b16 %v405
        %v416 = vunpack.c.l.b16 %v406
        %v417 = vunpack.c.h.b16 %v405
        %v418 = vunpack.c.h.b16 %v406
        %v419 = vpack.c.b16 %v412, %v411
        %v420 = vpack.c.b16 %v414, %v413
        %v421 = vpack.c.b16 %v416, %v415
        %v422 = vpack.c.b16 %v418, %v417
        %427 = vst [vmem:[%s232] sm:$0xff] %v419
        %428 = vst [vmem:[%s232 + $0x8] sm:$0xff] %v420
        %429 = vst [vmem:[%s232 + $0x10] sm:$0xff] %v421
        %430 = vst [vmem:[%s232 + $0x18] sm:$0xff] %v422
        %s431 = sand.u32 %s90, 1
        %s432 = sand.u32 %s90, 1
        %s433 = smul.addr %s432, 32
        %s434 = scalar_lea.vmem [#allocation3], %s433
        // Predicated region
        $region71: #{position_attention.16} parent=65 // pred_check
          %p435 = pneg %p100
        $region72: #{position_attention.16} parent=65 // pred_check_branch
          %437 = sbr.rel (%p435) target = $region74
        $region73: #{position_attention.16} parent=65 // pred_region
          %s438 = smul.u32 2, %s14
          %s439 = smul.addr %s438, 4
          %s440 = scalar_lea.vmem %s3, %s439
          // Predicated region
          $region75: #{position_attention.16} parent=73 // pred_check
            _
          $region76: #{position_attention.16} parent=73 // pred_check_branch
            %442 = sbr.rel (0) target = $region78
          $region77: #{position_attention.16} parent=73 // pred_region
            // Predicated region
            $region79: #{position_attention.16} parent=77 // pred_check
              _
            $region80: #{position_attention.16} parent=77 // pred_check_branch
              %444 = sbr.rel (0) target = $region82
            $region81: #{position_attention.16} parent=77 // pred_region
              // Predicated region
              $region94: #{position_attention.16} parent=81 // pred_check
                _
              $region95: #{position_attention.16} parent=81 // pred_check_branch
                %466 = sbr.rel (0) target = $region97
              $region96: #{position_attention.16} parent=81 // pred_region
                loop: start=0, step=1, limit=1
                $region98: #{position_attention.16} parent=96 // loop_pre_header
                  _
                $region99: #{position_attention.16} parent=96 // loop_header
                  %s468 = sphi 0, %s472
                  %p469 = scmp.ge.s32.totalorder %s468, 1
                  %s473 = sphi %s434, %s434
                  %s474 = sphi %s440, %s440
                $region100: #{position_attention.16} parent=96 // loop_header_branch
                  %471 = sbr.rel (%p469) target = $region104
                $region101: #{position_attention.16} parent=96 // loop_body
                  %v475 = vld [vmem:[%s473] sm:$0xff]
                  %476 = vst [vmem:[%s474] sm:$0xff] %v475
                  %v477 = vld [vmem:[%s473 + $0x8] sm:$0xff]
                  %478 = vst [vmem:[%s474 + $0x10] sm:$0xff] %v477
                  %v479 = vld [vmem:[%s473 + $0x10] sm:$0xff]
                  %480 = vst [vmem:[%s474 + $0x20] sm:$0xff] %v479
                  %v481 = vld [vmem:[%s473 + $0x18] sm:$0xff]
                  %482 = vst [vmem:[%s474 + $0x30] sm:$0xff] %v481
                $region102: #{position_attention.16} parent=96 // loop_footer
                  %s472 = sadd.s32 1, %s468
                $region103: #{position_attention.16} parent=96 // loop_footer_branch
                  %467 = sbr.rel target = $region99
                $region104: #{position_attention.16} parent=96 // loop_exit
                  _
              $region97: #{position_attention.16} parent=81 // pred_fallthru
                _
              // Predicated region
              $region105: #{position_attention.16} parent=81 // pred_check
                _
              $region106: #{position_attention.16} parent=81 // pred_check_branch
                %484 = sbr.rel target = $region108
              $region107: #{position_attention.16} parent=81 // pred_region
                _
              $region108: #{position_attention.16} parent=81 // pred_fallthru
                _
            $region82: #{position_attention.16} parent=77 // pred_fallthru
              _
            // Predicated region
            $region83: #{position_attention.16} parent=77 // pred_check
              _
            $region84: #{position_attention.16} parent=77 // pred_check_branch
              %446 = sbr.rel target = $region86
            $region85: #{position_attention.16} parent=77 // pred_region
              %s448 = ssub.s32 256, 1
              loop: start=0, step=1, limit=1
              $region87: #{position_attention.16} parent=85 // loop_pre_header
                _
              $region88: #{position_attention.16} parent=85 // loop_header
                %s450 = sphi 0, %s454
                %p451 = scmp.ge.s32.totalorder %s450, 1
                %s455 = sphi %s434, %s434
                %s456 = sphi %s440, %s440
              $region89: #{position_attention.16} parent=85 // loop_header_branch
                %453 = sbr.rel (%p451) target = $region93
              $region90: #{position_attention.16} parent=85 // loop_body
                %v457 = vld [vmem:[%s455] sm:%s448]
                %458 = vst [vmem:[%s456] sm:%s448] %v457
                %v459 = vld [vmem:[%s455 + $0x8] sm:%s448]
                %460 = vst [vmem:[%s456 + $0x10] sm:%s448] %v459
                %v461 = vld [vmem:[%s455 + $0x10] sm:%s448]
                %462 = vst [vmem:[%s456 + $0x20] sm:%s448] %v461
                %v463 = vld [vmem:[%s455 + $0x18] sm:%s448]
                %464 = vst [vmem:[%s456 + $0x30] sm:%s448] %v463
              $region91: #{position_attention.16} parent=85 // loop_footer
                %s454 = sadd.s32 1, %s450
              $region92: #{position_attention.16} parent=85 // loop_footer_branch
                %449 = sbr.rel target = $region88
              $region93: #{position_attention.16} parent=85 // loop_exit
                _
            $region86: #{position_attention.16} parent=77 // pred_fallthru
              _
          $region78: #{position_attention.16} parent=73 // pred_fallthru
            _
          %485 = vnop
        $region74: #{position_attention.16} parent=65 // pred_fallthru
          _
      $region66: #{position_attention.16} parent=5 // pred_fallthru
        _
      %p486 = scmp.le.s32.totalorder 2, %s9
      // Predicated region
      $region109: #{position_attention.16} parent=5 // pred_check
        %p487 = pneg %p486
      $region110: #{position_attention.16} parent=5 // pred_check_branch
        %489 = sbr.rel (%p487) target = $region112
      $region111: #{position_attention.16} parent=5 // pred_region
        %s490 = ssub.s32 %s9, 2
        // Predicated region
        $region113: #{position_attention.16} parent=111 // pred_check
          %p491 = pneg %p106
        $region114: #{position_attention.16} parent=111 // pred_check_branch
          %493 = sbr.rel (%p491) target = $region116
        $region115: #{position_attention.16} parent=111 // pred_region
          %s494 = sand.u32 %s91, 1
          %s495 = sand.u32 %s91, 1
          %s496 = smul.addr %s495, 32
          %s497 = scalar_lea.vmem [#allocation3], %s496
        $region116: #{position_attention.16} parent=111 // pred_fallthru
          _
      $region112: #{position_attention.16} parent=5 // pred_fallthru
        _
    $region6: #{position_attention.16} parent=1 // loop_footer
      %s13 = sadd.s32 1, %s9
    $region7: #{position_attention.16} parent=1 // loop_footer_branch
      %8 = sbr.rel target = $region3
    $region8: #{position_attention.16} parent=1 // loop_exit
      _

// kernel: position_attention.17
$region0: #{position_attention.17}
  #allocation0 [shape = 'u32[]', space=smem, size = 0x4, offset = 0x4, fixed_abs, tag = 'smem constant byte address 0x4 - core index']
  #allocation1 [shape = 'u32[144,128]{1,0:T(1,128)}', space=vmem, size = 0x12000, scoped, tag = 'internal scratch']
  %s0 = inlined_call_operand.vmem [shape: bf16[2,8,32], index: 0, kind: input, shape index: {}]
  %s1 = inlined_call_operand.vmem [shape: bf16[2,32,256], index: 1, kind: input, shape index: {}]
  %s2 = inlined_call_operand.vmem [shape: bf16[2,256,32], index: 2, kind: input, shape index: {}]
  %s3 = inlined_call_operand.hbm [shape: f32[2,8,32], index: 3, kind: output, shape index: {0}]
  %s4 = inlined_call_operand.vmem [shape: f32[2,8,256], index: 4, kind: output, shape index: {1}]
  %5 = xla_tuple %s3, %s4
  %s6 = sld [smem:[#allocation0]]
  $region53: #{position_attention.17} parent=0
    _
  %s8 = ssub.s32 1, %s6
  %s9 = scalar_select 0, %s8, %s6
  $region1: #{position_attention.17} parent=0
    #allocation2 [shape = 'u8[8192]{0}', space=vmem, size = 0x2000, scoped, tag = 'output window, operand 0']
    #allocation3 [shape = 's32[2]{0}', space=sflag, size = 0x8, scoped, tag = 'scoped memory for position_attention.17']
    %10 = vsyncpa [#allocation3], 0
    %s11 = scalar_lea.sflag [#allocation3], 1
    %12 = vsyncpa %s11, 0
    loop: start=0, step=1, limit=4
    $region2: #{position_attention.17} parent=1 // loop_pre_header
      _
    $region3: #{position_attention.17} parent=1 // loop_header
      %s14 = sphi 0, %s18
      %p15 = scmp.ge.s32.totalorder %s14, 4
      %s24 = sphi 0, %s26
      %s27 = sphi 0, %s24
      %s28 = sphi 0, %s27
      %s44 = sphi 0, %s28
      %s50 = sphi 0, %s52
      %s53 = sphi 0, %s50
      %s54 = sphi 0, %s53
      %s70 = sphi 0, %s54
      %s76 = sphi 0, %s78
      %s79 = sphi 0, %s76
      %s80 = sphi 0, %s79
      %s96 = sphi 0, %s80
      %s102 = sphi 0, %s104
      %s105 = sphi 0, %s102
      %s106 = sphi 0, %s105
      %s122 = sphi 0, %s106
      %s128 = sphi 0, %s130
      %s131 = sphi 0, %s128
      %s132 = sphi 0, %s131
      %s148 = sphi 0, %s132
    $region4: #{position_attention.17} parent=1 // loop_header_branch
      %17 = sbr.rel (%p15) target = $region8
    $region5: #{position_attention.17} parent=1 // loop_body
      %s19 = ssub.s32 %s14, 1
      %s20 = ssub.s32 %s14, 2
      %s21 = sadd.s32 %s14, 1
      %s22 = ssub.s32 %s14, %s21
      %p23 = scmp.eq.s32.totalorder %s22, 0
      %s25 = sadd.s32 %s24, 1
      %s26 = scalar_select %p23, %s24, %s25
      %p29 = pneg %p23
      %p30 = scmp.eq.s32.totalorder %s14, 1
      %p31 = por %p29, %p30
      %p32 = scmp.ne.s32.totalorder %s24, %s27
      %p33 = scmp.eq.s32.totalorder %s14, 0
      %p34 = por %p32, %p33
      %p35 = scmp.ne.s32.totalorder %s24, %s27
      %p36 = scmp.eq.s32.totalorder %s19, 1
      %p37 = por %p35, %p36
      %p38 = scmp.ne.s32.totalorder %s27, %s28
      %p39 = scmp.eq.s32.totalorder %s19, 0
      %p40 = por %p38, %p39
      %p41 = scmp.ne.s32.totalorder %s27, %s28
      %p42 = scmp.eq.s32.totalorder %s20, 1
      %p43 = por %p41, %p42
      %p45 = scmp.ne.s32.totalorder %s28, %s44
      %p46 = scmp.eq.s32.totalorder %s20, 0
      %p47 = por %p45, %p46
      %s48 = ssub.s32 %s14, %s21
      %p49 = scmp.eq.s32.totalorder %s48, 0
      %s51 = sadd.s32 %s50, 1
      %s52 = scalar_select %p49, %s50, %s51
      %p55 = pneg %p49
      %p56 = scmp.eq.s32.totalorder %s14, 1
      %p57 = por %p55, %p56
      %p58 = scmp.ne.s32.totalorder %s50, %s53
      %p59 = scmp.eq.s32.totalorder %s14, 0
      %p60 = por %p58, %p59
      %p61 = scmp.ne.s32.totalorder %s50, %s53
      %p62 = scmp.eq.s32.totalorder %s19, 1
      %p63 = por %p61, %p62
      %p64 = scmp.ne.s32.totalorder %s53, %s54
      %p65 = scmp.eq.s32.totalorder %s19, 0
      %p66 = por %p64, %p65
      %p67 = scmp.ne.s32.totalorder %s53, %s54
      %p68 = scmp.eq.s32.totalorder %s20, 1
      %p69 = por %p67, %p68
      %p71 = scmp.ne.s32.totalorder %s54, %s70
      %p72 = scmp.eq.s32.totalorder %s20, 0
      %p73 = por %p71, %p72
      %s74 = ssub.s32 %s14, %s21
      %p75 = scmp.eq.s32.totalorder %s74, 0
      %s77 = sadd.s32 %s76, 1
      %s78 = scalar_select %p75, %s76, %s77
      %p81 = pneg %p75
      %p82 = scmp.eq.s32.totalorder %s14, 1
      %p83 = por %p81, %p82
      %p84 = scmp.ne.s32.totalorder %s76, %s79
      %p85 = scmp.eq.s32.totalorder %s14, 0
      %p86 = por %p84, %p85
      %p87 = scmp.ne.s32.totalorder %s76, %s79
      %p88 = scmp.eq.s32.totalorder %s19, 1
      %p89 = por %p87, %p88
      %p90 = scmp.ne.s32.totalorder %s79, %s80
      %p91 = scmp.eq.s32.totalorder %s19, 0
      %p92 = por %p90, %p91
      %p93 = scmp.ne.s32.totalorder %s79, %s80
      %p94 = scmp.eq.s32.totalorder %s20, 1
      %p95 = por %p93, %p94
      %p97 = scmp.ne.s32.totalorder %s80, %s96
      %p98 = scmp.eq.s32.totalorder %s20, 0
      %p99 = por %p97, %p98
      %s100 = ssub.s32 %s14, %s21
      %p101 = scmp.eq.s32.totalorder %s100, 0
      %s103 = sadd.s32 %s102, 1
      %s104 = scalar_select %p101, %s102, %s103
      %p107 = pneg %p101
      %p108 = scmp.eq.s32.totalorder %s14, 1
      %p109 = por %p107, %p108
      %p110 = scmp.ne.s32.totalorder %s102, %s105
      %p111 = scmp.eq.s32.totalorder %s14, 0
      %p112 = por %p110, %p111
      %p113 = scmp.ne.s32.totalorder %s102, %s105
      %p114 = scmp.eq.s32.totalorder %s19, 1
      %p115 = por %p113, %p114
      %p116 = scmp.ne.s32.totalorder %s105, %s106
      %p117 = scmp.eq.s32.totalorder %s19, 0
      %p118 = por %p116, %p117
      %p119 = scmp.ne.s32.totalorder %s105, %s106
      %p120 = scmp.eq.s32.totalorder %s20, 1
      %p121 = por %p119, %p120
      %p123 = scmp.ne.s32.totalorder %s106, %s122
      %p124 = scmp.eq.s32.totalorder %s20, 0
      %p125 = por %p123, %p124
      %s126 = ssub.s32 %s14, %s21
      %p127 = scmp.eq.s32.totalorder %s126, 0
      %s129 = sadd.s32 %s128, 1
      %s130 = scalar_select %p127, %s128, %s129
      %p133 = pneg %p127
      %p134 = scmp.eq.s32.totalorder %s14, 1
      %p135 = por %p133, %p134
      %p136 = scmp.ne.s32.totalorder %s128, %s131
      %p137 = scmp.eq.s32.totalorder %s14, 0
      %p138 = por %p136, %p137
      %p139 = scmp.ne.s32.totalorder %s128, %s131
      %p140 = scmp.eq.s32.totalorder %s19, 1
      %p141 = por %p139, %p140
      %p142 = scmp.ne.s32.totalorder %s131, %s132
      %p143 = scmp.eq.s32.totalorder %s19, 0
      %p144 = por %p142, %p143
      %p145 = scmp.ne.s32.totalorder %s131, %s132
      %p146 = scmp.eq.s32.totalorder %s20, 1
      %p147 = por %p145, %p146
      %p149 = scmp.ne.s32.totalorder %s132, %s148
      %p150 = scmp.eq.s32.totalorder %s20, 0
      %p151 = por %p149, %p150
      %p152 = scmp.le.s32.totalorder 1, %s14
      %p153 = scmp.lt.s32.totalorder %s14, 3
      %p154 = pnand %p152, %p153
      %p155 = pneg %p154
      // Predicated region
      $region9: #{position_attention.17} parent=5 // pred_check
        _
      $region10: #{position_attention.17} parent=5 // pred_check_branch
        %157 = sbr.rel (%p154) target = $region12
      $region11: #{position_attention.17} parent=5 // pred_region
        %s158 = ssub.s32 %s14, 1
      $region12: #{position_attention.17} parent=5 // pred_fallthru
        _
      %p159 = scmp.lt.s32.totalorder %s14, 2
      // Predicated region
      $region13: #{position_attention.17} parent=5 // pred_check
        %p160 = pneg %p159
      $region14: #{position_attention.17} parent=5 // pred_check_branch
        %162 = sbr.rel (%p160) target = $region16
      $region15: #{position_attention.17} parent=5 // pred_region
        // Predicated region
        $region17: #{position_attention.17} parent=15 // pred_check
          %p163 = pneg %p34
        $region18: #{position_attention.17} parent=15 // pred_check_branch
          %165 = sbr.rel (%p163) target = $region20
        $region19: #{position_attention.17} parent=15 // pred_region
          %p166 = scmp.lt.s32.totalorder %s14, 1
          %s167 = scalar_select %p166, %s14, 1
          %s168 = smul.addr %s167, 4
          %s169 = scalar_lea.vmem %s0, %s168
        $region20: #{position_attention.17} parent=15 // pred_fallthru
          _
        // Predicated region
        $region21: #{position_attention.17} parent=15 // pred_check
          %p170 = pneg %p60
        $region22: #{position_attention.17} parent=15 // pred_check_branch
          %172 = sbr.rel (%p170) target = $region24
        $region23: #{position_attention.17} parent=15 // pred_region
          %p173 = scmp.lt.s32.totalorder %s14, 1
          %s174 = scalar_select %p173, %s14, 1
          %s175 = smul.addr %s174, 8
          %s176 = smul.addr %s175, 4
          %s177 = scalar_lea.vmem %s1, %s176
        $region24: #{position_attention.17} parent=15 // pred_fallthru
          _
        // Predicated region
        $region25: #{position_attention.17} parent=15 // pred_check
          %p178 = pneg %p86
        $region26: #{position_attention.17} parent=15 // pred_check_branch
          %180 = sbr.rel (%p178) target = $region28
        $region27: #{position_attention.17} parent=15 // pred_region
          %p181 = scmp.lt.s32.totalorder %s14, 1
          %s182 = scalar_select %p181, %s14, 1
          %s183 = smul.addr %s182, 32
          %s184 = smul.addr %s183, 4
          %s185 = scalar_lea.vmem %s2, %s184
        $region28: #{position_attention.17} parent=15 // pred_fallthru
          _
      $region16: #{position_attention.17} parent=5 // pred_fallthru
        _
      %p186 = scmp.le.s32.totalorder 1, %s14
      %p187 = scmp.lt.s32.totalorder %s14, 3
      %p188 = pnand %p186, %p187
      %p189 = pneg %p188
      // Predicated region
      $region29: #{position_attention.17} parent=5 // pred_check
        _
      $region30: #{position_attention.17} parent=5 // pred_check_branch
        %191 = sbr.rel (%p188) target = $region32
      $region31: #{position_attention.17} parent=5 // pred_region
        %s192 = ssub.s32 %s14, 1
        %p193 = scmp.lt.s32.totalorder %s19, 1
        %s194 = scalar_select %p193, %s19, 1
        %s195 = smul.addr %s194, 4
        %s196 = scalar_lea.vmem %s0, %s195
        %p197 = pneg %p40
        %p198 = pneg %p37
        %p199 = scmp.lt.s32.totalorder %s19, 1
        %s200 = scalar_select %p199, %s19, 1
        %s201 = smul.addr %s200, 8
        %s202 = smul.addr %s201, 4
        %s203 = scalar_lea.vmem %s1, %s202
        %p204 = pneg %p66
        %p205 = pneg %p63
        %p206 = scmp.lt.s32.totalorder %s19, 1
        %s207 = scalar_select %p206, %s19, 1
        %s208 = smul.addr %s207, 32
        %s209 = smul.addr %s208, 4
        %s210 = scalar_lea.vmem %s2, %s209
        %p211 = pneg %p92
        %p212 = pneg %p89
        %p213 = pneg %p118
        %p214 = pneg %p115
        %s215 = sand.u32 %s105, 1
        %s216 = scalar_lea.sflag [#allocation3], %s215
        %s217 = sand.u32 %s105, 1
        %s218 = smul.addr %s217, 8
        %s219 = scalar_lea.vmem [#allocation2], %s218
        %p220 = pneg %p144
        %p221 = pneg %p141
        %p222 = scmp.lt.s32.totalorder %s19, 1
        %s223 = scalar_select %p222, %s19, 1
        %s224 = smul.addr %s223, 2
        %s225 = smul.addr %s224, 8
        %s226 = scalar_lea.vmem %s4, %s225
        %p227 = scmp.lt.s32.totalorder %s19, 1
        %s228 = scalar_select %p227, %s19, 1
        %s229 = smul.addr %s228, 4
        %s230 = scalar_lea.vmem %s0, %s229
        %p231 = scmp.lt.s32.totalorder %s19, 1
        %s232 = scalar_select %p231, %s19, 1
        %s233 = smul.addr %s232, 8
        %s234 = smul.addr %s233, 4
        %s235 = scalar_lea.vmem %s1, %s234
        %p236 = scmp.lt.s32.totalorder %s19, 1
        %s237 = scalar_select %p236, %s19, 1
        %s238 = smul.addr %s237, 32
        %s239 = smul.addr %s238, 4
        %s240 = scalar_lea.vmem %s2, %s239
        %p241 = scmp.lt.s32.totalorder %s19, 1
        %s242 = scalar_select %p241, %s19, 1
        %s243 = smul.addr %s242, 2
        %s244 = smul.addr %s243, 8
        %s245 = scalar_lea.vmem %s4, %s244
        %v247 = vld [vmem:[%s230] sm:$0xf]
        %v248 = vld [vmem:[%s235] sm:$0xff]
        %v249 = vld [vmem:[%s235 + $0x8] sm:$0xff]
        %v250 = vld [vmem:[%s235 + $0x10] sm:$0xff]
        %v251 = vld [vmem:[%s235 + $0x18] sm:$0xff]
        %v256 = vunpack.c.l.b16 %v248
        %v257 = vunpack.c.h.b16 %v248
        %v258 = vunpack.c.l.b16 %v249
        %v259 = vunpack.c.h.b16 %v249
        %v260 = vunpack.c.l.b16 %v250
        %v261 = vunpack.c.h.b16 %v250
        %v262 = vunpack.c.l.b16 %v251
        %v263 = vunpack.c.h.b16 %v251
        %v264 = vpack.c.b16 %v258, %v256
        %v265 = vpack.c.b16 %v259, %v257
        %v266 = vpack.c.b16 %v262, %v260
        %v267 = vpack.c.b16 %v263, %v261
        %vm272 = vcmask 261120
        %v274 = vsel %vm272, %v247, 0
        %276 = vmatprep.subr.bf16.mxu0 0
        %277 = vmatpush1.bf16.msra.mxu0 0
        %278 = vmatprep.subr.bf16.mxu0 0
        %279 = vmatpush1.bf16.msra.mxu0 0
        %280 = vmatprep.subr.bf16.mxu0 0
        %281 = vmatpush1.bf16.msra.mxu0 0
        %282 = vmatprep.subr.bf16.mxu0 0
        %283 = vmatpush1.bf16.msra.mxu0 0
        %284 = vmatprep.subr.bf16.mxu0 0
        %285 = vmatpush1.bf16.msra.mxu0 0
        %286 = vmatprep.subr.bf16.mxu0 0
        %287 = vmatpush1.bf16.msra.mxu0 0
        %288 = vmatprep.subr.bf16.mxu0 %v267
        %289 = vmatpush1.bf16.msra.mxu0 %v266
        %290 = vmatprep.subr.bf16.mxu0 %v265
        %291 = vmatpush1.bf16.msra.mxu0 %v264
        %292 = vmatprep.subr.bf16.mxu0 0
        %293 = vmatpush2.bf16.msra.mxu0 0
        %294 = vmatprep.subr.bf16.mxu0 0
        %295 = vmatpush2.bf16.msra.mxu0 0
        %296 = vmatprep.subr.bf16.mxu0 0
        %297 = vmatpush2.bf16.msra.mxu0 0
        %298 = vmatprep.subr.bf16.mxu0 0
        %299 = vmatpush2.bf16.msra.mxu0 0
        %300 = vmatprep.subr.bf16.mxu0 0
        %301 = vmatpush2.bf16.msra.mxu0 0
        %302 = vmatprep.subr.bf16.mxu0 0
        %303 = vmatpush2.bf16.msra.mxu0 0
        %304 = vmatprep.subr.bf16.mxu0 0
        %305 = vmatpush2.bf16.msra.mxu0 0
        %306 = vmatprep.subr.bf16.mxu0 0
        %307 = vmatpush2.bf16.msra.mxu0 0
        %308 = vmatprep.mubr.bf16.mxu0 0
        %309 = vmatmul.mubr.bf16.gmra.mxu0 %v274
        %v310 = vpop.f32.mrf.mxu0
        %v311 = vadd.f32 0.0, %v310
        %v312 = vpop.f32.mrf.mxu0
        %v313 = vadd.f32 0.0, %v312
        %v314 = vpop.f32.mrf.mxu0
        %v315 = vpop.f32.mrf.mxu0
        %316 = vdwg.mxu0
        %v317 = vmul.f32 %v311, 0.17677669
        %v318 = vmul.f32 %v313, 0.17677669
        %v319 = vmax.f32 %v317, %v318
        %320 = vmax.xlane.f32.xlu0 %v319
        %v321 = vpop.xlane.xlu0 %320
        %v322 = vsub.f32 %v317, %v321
        %v323 = vsub.f32 %v318, %v321
        %v324 = vmul.f32 %v322, 1.442695
        %v325 = vpow.pop %v324
        %v326 = vmul.f32 %v323, 1.442695
        %v327 = vpow.pop %v326
        %v328 = vadd.f32 %v325, %v327
        %329 = vadd.xlane.f32.xlu0 %v328
        %v330 = vpop.xlane.xlu0 %329
        %v331 = vrcp.pop %v330
        %v332 = vmul.f32 %v325, %v331
        %v333 = vmul.f32 %v327, %v331
        %334 = vst [vmem:[%s245] sm:$0xff] %v332
        %335 = vst [vmem:[%s245 + $0x8] sm:$0xff] %v333
        %v336 = vpack.c.bf16 %v332, %v332
        %v337 = vpack.c.bf16 %v333, %v333
        %v338 = vld [vmem:[%s240] sm:$0xf]
        %v339 = vld [vmem:[%s240 + $0x4] sm:$0xf]
        %v340 = vld [vmem:[%s240 + $0x8] sm:$0xf]
        %v341 = vld [vmem:[%s240 + $0xc] sm:$0xf]
        %v342 = vld [vmem:[%s240 + $0x10] sm:$0xf]
        %v343 = vld [vmem:[%s240 + $0x14] sm:$0xf]
        %v344 = vld [vmem:[%s240 + $0x18] sm:$0xf]
        %v345 = vld [vmem:[%s240 + $0x1c] sm:$0xf]
        %v346 = vld [vmem:[%s240 + $0x20] sm:$0xf]
        %v347 = vld [vmem:[%s240 + $0x24] sm:$0xf]
        %v348 = vld [vmem:[%s240 + $0x28] sm:$0xf]
        %v349 = vld [vmem:[%s240 + $0x2c] sm:$0xf]
        %v350 = vld [vmem:[%s240 + $0x30] sm:$0xf]
        %v351 = vld [vmem:[%s240 + $0x34] sm:$0xf]
        %v352 = vld [vmem:[%s240 + $0x38] sm:$0xf]
        %v353 = vld [vmem:[%s240 + $0x3c] sm:$0xf]
        %v354 = vld [vmem:[%s240 + $0x40] sm:$0xf]
        %v355 = vld [vmem:[%s240 + $0x44] sm:$0xf]
        %v356 = vld [vmem:[%s240 + $0x48] sm:$0xf]
        %v357 = vld [vmem:[%s240 + $0x4c] sm:$0xf]
        %v358 = vld [vmem:[%s240 + $0x50] sm:$0xf]
        %v359 = vld [vmem:[%s240 + $0x54] sm:$0xf]
        %v360 = vld [vmem:[%s240 + $0x58] sm:$0xf]
        %v361 = vld [vmem:[%s240 + $0x5c] sm:$0xf]
        %v362 = vld [vmem:[%s240 + $0x60] sm:$0xf]
        %v363 = vld [vmem:[%s240 + $0x64] sm:$0xf]
        %v364 = vld [vmem:[%s240 + $0x68] sm:$0xf]
        %v365 = vld [vmem:[%s240 + $0x6c] sm:$0xf]
        %v366 = vld [vmem:[%s240 + $0x70] sm:$0xf]
        %v367 = vld [vmem:[%s240 + $0x74] sm:$0xf]
        %v368 = vld [vmem:[%s240 + $0x78] sm:$0xf]
        %v369 = vld [vmem:[%s240 + $0x7c] sm:$0xf]
        %v402 = vunpack.c.l.b16 %v338
        %v403 = vunpack.c.l.b16 %v339
        %v404 = vunpack.c.l.b16 %v340
        %v405 = vunpack.c.l.b16 %v341
        %v406 = vunpack.c.l.b16 %v342
        %v407 = vunpack.c.l.b16 %v343
        %v408 = vunpack.c.l.b16 %v344
        %v409 = vunpack.c.l.b16 %v345
        %v410 = vunpack.c.l.b16 %v346
        %v411 = vunpack.c.l.b16 %v347
        %v412 = vunpack.c.l.b16 %v348
        %v413 = vunpack.c.l.b16 %v349
        %v414 = vunpack.c.l.b16 %v350
        %v415 = vunpack.c.l.b16 %v351
        %v416 = vunpack.c.l.b16 %v352
        %v417 = vunpack.c.l.b16 %v353
        %v418 = vunpack.c.l.b16 %v354
        %v419 = vunpack.c.l.b16 %v355
        %v420 = vunpack.c.l.b16 %v356
        %v421 = vunpack.c.l.b16 %v357
        %v422 = vunpack.c.l.b16 %v358
        %v423 = vunpack.c.l.b16 %v359
        %v424 = vunpack.c.l.b16 %v360
        %v425 = vunpack.c.l.b16 %v361
        %v426 = vunpack.c.l.b16 %v362
        %v427 = vunpack.c.l.b16 %v363
        %v428 = vunpack.c.l.b16 %v364
        %v429 = vunpack.c.l.b16 %v365
        %v430 = vunpack.c.l.b16 %v366
        %v431 = vunpack.c.l.b16 %v367
        %v432 = vunpack.c.l.b16 %v368
        %v433 = vunpack.c.l.b16 %v369
        %v434 = vpack.c.b16 %v403, %v402
        %v435 = vpack.c.b16 %v405, %v404
        %v436 = vpack.c.b16 %v407, %v406
        %v437 = vpack.c.b16 %v409, %v408
        %v438 = vpack.c.b16 %v411, %v410
        %v439 = vpack.c.b16 %v413, %v412
        %v440 = vpack.c.b16 %v415, %v414
        %v441 = vpack.c.b16 %v417, %v416
        %v442 = vpack.c.b16 %v419, %v418
        %v443 = vpack.c.b16 %v421, %v420
        %v444 = vpack.c.b16 %v423, %v422
        %v445 = vpack.c.b16 %v425, %v424
        %v446 = vpack.c.b16 %v427, %v426
        %v447 = vpack.c.b16 %v429, %v428
        %v448 = vpack.c.b16 %v431, %v430
        %v449 = vpack.c.b16 %v433, %v432
        %466 = vmatprep.subr.bf16.mxu0 0
        %467 = vmatpush1.bf16.msra.mxu0 %v441
        %468 = vmatprep.subr.bf16.mxu0 0
        %469 = vmatpush1.bf16.msra.mxu0 %v440
        %470 = vmatprep.subr.bf16.mxu0 0
        %471 = vmatpush1.bf16.msra.mxu0 %v439
        %472 = vmatprep.subr.bf16.mxu0 0
        %473 = vmatpush1.bf16.msra.mxu0 %v438
        %474 = vmatprep.subr.bf16.mxu0 0
        %475 = vmatpush1.bf16.msra.mxu0 %v437
        %476 = vmatprep.subr.bf16.mxu0 0
        %477 = vmatpush1.bf16.msra.mxu0 %v436
        %478 = vmatprep.subr.bf16.mxu0 0
        %479 = vmatpush1.bf16.msra.mxu0 %v435
        %480 = vmatprep.subr.bf16.mxu0 0
        %481 = vmatpush1.bf16.msra.mxu0 %v434
        %482 = vmatprep.subr.bf16.mxu0 0
        %483 = vmatpush2.bf16.msra.mxu0 %v449
        %484 = vmatprep.subr.bf16.mxu0 0
        %485 = vmatpush2.bf16.msra.mxu0 %v448
        %486 = vmatprep.subr.bf16.mxu0 0
        %487 = vmatpush2.bf16.msra.mxu0 %v447
        %488 = vmatprep.subr.bf16.mxu0 0
        %489 = vmatpush2.bf16.msra.mxu0 %v446
        %490 = vmatprep.subr.bf16.mxu0 0
        %491 = vmatpush2.bf16.msra.mxu0 %v445
        %492 = vmatprep.subr.bf16.mxu0 0
        %493 = vmatpush2.bf16.msra.mxu0 %v444
        %494 = vmatprep.subr.bf16.mxu0 0
        %495 = vmatpush2.bf16.msra.mxu0 %v443
        %496 = vmatprep.subr.bf16.mxu0 0
        %497 = vmatpush2.bf16.msra.mxu0 %v442
        %498 = vmatprep.mubr.bf16.mxu0 %v337
        %499 = vmatmul.mubr.bf16.gmra.mxu0 %v336
        %v500 = vpop.f32.mrf.mxu0
        %v501 = vadd.f32 0.0, %v500
        %v502 = vpop.f32.mrf.mxu0
        %v503 = vpop.f32.mrf.mxu0
        %v504 = vpop.f32.mrf.mxu0
        %505 = vdwg.mxu0
        %506 = vst.msk [vmem:[%s219] sm:$0xff] %vm272, %v501
        %s507 = sand.u32 %s105, 1
        %s508 = scalar_lea.sflag [#allocation3], %s507
        %s509 = sand.u32 %s105, 1
        %s510 = smul.addr %s509, 8
        %s511 = scalar_lea.vmem [#allocation2], %s510
        %p512 = scmp.lt.s32.totalorder %s19, 1
        %s513 = scalar_select %p512, %s19, 1
        %s514 = smul.addr %s513, 2
        %s515 = smul.addr %s514, 8
        %s516 = scalar_lea.vmem %s4, %s515
        // Predicated region
        $region33: #{position_attention.17} parent=31 // pred_check
          %p517 = pneg %p115
        $region34: #{position_attention.17} parent=31 // pred_check_branch
          %519 = sbr.rel (%p517) target = $region36
        $region35: #{position_attention.17} parent=31 // pred_region
          %s521 = ssub.s32 128, 128
          %522 = vsyncadd %s508, %s521
          %s523 = smul.addr %s19, 128
          %s524 = scalar_lea.hbm %s3, %s523
          %s526 = sshll.u32 %s511, 4
          %s527 = int_to_ptr.vmem [resolvable:$true] %s526
          %529 = dma.vmem_to_hbm [thread:$0]  %s527, 128, %s524, %s508
        $region36: #{position_attention.17} parent=31 // pred_fallthru
          _
        // Predicated region
        $region37: #{position_attention.17} parent=31 // pred_check
          %p530 = pneg %p141
        $region38: #{position_attention.17} parent=31 // pred_check_branch
          %532 = sbr.rel (%p530) target = $region40
        $region39: #{position_attention.17} parent=31 // pred_region
          _
        $region40: #{position_attention.17} parent=31 // pred_fallthru
          _
      $region32: #{position_attention.17} parent=5 // pred_fallthru
        _
      %p533 = scmp.le.s32.totalorder 2, %s14
      // Predicated region
      $region41: #{position_attention.17} parent=5 // pred_check
        %p534 = pneg %p533
      $region42: #{position_attention.17} parent=5 // pred_check_branch
        %536 = sbr.rel (%p534) target = $region44
      $region43: #{position_attention.17} parent=5 // pred_region
        %s537 = ssub.s32 %s14, 2
        // Predicated region
        $region45: #{position_attention.17} parent=43 // pred_check
          %p538 = pneg %p121
        $region46: #{position_attention.17} parent=43 // pred_check_branch
          %540 = sbr.rel (%p538) target = $region48
        $region47: #{position_attention.17} parent=43 // pred_region
          %s541 = sand.u32 %s106, 1
          %s542 = scalar_lea.sflag [#allocation3], %s541
          %s543 = sand.u32 %s106, 1
          %s544 = smul.addr %s543, 8
          %s545 = scalar_lea.vmem [#allocation2], %s544
          %546 = dma.done %s542, 128
        $region48: #{position_attention.17} parent=43 // pred_fallthru
          _
        // Predicated region
        $region49: #{position_attention.17} parent=43 // pred_check
          %p547 = pneg %p147
        $region50: #{position_attention.17} parent=43 // pred_check_branch
          %549 = sbr.rel (%p547) target = $region52
        $region51: #{position_attention.17} parent=43 // pred_region
          %p550 = scmp.lt.s32.totalorder %s20, 1
          %s551 = scalar_select %p550, %s20, 1
          %s552 = smul.addr %s551, 2
          %s553 = smul.addr %s552, 8
          %s554 = scalar_lea.vmem %s4, %s553
        $region52: #{position_attention.17} parent=43 // pred_fallthru
          _
      $region44: #{position_attention.17} parent=5 // pred_fallthru
        _
    $region6: #{position_attention.17} parent=1 // loop_footer
      %s18 = sadd.s32 1, %s14
    $region7: #{position_attention.17} parent=1 // loop_footer_branch
      %13 = sbr.rel target = $region3
    $region8: #{position_attention.17} parent=1 // loop_exit
      _
    %555 = vsyncpa [#allocation3], 1
    %s556 = scalar_lea.sflag [#allocation3], 1
    %557 = vsyncpa %s556, 1

</llo_original>
